<compile_context>
chip_gen: v6e
topology: v6e:2x2x1
jax: 0.10.0
libtpu: 0.0.40
codegen_flags: <defaults>
</compile_context>

<pallas_src>
import jax
import jax.numpy as jnp
from jax.experimental import pallas as pl
from jax.experimental.pallas import tpu as pltpu

D_MODEL = 32
HEADS = 4
D_FF = 2048
EPS = 1e-6
NEG_INF = -1e9


def encoder_layer_kernel(
    x_ref, mask_ref,
    wqkv_ref, bqkv_ref, wo_ref, bo_ref,
    w1_ref, b1_ref, w2_ref, b2_ref,
    a1_ref, n1b_ref, a2_ref, n2b_ref,
    out_ref,
):
    """One grid step processes TB sequences: (M, D) rows, M = TB*S.

    QKV projection, Wo reduction and the feed-forward run flattened over all
    M rows (MXU-friendly); attention scores / softmax / PV run per-sequence
    as (TB, S, S) batched matmuls so no cross-sequence work is wasted.
    """
    x = x_ref[...]                        # (M, D) f32
    M, D = x.shape
    TB, S, _ = mask_ref.shape
    H = HEADS
    dk = D // H

    # ---- fused Q|K|V projection: bf16 operands, f32 accumulation ----
    # (1/sqrt(dk) is already folded into the Q columns host-side.)
    x_bf = x.astype(jnp.bfloat16)
    qkv = jnp.dot(x_bf, wqkv_ref[...],
                  preferred_element_type=jnp.float32) + bqkv_ref[...]   # (M, 3D) f32

    # Leading-dim reshape (M = TB*S, S a sublane multiple) is layout-preserving.
    # TODO(synk): the 32/64/96-lane slices of qkv and the 8-lane per-head windows
    # are sub-128-lane XLU shifts; revisit only if a bundle dump shows XLU pressure.
    q3 = qkv[:, :D].reshape(TB, S, D).astype(jnp.bfloat16)
    k3 = qkv[:, D:2 * D].reshape(TB, S, D).astype(jnp.bfloat16)
    v3 = qkv[:, 2 * D:].reshape(TB, S, D).astype(jnp.bfloat16)

    masked = mask_ref[...] == 0           # (TB, S, S) bool, hoisted out of head loop

    # ---- multi-head attention, per-sequence (TB, S, S) tiles ----
    attn = jnp.zeros((M, D), jnp.float32)
    for h in range(H):                    # H is a tiny static constant -> unrolled
        lo, hi = h * dk, (h + 1) * dk
        scores = jnp.einsum("bqd,bkd->bqk", q3[:, :, lo:hi], k3[:, :, lo:hi],
                            preferred_element_type=jnp.float32)         # (TB,S,S)
        scores = jnp.where(masked, NEG_INF, scores)   # set, like masked_fill(-1e9)
        scores = scores - jnp.max(scores, axis=-1, keepdims=True)
        p = jnp.exp(scores)
        p = p * pl.reciprocal(jnp.sum(p, axis=-1, keepdims=True), approx=True)
        head = jnp.einsum("bqk,bkd->bqd", p.astype(jnp.bfloat16), v3[:, :, lo:hi],
                          preferred_element_type=jnp.float32)            # (TB,S,dk)
        # concat(heads) @ Wo == sum_h head_h @ Wo[h*dk:(h+1)*dk, :] (no in-kernel concat)
        attn = attn + jnp.dot(head.reshape(M, dk).astype(jnp.bfloat16),
                              wo_ref[lo:hi, :],
                              preferred_element_type=jnp.float32)
    attn = attn + bo_ref[...]

    inv_dm1 = 1.0 / (D - 1)               # unbiased (ddof=1) variance, as torch .std()

    def norm(y, alpha, bias):
        mean = jnp.mean(y, axis=-1, keepdims=True)
        var = jnp.sum((y - mean) ** 2, axis=-1, keepdims=True) * inv_dm1
        # Exact divide (review: keep the two Norm reciprocals exact; eps on std).
        return alpha * (y - mean) / (jnp.sqrt(var) + EPS) + bias

    # residual + Norm 1 (dropout_1 is identity in eval mode)
    x1 = norm(x + attn, a1_ref[...], n1b_ref[...])

    # ---- FeedForward: relu(x W1 + b1) W2 + b2, tiled over d_ff ----
    # (dropout inside FF is identity in eval mode)
    x1_bf = x1.astype(jnp.bfloat16)
    d_ff = w1_ref.shape[1]
    FC = min(512, d_ff)
    ff = jnp.zeros((M, D), jnp.float32)
    for c in range(0, d_ff, FC):          # static chunk loop; live h1 is (M, FC)
        h1 = jnp.dot(x1_bf, w1_ref[:, c:c + FC],
                     preferred_element_type=jnp.float32) + b1_ref[:, c:c + FC]
        h1 = jnp.maximum(h1, 0.0).astype(jnp.bfloat16)
        ff = ff + jnp.dot(h1, w2_ref[c:c + FC, :],
                          preferred_element_type=jnp.float32)
    ff = ff + b2_ref[...]

    # residual + Norm 2 (dropout_2 is identity in eval mode)
    # TODO(synk): D=32 < 128 lanes -> masked vst; a lane-dense (TB, S*D) output
    # needs an in-kernel relayout that outweighs the store saving at this size.
    out_ref[...] = norm(x1 + ff, a2_ref[...], n2b_ref[...]).astype(out_ref.dtype)


def _pick_block_batch(batch, seq, target_rows=256):
    """Pick TB (sequences per grid step):
      * TB divides batch and TB*seq is sublane(8)-aligned (or TB == batch),
      * prefer NB = batch/TB >= 2 so both v7x TensorCores get grid steps,
      * among those, the largest TB with TB*seq <= target_rows (~256 fills the
        v6e/v7x 256^2 MXU M dimension and amortizes per-step overhead)."""
    valid = [tb for tb in range(1, batch + 1)
             if batch % tb == 0 and ((tb * seq) % 8 == 0 or tb == batch)]
    multi = [tb for tb in valid if batch // tb >= 2]
    pool = multi if multi else valid
    under = [tb for tb in pool if tb * seq <= target_rows]
    return max(under) if under else min(pool)


def encoder_layer(x, mask, params, *, block_batch=None):
    B, S, D = x.shape
    assert D % HEADS == 0
    dk = D // HEADS
    TB = _pick_block_batch(B, S) if block_batch is None else block_batch
    assert B % TB == 0, "block_batch must divide the batch size"
    M = TB * S
    assert (M % 8 == 0) or (TB == B), "rows per step must be sublane-aligned"
    NB = B // TB

    (wq, bq, wk, bk, wv, bv, wo, bo, w1, b1, w2, b2, a1, n1b, a2, n2b) = params
    d_ff = w1.shape[1]

    # ---- host-side (free) prep ----
    # Fold 1/sqrt(dk) into the Q projection, fuse Q|K|V into one (D, 3D) matmul,
    # and pre-cast the big matmul weights to bf16 (f32 accumulation in-kernel).
    scale = 1.0 / jnp.sqrt(jnp.float32(dk))
    wqkv = jnp.concatenate([wq * scale, wk, wv], axis=1).astype(jnp.bfloat16)
    bqkv = jnp.concatenate([bq * scale, bk, bv], axis=1).astype(jnp.float32)
    wo_b = wo.astype(jnp.bfloat16)
    w1_b = w1.astype(jnp.bfloat16)
    w2_b = w2.astype(jnp.bfloat16)

    x_flat = x.reshape(B * S, D).astype(jnp.float32)
    mask_f = mask.astype(jnp.float32)     # compact (B, S, S); no (M, M) expansion

    weights = [wqkv, bqkv, wo_b, bo, w1_b, b1, w2_b, b2, a1, n1b, a2, n2b]

    in_specs = [
        pl.BlockSpec((M, D), lambda i: (i, 0)),        # this step's TB sequences
        pl.BlockSpec((TB, S, S), lambda i: (i, 0, 0)),  # their compact mask block
    ] + [
        # Whole weight resident in VMEM; constant block index => no re-DMA on
        # subsequent grid steps.
        pl.BlockSpec(w.shape, lambda i: (0, 0)) for w in weights
    ]

    flops = int(
        2 * B * S * D * (3 * D)                 # QKV projection
        + 2 * B * HEADS * S * S * dk * 2        # QK^T and PV (per-sequence)
        + 2 * B * S * D * D                     # output projection
        + 2 * 2 * B * S * D * d_ff              # feed-forward
    )
    transcendentals = int(B * HEADS * S * S + B * S * (HEADS + 4))
    bytes_accessed = int(
        4 * (2 * B * S * D + B * S * S)
        + 2 * (wqkv.size + wo_b.size + w1_b.size + w2_b.size)
        + 4 * (bqkv.size + bo.size + b1.size + b2.size
               + a1.size + n1b.size + a2.size + n2b.size)
    )

    out_flat = pl.pallas_call(
        encoder_layer_kernel,
        out_shape=jax.ShapeDtypeStruct((B * S, D), jnp.float32),
        grid=(NB,),
        in_specs=in_specs,
        out_specs=pl.BlockSpec((M, D), lambda i: (i, 0)),
        compiler_params=pltpu.CompilerParams(dimension_semantics=("parallel",)),
        cost_estimate=pl.CostEstimate(flops=flops,
                                      transcendentals=transcendentals,
                                      bytes_accessed=bytes_accessed),
    )(x_flat, mask_f, *weights)
    return out_flat.reshape(B, S, D)


def make_params(key, d_model=D_MODEL, d_ff=D_FF):
    ks = jax.random.split(key, 8)
    scale = 0.05
    wq = scale * jax.random.normal(ks[0], (d_model, d_model), jnp.float32)
    wk = scale * jax.random.normal(ks[1], (d_model, d_model), jnp.float32)
    wv = scale * jax.random.normal(ks[2], (d_model, d_model), jnp.float32)
    wo = scale * jax.random.normal(ks[3], (d_model, d_model), jnp.float32)
    bq = scale * jax.random.normal(ks[4], (1, d_model), jnp.float32)
    bk = jnp.zeros((1, d_model), jnp.float32)
    bv = scale * jax.random.normal(ks[5], (1, d_model), jnp.float32)
    bo = jnp.zeros((1, d_model), jnp.float32)
    w1 = scale * jax.random.normal(ks[6], (d_model, d_ff), jnp.float32)
    b1 = jnp.zeros((1, d_ff), jnp.float32)
    w2 = scale * jax.random.normal(ks[7], (d_ff, d_model), jnp.float32)
    b2 = jnp.zeros((1, d_model), jnp.float32)
    # Norm params: alpha = ones, bias = zeros (module __init__)
    a1 = jnp.ones((1, d_model), jnp.float32)
    n1b = jnp.zeros((1, d_model), jnp.float32)
    a2 = jnp.ones((1, d_model), jnp.float32)
    n2b = jnp.zeros((1, d_model), jnp.float32)
    return [wq, bq, wk, bk, wv, bv, wo, bo, w1, b1, w2, b2, a1, n1b, a2, n2b]


def reference_encoder_layer(x, mask, params):
    """Pure-JAX f32 reference mirroring the PyTorch forward (eval mode)."""
    (wq, bq, wk, bk, wv, bv, wo, bo, w1, b1, w2, b2, a1, n1b, a2, n2b) = params
    B, S, D = x.shape
    H, dk = HEADS, D // HEADS

    def norm(y, alpha, bias):
        mean = jnp.mean(y, axis=-1, keepdims=True)
        std = jnp.sqrt(jnp.sum((y - mean) ** 2, axis=-1, keepdims=True) / (D - 1))
        return alpha * (y - mean) / (std + EPS) + bias

    q = (x @ wq + bq).reshape(B, S, H, dk).transpose(0, 2, 1, 3)
    k = (x @ wk + bk).reshape(B, S, H, dk).transpose(0, 2, 1, 3)
    v = (x @ wv + bv).reshape(B, S, H, dk).transpose(0, 2, 1, 3)
    scores = jnp.einsum("bhqd,bhkd->bhqk", q, k) / jnp.sqrt(jnp.float32(dk))
    scores = jnp.where(mask[:, None, :, :] == 0, NEG_INF, scores)
    p = jax.nn.softmax(scores, axis=-1)
    heads = jnp.einsum("bhqk,bhkd->bhqd", p, v).transpose(0, 2, 1, 3).reshape(B, S, D)
    attn_out = heads @ wo + bo

    x1 = norm(x + attn_out, a1, n1b)
    ff = jnp.maximum(x1 @ w1 + b1, 0.0) @ w2 + b2
    return norm(x1 + ff, a2, n2b)


if __name__ == "__main__":
    B, S = 2, 8
    key = jax.random.PRNGKey(0)
    kx, kp = jax.random.split(key)
    x = jax.random.normal(kx, (B, S, D_MODEL), jnp.float32)

    # mask: 1 = attend. Mask out the last key position of batch element 1.
    mask = jnp.ones((B, S, S), jnp.float32)
    mask = mask.at[1, :, -1].set(0.0)

    params = make_params(kp)

    out = jax.block_until_ready(encoder_layer(x, mask, params))
    ref = reference_encoder_layer(x, mask, params)

    assert out.shape == (B, S, D_MODEL)
    # Tolerance covers bf16 MXU operands (f32 accumulation) and the approximate
    # EUP reciprocal in the softmax denominator; Norm math is exact f32.
    max_err = jnp.max(jnp.abs(out - ref))
    assert jnp.allclose(out, ref, atol=1e-2, rtol=1e-2), f"max abs err {max_err}"

    print("KERNEL_OK")
</pallas_src>

<mosaic_0001>
module attributes {stable_mosaic.version = 11 : i64} {
  func.func @encoder_layer_kernel(%arg0: i32, %arg1: memref<8x32xf32, #tpu.memory_space<vmem>>, %arg2: memref<1x8x8xf32, #tpu.memory_space<vmem>>, %arg3: memref<32x96xbf16, #tpu.memory_space<vmem>>, %arg4: memref<1x96xf32, #tpu.memory_space<vmem>>, %arg5: memref<32x32xbf16, #tpu.memory_space<vmem>>, %arg6: memref<1x32xf32, #tpu.memory_space<vmem>>, %arg7: memref<32x2048xbf16, #tpu.memory_space<vmem>>, %arg8: memref<1x2048xf32, #tpu.memory_space<vmem>>, %arg9: memref<2048x32xbf16, #tpu.memory_space<vmem>>, %arg10: memref<1x32xf32, #tpu.memory_space<vmem>>, %arg11: memref<1x32xf32, #tpu.memory_space<vmem>>, %arg12: memref<1x32xf32, #tpu.memory_space<vmem>>, %arg13: memref<1x32xf32, #tpu.memory_space<vmem>>, %arg14: memref<1x32xf32, #tpu.memory_space<vmem>>, %arg15: memref<8x32xf32, #tpu.memory_space<vmem>>) attributes {dimension_semantics = [#tpu.dimension_semantics<parallel>], iteration_bounds = array<i64: 2>, scalar_prefetch = 0 : i64, scratch_operands = 0 : i64, tpu.core_type = #tpu.core_type<tc>, window_params = [{transform_indices = @transform_0, window_bounds = array<i64: 8, 32>}, {transform_indices = @transform_1, window_bounds = array<i64: 1, 8, 8>}, {pipeline_mode = #tpu.pipeline_mode<synchronous>, transform_indices = @transform_2, window_bounds = array<i64: 32, 96>}, {pipeline_mode = #tpu.pipeline_mode<synchronous>, transform_indices = @transform_3, window_bounds = array<i64: 1, 96>}, {pipeline_mode = #tpu.pipeline_mode<synchronous>, transform_indices = @transform_4, window_bounds = array<i64: 32, 32>}, {pipeline_mode = #tpu.pipeline_mode<synchronous>, transform_indices = @transform_5, window_bounds = array<i64: 1, 32>}, {pipeline_mode = #tpu.pipeline_mode<synchronous>, transform_indices = @transform_6, window_bounds = array<i64: 32, 2048>}, {pipeline_mode = #tpu.pipeline_mode<synchronous>, transform_indices = @transform_7, window_bounds = array<i64: 1, 2048>}, {pipeline_mode = #tpu.pipeline_mode<synchronous>, transform_indices = @transform_8, window_bounds = array<i64: 2048, 32>}, {pipeline_mode = #tpu.pipeline_mode<synchronous>, transform_indices = @transform_9, window_bounds = array<i64: 1, 32>}, {pipeline_mode = #tpu.pipeline_mode<synchronous>, transform_indices = @transform_10, window_bounds = array<i64: 1, 32>}, {pipeline_mode = #tpu.pipeline_mode<synchronous>, transform_indices = @transform_11, window_bounds = array<i64: 1, 32>}, {pipeline_mode = #tpu.pipeline_mode<synchronous>, transform_indices = @transform_12, window_bounds = array<i64: 1, 32>}, {pipeline_mode = #tpu.pipeline_mode<synchronous>, transform_indices = @transform_13, window_bounds = array<i64: 1, 32>}, {transform_indices = @transform_14, window_bounds = array<i64: 8, 32>}]} {
    %c0 = arith.constant 0 : index
    %c0_0 = arith.constant 0 : index
    %0 = vector.load %arg1[%c0, %c0_0] : memref<8x32xf32, #tpu.memory_space<vmem>>, vector<8x32xf32>
    %1 = arith.truncf %0 : vector<8x32xf32> to vector<8x32xbf16>
    %c0_1 = arith.constant 0 : index
    %c0_2 = arith.constant 0 : index
    %2 = vector.load %arg3[%c0_1, %c0_2] : memref<32x96xbf16, #tpu.memory_space<vmem>>, vector<32x96xbf16>
    %cst = arith.constant dense<0.000000e+00> : vector<8x96xf32>
    %3 = tpu.matmul %1, %2, %cst {dimension_numbers = #tpu.dot_dimension_numbers<[1], [0], [0], [1], [0, 0, 1, 1], [], []>} : vector<8x32xbf16>, vector<32x96xbf16>, vector<8x96xf32> -> vector<8x96xf32>
    %c0_3 = arith.constant 0 : index
    %c0_4 = arith.constant 0 : index
    %4 = vector.load %arg4[%c0_3, %c0_4] : memref<1x96xf32, #tpu.memory_space<vmem>>, vector<1x96xf32>
    %5 = vector.broadcast %4 : vector<1x96xf32> to vector<8x96xf32>
    %6 = arith.addf %3, %5 : vector<8x96xf32>
    %7 = vector.extract_strided_slice %6 {offsets = [0, 0], sizes = [8, 32], strides = [1, 1]} : vector<8x96xf32> to vector<8x32xf32>
    %8 = vector.shape_cast %7 : vector<8x32xf32> to vector<1x8x32xf32>
    %9 = arith.truncf %8 : vector<1x8x32xf32> to vector<1x8x32xbf16>
    %10 = vector.extract_strided_slice %6 {offsets = [0, 32], sizes = [8, 32], strides = [1, 1]} : vector<8x96xf32> to vector<8x32xf32>
    %11 = vector.shape_cast %10 : vector<8x32xf32> to vector<1x8x32xf32>
    %12 = arith.truncf %11 : vector<1x8x32xf32> to vector<1x8x32xbf16>
    %13 = vector.extract_strided_slice %6 {offsets = [0, 64], sizes = [8, 32], strides = [1, 1]} : vector<8x96xf32> to vector<8x32xf32>
    %14 = vector.shape_cast %13 : vector<8x32xf32> to vector<1x8x32xf32>
    %15 = arith.truncf %14 : vector<1x8x32xf32> to vector<1x8x32xbf16>
    %c0_5 = arith.constant 0 : index
    %c0_6 = arith.constant 0 : index
    %c0_7 = arith.constant 0 : index
    %16 = vector.load %arg2[%c0_5, %c0_6, %c0_7] : memref<1x8x8xf32, #tpu.memory_space<vmem>>, vector<1x8x8xf32>
    %cst_8 = arith.constant 0.000000e+00 : f32
    %17 = vector.broadcast %cst_8 : f32 to vector<1x8x8xf32>
    %18 = arith.cmpf oeq, %16, %17 : vector<1x8x8xf32>
    %cst_9 = arith.constant 0.000000e+00 : f32
    %19 = vector.broadcast %cst_9 : f32 to vector<8x32xf32>
    %20 = vector.extract_strided_slice %9 {offsets = [0, 0, 0], sizes = [1, 8, 8], strides = [1, 1, 1]} : vector<1x8x32xbf16> to vector<1x8x8xbf16>
    %21 = vector.extract_strided_slice %12 {offsets = [0, 0, 0], sizes = [1, 8, 8], strides = [1, 1, 1]} : vector<1x8x32xbf16> to vector<1x8x8xbf16>
    "tpu.trace_start"() <{level = 10 : i32, message = "bqd,bkd->bqk"}> : () -> ()
    %cst_10 = arith.constant dense<0.000000e+00> : vector<1x8x8xf32>
    %22 = tpu.matmul %20, %21, %cst_10 {dimension_numbers = #tpu.dot_dimension_numbers<[2], [2], [1], [1], [0, 0, 0, 1, 1, 1], [0], [0]>} : vector<1x8x8xbf16>, vector<1x8x8xbf16>, vector<1x8x8xf32> -> vector<1x8x8xf32>
    %cst_11 = arith.constant -1.000000e+09 : f32
    "tpu.trace_stop"() : () -> ()
    %23 = vector.broadcast %cst_11 : f32 to vector<1x8x8xf32>
    %24 = arith.select %18, %23, %22 : vector<1x8x8xi1>, vector<1x8x8xf32>
    %cst_12 = arith.constant dense<0xFF800000> : vector<1x8xf32>
    %25 = vector.multi_reduction <maximumf>, %24, %cst_12 [2] : vector<1x8x8xf32> to vector<1x8xf32>
    %26 = vector.shape_cast %25 : vector<1x8xf32> to vector<1x8x1xf32>
    %27 = vector.broadcast %26 : vector<1x8x1xf32> to vector<1x8x8xf32>
    %28 = arith.subf %24, %27 : vector<1x8x8xf32>
    %29 = math.exp %28 : vector<1x8x8xf32>
    %cst_13 = arith.constant dense<0.000000e+00> : vector<1x8xf32>
    %30 = vector.multi_reduction <add>, %29, %cst_13 [2] : vector<1x8x8xf32> to vector<1x8xf32>
    %31 = vector.shape_cast %30 : vector<1x8xf32> to vector<1x8x1xf32>
    %32 = tpu.reciprocal %31 {approx = true} : vector<1x8x1xf32> -> vector<1x8x1xf32>
    %33 = vector.broadcast %32 : vector<1x8x1xf32> to vector<1x8x8xf32>
    %34 = arith.mulf %29, %33 : vector<1x8x8xf32>
    %35 = arith.truncf %34 : vector<1x8x8xf32> to vector<1x8x8xbf16>
    %36 = vector.extract_strided_slice %15 {offsets = [0, 0, 0], sizes = [1, 8, 8], strides = [1, 1, 1]} : vector<1x8x32xbf16> to vector<1x8x8xbf16>
    "tpu.trace_start"() <{level = 10 : i32, message = "bqk,bkd->bqd"}> : () -> ()
    %cst_14 = arith.constant dense<0.000000e+00> : vector<1x8x8xf32>
    %37 = tpu.matmul %35, %36, %cst_14 {dimension_numbers = #tpu.dot_dimension_numbers<[2], [1], [1], [2], [0, 0, 0, 1, 1, 2], [0], [0]>} : vector<1x8x8xbf16>, vector<1x8x8xbf16>, vector<1x8x8xf32> -> vector<1x8x8xf32>
    "tpu.trace_stop"() : () -> ()
    %38 = vector.shape_cast %37 : vector<1x8x8xf32> to vector<8x8xf32>
    %39 = arith.truncf %38 : vector<8x8xf32> to vector<8x8xbf16>
    %c0_15 = arith.constant 0 : index
    %c0_16 = arith.constant 0 : index
    %40 = vector.load %arg5[%c0_15, %c0_16] : memref<32x32xbf16, #tpu.memory_space<vmem>>, vector<8x32xbf16>
    %cst_17 = arith.constant dense<0.000000e+00> : vector<8x32xf32>
    %41 = tpu.matmul %39, %40, %cst_17 {dimension_numbers = #tpu.dot_dimension_numbers<[1], [0], [0], [1], [0, 0, 1, 1], [], []>} : vector<8x8xbf16>, vector<8x32xbf16>, vector<8x32xf32> -> vector<8x32xf32>
    %42 = arith.addf %19, %41 : vector<8x32xf32>
    %43 = vector.extract_strided_slice %9 {offsets = [0, 0, 8], sizes = [1, 8, 8], strides = [1, 1, 1]} : vector<1x8x32xbf16> to vector<1x8x8xbf16>
    %44 = vector.extract_strided_slice %12 {offsets = [0, 0, 8], sizes = [1, 8, 8], strides = [1, 1, 1]} : vector<1x8x32xbf16> to vector<1x8x8xbf16>
    "tpu.trace_start"() <{level = 10 : i32, message = "bqd,bkd->bqk"}> : () -> ()
    %cst_18 = arith.constant dense<0.000000e+00> : vector<1x8x8xf32>
    %45 = tpu.matmul %43, %44, %cst_18 {dimension_numbers = #tpu.dot_dimension_numbers<[2], [2], [1], [1], [0, 0, 0, 1, 1, 1], [0], [0]>} : vector<1x8x8xbf16>, vector<1x8x8xbf16>, vector<1x8x8xf32> -> vector<1x8x8xf32>
    %cst_19 = arith.constant -1.000000e+09 : f32
    "tpu.trace_stop"() : () -> ()
    %46 = vector.broadcast %cst_19 : f32 to vector<1x8x8xf32>
    %47 = arith.select %18, %46, %45 : vector<1x8x8xi1>, vector<1x8x8xf32>
    %cst_20 = arith.constant dense<0xFF800000> : vector<1x8xf32>
    %48 = vector.multi_reduction <maximumf>, %47, %cst_20 [2] : vector<1x8x8xf32> to vector<1x8xf32>
    %49 = vector.shape_cast %48 : vector<1x8xf32> to vector<1x8x1xf32>
    %50 = vector.broadcast %49 : vector<1x8x1xf32> to vector<1x8x8xf32>
    %51 = arith.subf %47, %50 : vector<1x8x8xf32>
    %52 = math.exp %51 : vector<1x8x8xf32>
    %cst_21 = arith.constant dense<0.000000e+00> : vector<1x8xf32>
    %53 = vector.multi_reduction <add>, %52, %cst_21 [2] : vector<1x8x8xf32> to vector<1x8xf32>
    %54 = vector.shape_cast %53 : vector<1x8xf32> to vector<1x8x1xf32>
    %55 = tpu.reciprocal %54 {approx = true} : vector<1x8x1xf32> -> vector<1x8x1xf32>
    %56 = vector.broadcast %55 : vector<1x8x1xf32> to vector<1x8x8xf32>
    %57 = arith.mulf %52, %56 : vector<1x8x8xf32>
    %58 = arith.truncf %57 : vector<1x8x8xf32> to vector<1x8x8xbf16>
    %59 = vector.extract_strided_slice %15 {offsets = [0, 0, 8], sizes = [1, 8, 8], strides = [1, 1, 1]} : vector<1x8x32xbf16> to vector<1x8x8xbf16>
    "tpu.trace_start"() <{level = 10 : i32, message = "bqk,bkd->bqd"}> : () -> ()
    %cst_22 = arith.constant dense<0.000000e+00> : vector<1x8x8xf32>
    %60 = tpu.matmul %58, %59, %cst_22 {dimension_numbers = #tpu.dot_dimension_numbers<[2], [1], [1], [2], [0, 0, 0, 1, 1, 2], [0], [0]>} : vector<1x8x8xbf16>, vector<1x8x8xbf16>, vector<1x8x8xf32> -> vector<1x8x8xf32>
    "tpu.trace_stop"() : () -> ()
    %61 = vector.shape_cast %60 : vector<1x8x8xf32> to vector<8x8xf32>
    %62 = arith.truncf %61 : vector<8x8xf32> to vector<8x8xbf16>
    %c8 = arith.constant 8 : index
    %c0_23 = arith.constant 0 : index
    %63 = vector.load %arg5[%c8, %c0_23] : memref<32x32xbf16, #tpu.memory_space<vmem>>, vector<8x32xbf16>
    %cst_24 = arith.constant dense<0.000000e+00> : vector<8x32xf32>
    %64 = tpu.matmul %62, %63, %cst_24 {dimension_numbers = #tpu.dot_dimension_numbers<[1], [0], [0], [1], [0, 0, 1, 1], [], []>} : vector<8x8xbf16>, vector<8x32xbf16>, vector<8x32xf32> -> vector<8x32xf32>
    %65 = arith.addf %42, %64 : vector<8x32xf32>
    %66 = vector.extract_strided_slice %9 {offsets = [0, 0, 16], sizes = [1, 8, 8], strides = [1, 1, 1]} : vector<1x8x32xbf16> to vector<1x8x8xbf16>
    %67 = vector.extract_strided_slice %12 {offsets = [0, 0, 16], sizes = [1, 8, 8], strides = [1, 1, 1]} : vector<1x8x32xbf16> to vector<1x8x8xbf16>
    "tpu.trace_start"() <{level = 10 : i32, message = "bqd,bkd->bqk"}> : () -> ()
    %cst_25 = arith.constant dense<0.000000e+00> : vector<1x8x8xf32>
    %68 = tpu.matmul %66, %67, %cst_25 {dimension_numbers = #tpu.dot_dimension_numbers<[2], [2], [1], [1], [0, 0, 0, 1, 1, 1], [0], [0]>} : vector<1x8x8xbf16>, vector<1x8x8xbf16>, vector<1x8x8xf32> -> vector<1x8x8xf32>
    %cst_26 = arith.constant -1.000000e+09 : f32
    "tpu.trace_stop"() : () -> ()
    %69 = vector.broadcast %cst_26 : f32 to vector<1x8x8xf32>
    %70 = arith.select %18, %69, %68 : vector<1x8x8xi1>, vector<1x8x8xf32>
    %cst_27 = arith.constant dense<0xFF800000> : vector<1x8xf32>
    %71 = vector.multi_reduction <maximumf>, %70, %cst_27 [2] : vector<1x8x8xf32> to vector<1x8xf32>
    %72 = vector.shape_cast %71 : vector<1x8xf32> to vector<1x8x1xf32>
    %73 = vector.broadcast %72 : vector<1x8x1xf32> to vector<1x8x8xf32>
    %74 = arith.subf %70, %73 : vector<1x8x8xf32>
    %75 = math.exp %74 : vector<1x8x8xf32>
    %cst_28 = arith.constant dense<0.000000e+00> : vector<1x8xf32>
    %76 = vector.multi_reduction <add>, %75, %cst_28 [2] : vector<1x8x8xf32> to vector<1x8xf32>
    %77 = vector.shape_cast %76 : vector<1x8xf32> to vector<1x8x1xf32>
    %78 = tpu.reciprocal %77 {approx = true} : vector<1x8x1xf32> -> vector<1x8x1xf32>
    %79 = vector.broadcast %78 : vector<1x8x1xf32> to vector<1x8x8xf32>
    %80 = arith.mulf %75, %79 : vector<1x8x8xf32>
    %81 = arith.truncf %80 : vector<1x8x8xf32> to vector<1x8x8xbf16>
    %82 = vector.extract_strided_slice %15 {offsets = [0, 0, 16], sizes = [1, 8, 8], strides = [1, 1, 1]} : vector<1x8x32xbf16> to vector<1x8x8xbf16>
    "tpu.trace_start"() <{level = 10 : i32, message = "bqk,bkd->bqd"}> : () -> ()
    %cst_29 = arith.constant dense<0.000000e+00> : vector<1x8x8xf32>
    %83 = tpu.matmul %81, %82, %cst_29 {dimension_numbers = #tpu.dot_dimension_numbers<[2], [1], [1], [2], [0, 0, 0, 1, 1, 2], [0], [0]>} : vector<1x8x8xbf16>, vector<1x8x8xbf16>, vector<1x8x8xf32> -> vector<1x8x8xf32>
    "tpu.trace_stop"() : () -> ()
    %84 = vector.shape_cast %83 : vector<1x8x8xf32> to vector<8x8xf32>
    %85 = arith.truncf %84 : vector<8x8xf32> to vector<8x8xbf16>
    %c16 = arith.constant 16 : index
    %c0_30 = arith.constant 0 : index
    %86 = vector.load %arg5[%c16, %c0_30] : memref<32x32xbf16, #tpu.memory_space<vmem>>, vector<8x32xbf16>
    %cst_31 = arith.constant dense<0.000000e+00> : vector<8x32xf32>
    %87 = tpu.matmul %85, %86, %cst_31 {dimension_numbers = #tpu.dot_dimension_numbers<[1], [0], [0], [1], [0, 0, 1, 1], [], []>} : vector<8x8xbf16>, vector<8x32xbf16>, vector<8x32xf32> -> vector<8x32xf32>
    %88 = arith.addf %65, %87 : vector<8x32xf32>
    %89 = vector.extract_strided_slice %9 {offsets = [0, 0, 24], sizes = [1, 8, 8], strides = [1, 1, 1]} : vector<1x8x32xbf16> to vector<1x8x8xbf16>
    %90 = vector.extract_strided_slice %12 {offsets = [0, 0, 24], sizes = [1, 8, 8], strides = [1, 1, 1]} : vector<1x8x32xbf16> to vector<1x8x8xbf16>
    "tpu.trace_start"() <{level = 10 : i32, message = "bqd,bkd->bqk"}> : () -> ()
    %cst_32 = arith.constant dense<0.000000e+00> : vector<1x8x8xf32>
    %91 = tpu.matmul %89, %90, %cst_32 {dimension_numbers = #tpu.dot_dimension_numbers<[2], [2], [1], [1], [0, 0, 0, 1, 1, 1], [0], [0]>} : vector<1x8x8xbf16>, vector<1x8x8xbf16>, vector<1x8x8xf32> -> vector<1x8x8xf32>
    %cst_33 = arith.constant -1.000000e+09 : f32
    "tpu.trace_stop"() : () -> ()
    %92 = vector.broadcast %cst_33 : f32 to vector<1x8x8xf32>
    %93 = arith.select %18, %92, %91 : vector<1x8x8xi1>, vector<1x8x8xf32>
    %cst_34 = arith.constant dense<0xFF800000> : vector<1x8xf32>
    %94 = vector.multi_reduction <maximumf>, %93, %cst_34 [2] : vector<1x8x8xf32> to vector<1x8xf32>
    %95 = vector.shape_cast %94 : vector<1x8xf32> to vector<1x8x1xf32>
    %96 = vector.broadcast %95 : vector<1x8x1xf32> to vector<1x8x8xf32>
    %97 = arith.subf %93, %96 : vector<1x8x8xf32>
    %98 = math.exp %97 : vector<1x8x8xf32>
    %cst_35 = arith.constant dense<0.000000e+00> : vector<1x8xf32>
    %99 = vector.multi_reduction <add>, %98, %cst_35 [2] : vector<1x8x8xf32> to vector<1x8xf32>
    %100 = vector.shape_cast %99 : vector<1x8xf32> to vector<1x8x1xf32>
    %101 = tpu.reciprocal %100 {approx = true} : vector<1x8x1xf32> -> vector<1x8x1xf32>
    %102 = vector.broadcast %101 : vector<1x8x1xf32> to vector<1x8x8xf32>
    %103 = arith.mulf %98, %102 : vector<1x8x8xf32>
    %104 = arith.truncf %103 : vector<1x8x8xf32> to vector<1x8x8xbf16>
    %105 = vector.extract_strided_slice %15 {offsets = [0, 0, 24], sizes = [1, 8, 8], strides = [1, 1, 1]} : vector<1x8x32xbf16> to vector<1x8x8xbf16>
    "tpu.trace_start"() <{level = 10 : i32, message = "bqk,bkd->bqd"}> : () -> ()
    %cst_36 = arith.constant dense<0.000000e+00> : vector<1x8x8xf32>
    %106 = tpu.matmul %104, %105, %cst_36 {dimension_numbers = #tpu.dot_dimension_numbers<[2], [1], [1], [2], [0, 0, 0, 1, 1, 2], [0], [0]>} : vector<1x8x8xbf16>, vector<1x8x8xbf16>, vector<1x8x8xf32> -> vector<1x8x8xf32>
    "tpu.trace_stop"() : () -> ()
    %107 = vector.shape_cast %106 : vector<1x8x8xf32> to vector<8x8xf32>
    %108 = arith.truncf %107 : vector<8x8xf32> to vector<8x8xbf16>
    %c24 = arith.constant 24 : index
    %c0_37 = arith.constant 0 : index
    %109 = vector.load %arg5[%c24, %c0_37] : memref<32x32xbf16, #tpu.memory_space<vmem>>, vector<8x32xbf16>
    %cst_38 = arith.constant dense<0.000000e+00> : vector<8x32xf32>
    %110 = tpu.matmul %108, %109, %cst_38 {dimension_numbers = #tpu.dot_dimension_numbers<[1], [0], [0], [1], [0, 0, 1, 1], [], []>} : vector<8x8xbf16>, vector<8x32xbf16>, vector<8x32xf32> -> vector<8x32xf32>
    %111 = arith.addf %88, %110 : vector<8x32xf32>
    %c0_39 = arith.constant 0 : index
    %c0_40 = arith.constant 0 : index
    %112 = vector.load %arg6[%c0_39, %c0_40] : memref<1x32xf32, #tpu.memory_space<vmem>>, vector<1x32xf32>
    %113 = vector.broadcast %112 : vector<1x32xf32> to vector<8x32xf32>
    %114 = arith.addf %111, %113 : vector<8x32xf32>
    %115 = arith.addf %0, %114 : vector<8x32xf32>
    %c0_41 = arith.constant 0 : index
    %c0_42 = arith.constant 0 : index
    %116 = vector.load %arg11[%c0_41, %c0_42] : memref<1x32xf32, #tpu.memory_space<vmem>>, vector<1x32xf32>
    %c0_43 = arith.constant 0 : index
    %c0_44 = arith.constant 0 : index
    %117 = vector.load %arg12[%c0_43, %c0_44] : memref<1x32xf32, #tpu.memory_space<vmem>>, vector<1x32xf32>
    %cst_45 = arith.constant dense<0.000000e+00> : vector<8xf32>
    %118 = vector.multi_reduction <add>, %115, %cst_45 [1] : vector<8x32xf32> to vector<8xf32>
    %119 = vector.shape_cast %118 : vector<8xf32> to vector<8x1xf32>
    %cst_46 = arith.constant 3.200000e+01 : f32
    %120 = vector.broadcast %cst_46 : f32 to vector<8x1xf32>
    %121 = arith.divf %119, %120 : vector<8x1xf32>
    %122 = vector.broadcast %121 : vector<8x1xf32> to vector<8x32xf32>
    %123 = arith.subf %115, %122 : vector<8x32xf32>
    %124 = arith.mulf %123, %123 : vector<8x32xf32>
    %cst_47 = arith.constant dense<0.000000e+00> : vector<8xf32>
    %125 = vector.multi_reduction <add>, %124, %cst_47 [1] : vector<8x32xf32> to vector<8xf32>
    %126 = vector.shape_cast %125 : vector<8xf32> to vector<8x1xf32>
    %cst_48 = arith.constant 0.0322580636 : f32
    %127 = vector.broadcast %cst_48 : f32 to vector<8x1xf32>
    %128 = arith.mulf %126, %127 : vector<8x1xf32>
    %129 = vector.broadcast %121 : vector<8x1xf32> to vector<8x32xf32>
    %130 = arith.subf %115, %129 : vector<8x32xf32>
    %131 = vector.broadcast %116 : vector<1x32xf32> to vector<8x32xf32>
    %132 = arith.mulf %131, %130 : vector<8x32xf32>
    %133 = math.sqrt %128 : vector<8x1xf32>
    %cst_49 = arith.constant 9.99999997E-7 : f32
    %134 = vector.broadcast %cst_49 : f32 to vector<8x1xf32>
    %135 = arith.addf %133, %134 : vector<8x1xf32>
    %136 = vector.broadcast %135 : vector<8x1xf32> to vector<8x32xf32>
    %137 = arith.divf %132, %136 : vector<8x32xf32>
    %138 = vector.broadcast %117 : vector<1x32xf32> to vector<8x32xf32>
    %139 = arith.addf %137, %138 : vector<8x32xf32>
    %140 = arith.truncf %139 : vector<8x32xf32> to vector<8x32xbf16>
    %cst_50 = arith.constant 0.000000e+00 : f32
    %141 = vector.broadcast %cst_50 : f32 to vector<8x32xf32>
    %c0_51 = arith.constant 0 : index
    %c0_52 = arith.constant 0 : index
    %142 = vector.load %arg7[%c0_51, %c0_52] : memref<32x2048xbf16, #tpu.memory_space<vmem>>, vector<32x512xbf16>
    %cst_53 = arith.constant dense<0.000000e+00> : vector<8x512xf32>
    %143 = tpu.matmul %140, %142, %cst_53 {dimension_numbers = #tpu.dot_dimension_numbers<[1], [0], [0], [1], [0, 0, 1, 1], [], []>} : vector<8x32xbf16>, vector<32x512xbf16>, vector<8x512xf32> -> vector<8x512xf32>
    %c0_54 = arith.constant 0 : index
    %c0_55 = arith.constant 0 : index
    %144 = vector.load %arg8[%c0_54, %c0_55] : memref<1x2048xf32, #tpu.memory_space<vmem>>, vector<1x512xf32>
    %145 = vector.broadcast %144 : vector<1x512xf32> to vector<8x512xf32>
    %146 = arith.addf %143, %145 : vector<8x512xf32>
    %cst_56 = arith.constant 0.000000e+00 : f32
    %147 = vector.broadcast %cst_56 : f32 to vector<8x512xf32>
    %148 = arith.maximumf %146, %147 : vector<8x512xf32>
    %149 = arith.truncf %148 : vector<8x512xf32> to vector<8x512xbf16>
    %c0_57 = arith.constant 0 : index
    %c0_58 = arith.constant 0 : index
    %150 = vector.load %arg9[%c0_57, %c0_58] : memref<2048x32xbf16, #tpu.memory_space<vmem>>, vector<512x32xbf16>
    %cst_59 = arith.constant dense<0.000000e+00> : vector<8x32xf32>
    %151 = tpu.matmul %149, %150, %cst_59 {dimension_numbers = #tpu.dot_dimension_numbers<[1], [0], [0], [1], [0, 0, 1, 1], [], []>} : vector<8x512xbf16>, vector<512x32xbf16>, vector<8x32xf32> -> vector<8x32xf32>
    %152 = arith.addf %141, %151 : vector<8x32xf32>
    %c0_60 = arith.constant 0 : index
    %c512 = arith.constant 512 : index
    %153 = vector.load %arg7[%c0_60, %c512] : memref<32x2048xbf16, #tpu.memory_space<vmem>>, vector<32x512xbf16>
    %cst_61 = arith.constant dense<0.000000e+00> : vector<8x512xf32>
    %154 = tpu.matmul %140, %153, %cst_61 {dimension_numbers = #tpu.dot_dimension_numbers<[1], [0], [0], [1], [0, 0, 1, 1], [], []>} : vector<8x32xbf16>, vector<32x512xbf16>, vector<8x512xf32> -> vector<8x512xf32>
    %c0_62 = arith.constant 0 : index
    %c512_63 = arith.constant 512 : index
    %155 = vector.load %arg8[%c0_62, %c512_63] : memref<1x2048xf32, #tpu.memory_space<vmem>>, vector<1x512xf32>
    %156 = vector.broadcast %155 : vector<1x512xf32> to vector<8x512xf32>
    %157 = arith.addf %154, %156 : vector<8x512xf32>
    %cst_64 = arith.constant 0.000000e+00 : f32
    %158 = vector.broadcast %cst_64 : f32 to vector<8x512xf32>
    %159 = arith.maximumf %157, %158 : vector<8x512xf32>
    %160 = arith.truncf %159 : vector<8x512xf32> to vector<8x512xbf16>
    %c512_65 = arith.constant 512 : index
    %c0_66 = arith.constant 0 : index
    %161 = vector.load %arg9[%c512_65, %c0_66] : memref<2048x32xbf16, #tpu.memory_space<vmem>>, vector<512x32xbf16>
    %cst_67 = arith.constant dense<0.000000e+00> : vector<8x32xf32>
    %162 = tpu.matmul %160, %161, %cst_67 {dimension_numbers = #tpu.dot_dimension_numbers<[1], [0], [0], [1], [0, 0, 1, 1], [], []>} : vector<8x512xbf16>, vector<512x32xbf16>, vector<8x32xf32> -> vector<8x32xf32>
    %163 = arith.addf %152, %162 : vector<8x32xf32>
    %c0_68 = arith.constant 0 : index
    %c1024 = arith.constant 1024 : index
    %164 = vector.load %arg7[%c0_68, %c1024] : memref<32x2048xbf16, #tpu.memory_space<vmem>>, vector<32x512xbf16>
    %cst_69 = arith.constant dense<0.000000e+00> : vector<8x512xf32>
    %165 = tpu.matmul %140, %164, %cst_69 {dimension_numbers = #tpu.dot_dimension_numbers<[1], [0], [0], [1], [0, 0, 1, 1], [], []>} : vector<8x32xbf16>, vector<32x512xbf16>, vector<8x512xf32> -> vector<8x512xf32>
    %c0_70 = arith.constant 0 : index
    %c1024_71 = arith.constant 1024 : index
    %166 = vector.load %arg8[%c0_70, %c1024_71] : memref<1x2048xf32, #tpu.memory_space<vmem>>, vector<1x512xf32>
    %167 = vector.broadcast %166 : vector<1x512xf32> to vector<8x512xf32>
    %168 = arith.addf %165, %167 : vector<8x512xf32>
    %cst_72 = arith.constant 0.000000e+00 : f32
    %169 = vector.broadcast %cst_72 : f32 to vector<8x512xf32>
    %170 = arith.maximumf %168, %169 : vector<8x512xf32>
    %171 = arith.truncf %170 : vector<8x512xf32> to vector<8x512xbf16>
    %c1024_73 = arith.constant 1024 : index
    %c0_74 = arith.constant 0 : index
    %172 = vector.load %arg9[%c1024_73, %c0_74] : memref<2048x32xbf16, #tpu.memory_space<vmem>>, vector<512x32xbf16>
    %cst_75 = arith.constant dense<0.000000e+00> : vector<8x32xf32>
    %173 = tpu.matmul %171, %172, %cst_75 {dimension_numbers = #tpu.dot_dimension_numbers<[1], [0], [0], [1], [0, 0, 1, 1], [], []>} : vector<8x512xbf16>, vector<512x32xbf16>, vector<8x32xf32> -> vector<8x32xf32>
    %174 = arith.addf %163, %173 : vector<8x32xf32>
    %c0_76 = arith.constant 0 : index
    %c1536 = arith.constant 1536 : index
    %175 = vector.load %arg7[%c0_76, %c1536] : memref<32x2048xbf16, #tpu.memory_space<vmem>>, vector<32x512xbf16>
    %cst_77 = arith.constant dense<0.000000e+00> : vector<8x512xf32>
    %176 = tpu.matmul %140, %175, %cst_77 {dimension_numbers = #tpu.dot_dimension_numbers<[1], [0], [0], [1], [0, 0, 1, 1], [], []>} : vector<8x32xbf16>, vector<32x512xbf16>, vector<8x512xf32> -> vector<8x512xf32>
    %c0_78 = arith.constant 0 : index
    %c1536_79 = arith.constant 1536 : index
    %177 = vector.load %arg8[%c0_78, %c1536_79] : memref<1x2048xf32, #tpu.memory_space<vmem>>, vector<1x512xf32>
    %178 = vector.broadcast %177 : vector<1x512xf32> to vector<8x512xf32>
    %179 = arith.addf %176, %178 : vector<8x512xf32>
    %cst_80 = arith.constant 0.000000e+00 : f32
    %180 = vector.broadcast %cst_80 : f32 to vector<8x512xf32>
    %181 = arith.maximumf %179, %180 : vector<8x512xf32>
    %182 = arith.truncf %181 : vector<8x512xf32> to vector<8x512xbf16>
    %c1536_81 = arith.constant 1536 : index
    %c0_82 = arith.constant 0 : index
    %183 = vector.load %arg9[%c1536_81, %c0_82] : memref<2048x32xbf16, #tpu.memory_space<vmem>>, vector<512x32xbf16>
    %cst_83 = arith.constant dense<0.000000e+00> : vector<8x32xf32>
    %184 = tpu.matmul %182, %183, %cst_83 {dimension_numbers = #tpu.dot_dimension_numbers<[1], [0], [0], [1], [0, 0, 1, 1], [], []>} : vector<8x512xbf16>, vector<512x32xbf16>, vector<8x32xf32> -> vector<8x32xf32>
    %185 = arith.addf %174, %184 : vector<8x32xf32>
    %c0_84 = arith.constant 0 : index
    %c0_85 = arith.constant 0 : index
    %186 = vector.load %arg10[%c0_84, %c0_85] : memref<1x32xf32, #tpu.memory_space<vmem>>, vector<1x32xf32>
    %187 = vector.broadcast %186 : vector<1x32xf32> to vector<8x32xf32>
    %188 = arith.addf %185, %187 : vector<8x32xf32>
    %189 = arith.addf %139, %188 : vector<8x32xf32>
    %c0_86 = arith.constant 0 : index
    %c0_87 = arith.constant 0 : index
    %190 = vector.load %arg13[%c0_86, %c0_87] : memref<1x32xf32, #tpu.memory_space<vmem>>, vector<1x32xf32>
    %c0_88 = arith.constant 0 : index
    %c0_89 = arith.constant 0 : index
    %191 = vector.load %arg14[%c0_88, %c0_89] : memref<1x32xf32, #tpu.memory_space<vmem>>, vector<1x32xf32>
    %cst_90 = arith.constant dense<0.000000e+00> : vector<8xf32>
    %192 = vector.multi_reduction <add>, %189, %cst_90 [1] : vector<8x32xf32> to vector<8xf32>
    %193 = vector.shape_cast %192 : vector<8xf32> to vector<8x1xf32>
    %cst_91 = arith.constant 3.200000e+01 : f32
    %194 = vector.broadcast %cst_91 : f32 to vector<8x1xf32>
    %195 = arith.divf %193, %194 : vector<8x1xf32>
    %196 = vector.broadcast %195 : vector<8x1xf32> to vector<8x32xf32>
    %197 = arith.subf %189, %196 : vector<8x32xf32>
    %198 = arith.mulf %197, %197 : vector<8x32xf32>
    %cst_92 = arith.constant dense<0.000000e+00> : vector<8xf32>
    %199 = vector.multi_reduction <add>, %198, %cst_92 [1] : vector<8x32xf32> to vector<8xf32>
    %200 = vector.shape_cast %199 : vector<8xf32> to vector<8x1xf32>
    %cst_93 = arith.constant 0.0322580636 : f32
    %201 = vector.broadcast %cst_93 : f32 to vector<8x1xf32>
    %202 = arith.mulf %200, %201 : vector<8x1xf32>
    %203 = vector.broadcast %195 : vector<8x1xf32> to vector<8x32xf32>
    %204 = arith.subf %189, %203 : vector<8x32xf32>
    %205 = vector.broadcast %190 : vector<1x32xf32> to vector<8x32xf32>
    %206 = arith.mulf %205, %204 : vector<8x32xf32>
    %207 = math.sqrt %202 : vector<8x1xf32>
    %cst_94 = arith.constant 9.99999997E-7 : f32
    %208 = vector.broadcast %cst_94 : f32 to vector<8x1xf32>
    %209 = arith.addf %207, %208 : vector<8x1xf32>
    %210 = vector.broadcast %209 : vector<8x1xf32> to vector<8x32xf32>
    %211 = arith.divf %206, %210 : vector<8x32xf32>
    %212 = vector.broadcast %191 : vector<1x32xf32> to vector<8x32xf32>
    %213 = arith.addf %211, %212 : vector<8x32xf32>
    %c0_95 = arith.constant 0 : index
    %c0_96 = arith.constant 0 : index
    %214 = vector.load %arg15[%c0_95, %c0_96] : memref<8x32xf32, #tpu.memory_space<vmem>>, vector<8x32xf32>
    tpu.vector_store %arg15[%c0_95, %c0_96], %213 {strides = array<i32>} : memref<8x32xf32, #tpu.memory_space<vmem>>, vector<8x32xf32>,
    return
  }
  func.func @transform_0(%arg0: i32) -> (i32, i32) {
    %c0_i32 = arith.constant 0 : i32
    %c0_i32_0 = arith.constant 0 : i32
    return %arg0, %c0_i32 : i32, i32
  }
  func.func @transform_1(%arg0: i32) -> (i32, i32, i32) {
    %c0_i32 = arith.constant 0 : i32
    %c0_i32_0 = arith.constant 0 : i32
    %c0_i32_1 = arith.constant 0 : i32
    return %arg0, %c0_i32, %c0_i32_0 : i32, i32, i32
  }
  func.func @transform_2(%arg0: i32) -> (i32, i32) {
    %c0_i32 = arith.constant 0 : i32
    %c0_i32_0 = arith.constant 0 : i32
    %c0_i32_1 = arith.constant 0 : i32
    return %c0_i32, %c0_i32_0 : i32, i32
  }
  func.func @transform_3(%arg0: i32) -> (i32, i32) {
    %c0_i32 = arith.constant 0 : i32
    %c0_i32_0 = arith.constant 0 : i32
    %c0_i32_1 = arith.constant 0 : i32
    return %c0_i32, %c0_i32_0 : i32, i32
  }
  func.func @transform_4(%arg0: i32) -> (i32, i32) {
    %c0_i32 = arith.constant 0 : i32
    %c0_i32_0 = arith.constant 0 : i32
    %c0_i32_1 = arith.constant 0 : i32
    return %c0_i32, %c0_i32_0 : i32, i32
  }
  func.func @transform_5(%arg0: i32) -> (i32, i32) {
    %c0_i32 = arith.constant 0 : i32
    %c0_i32_0 = arith.constant 0 : i32
    %c0_i32_1 = arith.constant 0 : i32
    return %c0_i32, %c0_i32_0 : i32, i32
  }
  func.func @transform_6(%arg0: i32) -> (i32, i32) {
    %c0_i32 = arith.constant 0 : i32
    %c0_i32_0 = arith.constant 0 : i32
    %c0_i32_1 = arith.constant 0 : i32
    return %c0_i32, %c0_i32_0 : i32, i32
  }
  func.func @transform_7(%arg0: i32) -> (i32, i32) {
    %c0_i32 = arith.constant 0 : i32
    %c0_i32_0 = arith.constant 0 : i32
    %c0_i32_1 = arith.constant 0 : i32
    return %c0_i32, %c0_i32_0 : i32, i32
  }
  func.func @transform_8(%arg0: i32) -> (i32, i32) {
    %c0_i32 = arith.constant 0 : i32
    %c0_i32_0 = arith.constant 0 : i32
    %c0_i32_1 = arith.constant 0 : i32
    return %c0_i32, %c0_i32_0 : i32, i32
  }
  func.func @transform_9(%arg0: i32) -> (i32, i32) {
    %c0_i32 = arith.constant 0 : i32
    %c0_i32_0 = arith.constant 0 : i32
    %c0_i32_1 = arith.constant 0 : i32
    return %c0_i32, %c0_i32_0 : i32, i32
  }
  func.func @transform_10(%arg0: i32) -> (i32, i32) {
    %c0_i32 = arith.constant 0 : i32
    %c0_i32_0 = arith.constant 0 : i32
    %c0_i32_1 = arith.constant 0 : i32
    return %c0_i32, %c0_i32_0 : i32, i32
  }
  func.func @transform_11(%arg0: i32) -> (i32, i32) {
    %c0_i32 = arith.constant 0 : i32
    %c0_i32_0 = arith.constant 0 : i32
    %c0_i32_1 = arith.constant 0 : i32
    return %c0_i32, %c0_i32_0 : i32, i32
  }
  func.func @transform_12(%arg0: i32) -> (i32, i32) {
    %c0_i32 = arith.constant 0 : i32
    %c0_i32_0 = arith.constant 0 : i32
    %c0_i32_1 = arith.constant 0 : i32
    return %c0_i32, %c0_i32_0 : i32, i32
  }
  func.func @transform_13(%arg0: i32) -> (i32, i32) {
    %c0_i32 = arith.constant 0 : i32
    %c0_i32_0 = arith.constant 0 : i32
    %c0_i32_1 = arith.constant 0 : i32
    return %c0_i32, %c0_i32_0 : i32, i32
  }
  func.func @transform_14(%arg0: i32) -> (i32, i32) {
    %c0_i32 = arith.constant 0 : i32
    %c0_i32_0 = arith.constant 0 : i32
    return %arg0, %c0_i32 : i32, i32
  }
}

</mosaic_0001>

<llo_original>
// kernel: tpu_custom_call.1
$region0: #{tpu_custom_call.1}
  #allocation0 [shape = 'u32[]', space=smem, size = 0x4, offset = 0x4, fixed_abs, tag = 'smem constant byte address 0x4 - core index']
  #allocation1 [shape = 'u32[144,128]{1,0:T(1,128)}', space=vmem, size = 0x12000, scoped, tag = 'internal scratch']
  %s0 = inlined_call_operand.vmem [shape: f32[16,32], index: 0, kind: input, shape index: {}]
  %s1 = inlined_call_operand.vmem [shape: f32[2,8,8], index: 1, kind: input, shape index: {}]
  %s2 = inlined_call_operand.vmem [shape: bf16[32,96], index: 2, kind: input, shape index: {}]
  %s3 = inlined_call_operand.vmem [shape: f32[1,96], index: 3, kind: input, shape index: {}]
  %s4 = inlined_call_operand.vmem [shape: bf16[32,32], index: 4, kind: input, shape index: {}]
  %s5 = inlined_call_operand.vmem [shape: f32[1,32], index: 5, kind: input, shape index: {}]
  %s6 = inlined_call_operand.vmem [shape: bf16[32,2048], index: 6, kind: input, shape index: {}]
  %s7 = inlined_call_operand.vmem [shape: f32[1,2048], index: 7, kind: input, shape index: {}]
  %s8 = inlined_call_operand.vmem [shape: bf16[2048,32], index: 8, kind: input, shape index: {}]
  %s9 = inlined_call_operand.vmem [shape: f32[1,32], index: 9, kind: input, shape index: {}]
  %s10 = inlined_call_operand.vmem [shape: f32[1,32], index: 10, kind: input, shape index: {}]
  %s11 = inlined_call_operand.vmem [shape: f32[1,32], index: 11, kind: input, shape index: {}]
  %s12 = inlined_call_operand.vmem [shape: f32[1,32], index: 12, kind: input, shape index: {}]
  %s13 = inlined_call_operand.vmem [shape: f32[1,32], index: 13, kind: input, shape index: {}]
  %s14 = inlined_call_operand.hbm [shape: f32[16,32], index: 14, kind: output, shape index: {}]
  %s15 = sld [smem:[#allocation0]]
  $region89: #{tpu_custom_call.1} parent=0
    _
  %s17 = ssub.s32 1, %s15
  %s18 = scalar_select 0, %s17, %s15
  $region1: #{tpu_custom_call.1} parent=0
    #allocation2 [shape = 'u8[8192]{0}', space=vmem, size = 0x2000, scoped, tag = 'output window, operand 0']
    #allocation3 [shape = 's32[2]{0}', space=sflag, size = 0x8, scoped, tag = 'scoped memory for tpu_custom_call.1']
    %19 = vsyncpa [#allocation3], 0
    %s20 = scalar_lea.sflag [#allocation3], 1
    %21 = vsyncpa %s20, 0
    loop: start=0, step=1, limit=4
    $region2: #{tpu_custom_call.1} parent=1 // loop_pre_header
      _
    $region3: #{tpu_custom_call.1} parent=1 // loop_header
      %s23 = sphi 0, %s27
      %p24 = scmp.ge.s32.totalorder %s23, 4
      %s33 = sphi 0, %s35
      %s36 = sphi 0, %s33
      %s37 = sphi 0, %s36
      %s53 = sphi 0, %s37
      %s59 = sphi 0, %s61
      %s62 = sphi 0, %s59
      %s63 = sphi 0, %s62
      %s79 = sphi 0, %s63
      %s83 = sphi 0, %s83
      %s85 = sphi 0, %s83
      %s86 = sphi 0, %s85
      %s100 = sphi 0, %s86
      %s104 = sphi 0, %s104
      %s106 = sphi 0, %s104
      %s107 = sphi 0, %s106
      %s121 = sphi 0, %s107
      %s125 = sphi 0, %s125
      %s127 = sphi 0, %s125
      %s128 = sphi 0, %s127
      %s142 = sphi 0, %s128
      %s146 = sphi 0, %s146
      %s148 = sphi 0, %s146
      %s149 = sphi 0, %s148
      %s163 = sphi 0, %s149
      %s167 = sphi 0, %s167
      %s169 = sphi 0, %s167
      %s170 = sphi 0, %s169
      %s184 = sphi 0, %s170
      %s188 = sphi 0, %s188
      %s190 = sphi 0, %s188
      %s191 = sphi 0, %s190
      %s205 = sphi 0, %s191
      %s209 = sphi 0, %s209
      %s211 = sphi 0, %s209
      %s212 = sphi 0, %s211
      %s226 = sphi 0, %s212
      %s230 = sphi 0, %s230
      %s232 = sphi 0, %s230
      %s233 = sphi 0, %s232
      %s247 = sphi 0, %s233
      %s251 = sphi 0, %s251
      %s253 = sphi 0, %s251
      %s254 = sphi 0, %s253
      %s268 = sphi 0, %s254
      %s272 = sphi 0, %s272
      %s274 = sphi 0, %s272
      %s275 = sphi 0, %s274
      %s289 = sphi 0, %s275
      %s293 = sphi 0, %s293
      %s295 = sphi 0, %s293
      %s296 = sphi 0, %s295
      %s310 = sphi 0, %s296
      %s314 = sphi 0, %s314
      %s316 = sphi 0, %s314
      %s317 = sphi 0, %s316
      %s331 = sphi 0, %s317
      %s337 = sphi 0, %s339
      %s340 = sphi 0, %s337
      %s341 = sphi 0, %s340
      %s357 = sphi 0, %s341
    $region4: #{tpu_custom_call.1} parent=1 // loop_header_branch
      %26 = sbr.rel (%p24) target = $region8
    $region5: #{tpu_custom_call.1} parent=1 // loop_body
      %s28 = ssub.s32 %s23, 1
      %s29 = ssub.s32 %s23, 2
      %s30 = sadd.s32 %s23, 1
      %s31 = ssub.s32 %s23, %s30
      %p32 = scmp.eq.s32.totalorder %s31, 0
      %s34 = sadd.s32 %s33, 1
      %s35 = scalar_select %p32, %s33, %s34
      %p38 = pneg %p32
      %p39 = scmp.eq.s32.totalorder %s23, 1
      %p40 = por %p38, %p39
      %p41 = scmp.ne.s32.totalorder %s33, %s36
      %p42 = scmp.eq.s32.totalorder %s23, 0
      %p43 = por %p41, %p42
      %p44 = scmp.ne.s32.totalorder %s33, %s36
      %p45 = scmp.eq.s32.totalorder %s28, 1
      %p46 = por %p44, %p45
      %p47 = scmp.ne.s32.totalorder %s36, %s37
      %p48 = scmp.eq.s32.totalorder %s28, 0
      %p49 = por %p47, %p48
      %p50 = scmp.ne.s32.totalorder %s36, %s37
      %p51 = scmp.eq.s32.totalorder %s29, 1
      %p52 = por %p50, %p51
      %p54 = scmp.ne.s32.totalorder %s37, %s53
      %p55 = scmp.eq.s32.totalorder %s29, 0
      %p56 = por %p54, %p55
      %s57 = ssub.s32 %s23, %s30
      %p58 = scmp.eq.s32.totalorder %s57, 0
      %s60 = sadd.s32 %s59, 1
      %s61 = scalar_select %p58, %s59, %s60
      %p64 = pneg %p58
      %p65 = scmp.eq.s32.totalorder %s23, 1
      %p66 = por %p64, %p65
      %p67 = scmp.ne.s32.totalorder %s59, %s62
      %p68 = scmp.eq.s32.totalorder %s23, 0
      %p69 = por %p67, %p68
      %p70 = scmp.ne.s32.totalorder %s59, %s62
      %p71 = scmp.eq.s32.totalorder %s28, 1
      %p72 = por %p70, %p71
      %p73 = scmp.ne.s32.totalorder %s62, %s63
      %p74 = scmp.eq.s32.totalorder %s28, 0
      %p75 = por %p73, %p74
      %p76 = scmp.ne.s32.totalorder %s62, %s63
      %p77 = scmp.eq.s32.totalorder %s29, 1
      %p78 = por %p76, %p77
      %p80 = scmp.ne.s32.totalorder %s63, %s79
      %p81 = scmp.eq.s32.totalorder %s29, 0
      %p82 = por %p80, %p81
      %s84 = sadd.s32 %s83, 1
      %p87 = scmp.eq.s32.totalorder %s23, 1
      %p88 = scmp.ne.s32.totalorder %s83, %s85
      %p89 = scmp.eq.s32.totalorder %s23, 0
      %p90 = por %p88, %p89
      %p91 = scmp.ne.s32.totalorder %s83, %s85
      %p92 = scmp.eq.s32.totalorder %s28, 1
      %p93 = por %p91, %p92
      %p94 = scmp.ne.s32.totalorder %s85, %s86
      %p95 = scmp.eq.s32.totalorder %s28, 0
      %p96 = por %p94, %p95
      %p97 = scmp.ne.s32.totalorder %s85, %s86
      %p98 = scmp.eq.s32.totalorder %s29, 1
      %p99 = por %p97, %p98
      %p101 = scmp.ne.s32.totalorder %s86, %s100
      %p102 = scmp.eq.s32.totalorder %s29, 0
      %p103 = por %p101, %p102
      %s105 = sadd.s32 %s104, 1
      %p108 = scmp.eq.s32.totalorder %s23, 1
      %p109 = scmp.ne.s32.totalorder %s104, %s106
      %p110 = scmp.eq.s32.totalorder %s23, 0
      %p111 = por %p109, %p110
      %p112 = scmp.ne.s32.totalorder %s104, %s106
      %p113 = scmp.eq.s32.totalorder %s28, 1
      %p114 = por %p112, %p113
      %p115 = scmp.ne.s32.totalorder %s106, %s107
      %p116 = scmp.eq.s32.totalorder %s28, 0
      %p117 = por %p115, %p116
      %p118 = scmp.ne.s32.totalorder %s106, %s107
      %p119 = scmp.eq.s32.totalorder %s29, 1
      %p120 = por %p118, %p119
      %p122 = scmp.ne.s32.totalorder %s107, %s121
      %p123 = scmp.eq.s32.totalorder %s29, 0
      %p124 = por %p122, %p123
      %s126 = sadd.s32 %s125, 1
      %p129 = scmp.eq.s32.totalorder %s23, 1
      %p130 = scmp.ne.s32.totalorder %s125, %s127
      %p131 = scmp.eq.s32.totalorder %s23, 0
      %p132 = por %p130, %p131
      %p133 = scmp.ne.s32.totalorder %s125, %s127
      %p134 = scmp.eq.s32.totalorder %s28, 1
      %p135 = por %p133, %p134
      %p136 = scmp.ne.s32.totalorder %s127, %s128
      %p137 = scmp.eq.s32.totalorder %s28, 0
      %p138 = por %p136, %p137
      %p139 = scmp.ne.s32.totalorder %s127, %s128
      %p140 = scmp.eq.s32.totalorder %s29, 1
      %p141 = por %p139, %p140
      %p143 = scmp.ne.s32.totalorder %s128, %s142
      %p144 = scmp.eq.s32.totalorder %s29, 0
      %p145 = por %p143, %p144
      %s147 = sadd.s32 %s146, 1
      %p150 = scmp.eq.s32.totalorder %s23, 1
      %p151 = scmp.ne.s32.totalorder %s146, %s148
      %p152 = scmp.eq.s32.totalorder %s23, 0
      %p153 = por %p151, %p152
      %p154 = scmp.ne.s32.totalorder %s146, %s148
      %p155 = scmp.eq.s32.totalorder %s28, 1
      %p156 = por %p154, %p155
      %p157 = scmp.ne.s32.totalorder %s148, %s149
      %p158 = scmp.eq.s32.totalorder %s28, 0
      %p159 = por %p157, %p158
      %p160 = scmp.ne.s32.totalorder %s148, %s149
      %p161 = scmp.eq.s32.totalorder %s29, 1
      %p162 = por %p160, %p161
      %p164 = scmp.ne.s32.totalorder %s149, %s163
      %p165 = scmp.eq.s32.totalorder %s29, 0
      %p166 = por %p164, %p165
      %s168 = sadd.s32 %s167, 1
      %p171 = scmp.eq.s32.totalorder %s23, 1
      %p172 = scmp.ne.s32.totalorder %s167, %s169
      %p173 = scmp.eq.s32.totalorder %s23, 0
      %p174 = por %p172, %p173
      %p175 = scmp.ne.s32.totalorder %s167, %s169
      %p176 = scmp.eq.s32.totalorder %s28, 1
      %p177 = por %p175, %p176
      %p178 = scmp.ne.s32.totalorder %s169, %s170
      %p179 = scmp.eq.s32.totalorder %s28, 0
      %p180 = por %p178, %p179
      %p181 = scmp.ne.s32.totalorder %s169, %s170
      %p182 = scmp.eq.s32.totalorder %s29, 1
      %p183 = por %p181, %p182
      %p185 = scmp.ne.s32.totalorder %s170, %s184
      %p186 = scmp.eq.s32.totalorder %s29, 0
      %p187 = por %p185, %p186
      %s189 = sadd.s32 %s188, 1
      %p192 = scmp.eq.s32.totalorder %s23, 1
      %p193 = scmp.ne.s32.totalorder %s188, %s190
      %p194 = scmp.eq.s32.totalorder %s23, 0
      %p195 = por %p193, %p194
      %p196 = scmp.ne.s32.totalorder %s188, %s190
      %p197 = scmp.eq.s32.totalorder %s28, 1
      %p198 = por %p196, %p197
      %p199 = scmp.ne.s32.totalorder %s190, %s191
      %p200 = scmp.eq.s32.totalorder %s28, 0
      %p201 = por %p199, %p200
      %p202 = scmp.ne.s32.totalorder %s190, %s191
      %p203 = scmp.eq.s32.totalorder %s29, 1
      %p204 = por %p202, %p203
      %p206 = scmp.ne.s32.totalorder %s191, %s205
      %p207 = scmp.eq.s32.totalorder %s29, 0
      %p208 = por %p206, %p207
      %s210 = sadd.s32 %s209, 1
      %p213 = scmp.eq.s32.totalorder %s23, 1
      %p214 = scmp.ne.s32.totalorder %s209, %s211
      %p215 = scmp.eq.s32.totalorder %s23, 0
      %p216 = por %p214, %p215
      %p217 = scmp.ne.s32.totalorder %s209, %s211
      %p218 = scmp.eq.s32.totalorder %s28, 1
      %p219 = por %p217, %p218
      %p220 = scmp.ne.s32.totalorder %s211, %s212
      %p221 = scmp.eq.s32.totalorder %s28, 0
      %p222 = por %p220, %p221
      %p223 = scmp.ne.s32.totalorder %s211, %s212
      %p224 = scmp.eq.s32.totalorder %s29, 1
      %p225 = por %p223, %p224
      %p227 = scmp.ne.s32.totalorder %s212, %s226
      %p228 = scmp.eq.s32.totalorder %s29, 0
      %p229 = por %p227, %p228
      %s231 = sadd.s32 %s230, 1
      %p234 = scmp.eq.s32.totalorder %s23, 1
      %p235 = scmp.ne.s32.totalorder %s230, %s232
      %p236 = scmp.eq.s32.totalorder %s23, 0
      %p237 = por %p235, %p236
      %p238 = scmp.ne.s32.totalorder %s230, %s232
      %p239 = scmp.eq.s32.totalorder %s28, 1
      %p240 = por %p238, %p239
      %p241 = scmp.ne.s32.totalorder %s232, %s233
      %p242 = scmp.eq.s32.totalorder %s28, 0
      %p243 = por %p241, %p242
      %p244 = scmp.ne.s32.totalorder %s232, %s233
      %p245 = scmp.eq.s32.totalorder %s29, 1
      %p246 = por %p244, %p245
      %p248 = scmp.ne.s32.totalorder %s233, %s247
      %p249 = scmp.eq.s32.totalorder %s29, 0
      %p250 = por %p248, %p249
      %s252 = sadd.s32 %s251, 1
      %p255 = scmp.eq.s32.totalorder %s23, 1
      %p256 = scmp.ne.s32.totalorder %s251, %s253
      %p257 = scmp.eq.s32.totalorder %s23, 0
      %p258 = por %p256, %p257
      %p259 = scmp.ne.s32.totalorder %s251, %s253
      %p260 = scmp.eq.s32.totalorder %s28, 1
      %p261 = por %p259, %p260
      %p262 = scmp.ne.s32.totalorder %s253, %s254
      %p263 = scmp.eq.s32.totalorder %s28, 0
      %p264 = por %p262, %p263
      %p265 = scmp.ne.s32.totalorder %s253, %s254
      %p266 = scmp.eq.s32.totalorder %s29, 1
      %p267 = por %p265, %p266
      %p269 = scmp.ne.s32.totalorder %s254, %s268
      %p270 = scmp.eq.s32.totalorder %s29, 0
      %p271 = por %p269, %p270
      %s273 = sadd.s32 %s272, 1
      %p276 = scmp.eq.s32.totalorder %s23, 1
      %p277 = scmp.ne.s32.totalorder %s272, %s274
      %p278 = scmp.eq.s32.totalorder %s23, 0
      %p279 = por %p277, %p278
      %p280 = scmp.ne.s32.totalorder %s272, %s274
      %p281 = scmp.eq.s32.totalorder %s28, 1
      %p282 = por %p280, %p281
      %p283 = scmp.ne.s32.totalorder %s274, %s275
      %p284 = scmp.eq.s32.totalorder %s28, 0
      %p285 = por %p283, %p284
      %p286 = scmp.ne.s32.totalorder %s274, %s275
      %p287 = scmp.eq.s32.totalorder %s29, 1
      %p288 = por %p286, %p287
      %p290 = scmp.ne.s32.totalorder %s275, %s289
      %p291 = scmp.eq.s32.totalorder %s29, 0
      %p292 = por %p290, %p291
      %s294 = sadd.s32 %s293, 1
      %p297 = scmp.eq.s32.totalorder %s23, 1
      %p298 = scmp.ne.s32.totalorder %s293, %s295
      %p299 = scmp.eq.s32.totalorder %s23, 0
      %p300 = por %p298, %p299
      %p301 = scmp.ne.s32.totalorder %s293, %s295
      %p302 = scmp.eq.s32.totalorder %s28, 1
      %p303 = por %p301, %p302
      %p304 = scmp.ne.s32.totalorder %s295, %s296
      %p305 = scmp.eq.s32.totalorder %s28, 0
      %p306 = por %p304, %p305
      %p307 = scmp.ne.s32.totalorder %s295, %s296
      %p308 = scmp.eq.s32.totalorder %s29, 1
      %p309 = por %p307, %p308
      %p311 = scmp.ne.s32.totalorder %s296, %s310
      %p312 = scmp.eq.s32.totalorder %s29, 0
      %p313 = por %p311, %p312
      %s315 = sadd.s32 %s314, 1
      %p318 = scmp.eq.s32.totalorder %s23, 1
      %p319 = scmp.ne.s32.totalorder %s314, %s316
      %p320 = scmp.eq.s32.totalorder %s23, 0
      %p321 = por %p319, %p320
      %p322 = scmp.ne.s32.totalorder %s314, %s316
      %p323 = scmp.eq.s32.totalorder %s28, 1
      %p324 = por %p322, %p323
      %p325 = scmp.ne.s32.totalorder %s316, %s317
      %p326 = scmp.eq.s32.totalorder %s28, 0
      %p327 = por %p325, %p326
      %p328 = scmp.ne.s32.totalorder %s316, %s317
      %p329 = scmp.eq.s32.totalorder %s29, 1
      %p330 = por %p328, %p329
      %p332 = scmp.ne.s32.totalorder %s317, %s331
      %p333 = scmp.eq.s32.totalorder %s29, 0
      %p334 = por %p332, %p333
      %s335 = ssub.s32 %s23, %s30
      %p336 = scmp.eq.s32.totalorder %s335, 0
      %s338 = sadd.s32 %s337, 1
      %s339 = scalar_select %p336, %s337, %s338
      %p342 = pneg %p336
      %p343 = scmp.eq.s32.totalorder %s23, 1
      %p344 = por %p342, %p343
      %p345 = scmp.ne.s32.totalorder %s337, %s340
      %p346 = scmp.eq.s32.totalorder %s23, 0
      %p347 = por %p345, %p346
      %p348 = scmp.ne.s32.totalorder %s337, %s340
      %p349 = scmp.eq.s32.totalorder %s28, 1
      %p350 = por %p348, %p349
      %p351 = scmp.ne.s32.totalorder %s340, %s341
      %p352 = scmp.eq.s32.totalorder %s28, 0
      %p353 = por %p351, %p352
      %p354 = scmp.ne.s32.totalorder %s340, %s341
      %p355 = scmp.eq.s32.totalorder %s29, 1
      %p356 = por %p354, %p355
      %p358 = scmp.ne.s32.totalorder %s341, %s357
      %p359 = scmp.eq.s32.totalorder %s29, 0
      %p360 = por %p358, %p359
      %p361 = scmp.le.s32.totalorder 1, %s23
      %p362 = scmp.lt.s32.totalorder %s23, 3
      %p363 = pnand %p361, %p362
      %p364 = pneg %p363
      // Predicated region
      $region9: #{tpu_custom_call.1} parent=5 // pred_check
        _
      $region10: #{tpu_custom_call.1} parent=5 // pred_check_branch
        %366 = sbr.rel (%p363) target = $region12
      $region11: #{tpu_custom_call.1} parent=5 // pred_region
        %s367 = ssub.s32 %s23, 1
        // Predicated region
        $region13: #{tpu_custom_call.1} parent=11 // pred_check
          %p368 = pneg %p96
        $region14: #{tpu_custom_call.1} parent=11 // pred_check_branch
          %370 = sbr.rel (%p368) target = $region16
        $region15: #{tpu_custom_call.1} parent=11 // pred_region
          _
        $region16: #{tpu_custom_call.1} parent=11 // pred_fallthru
          _
        // Predicated region
        $region17: #{tpu_custom_call.1} parent=11 // pred_check
          %p371 = pneg %p117
        $region18: #{tpu_custom_call.1} parent=11 // pred_check_branch
          %373 = sbr.rel (%p371) target = $region20
        $region19: #{tpu_custom_call.1} parent=11 // pred_region
          _
        $region20: #{tpu_custom_call.1} parent=11 // pred_fallthru
          _
        // Predicated region
        $region21: #{tpu_custom_call.1} parent=11 // pred_check
          %p374 = pneg %p138
        $region22: #{tpu_custom_call.1} parent=11 // pred_check_branch
          %376 = sbr.rel (%p374) target = $region24
        $region23: #{tpu_custom_call.1} parent=11 // pred_region
          _
        $region24: #{tpu_custom_call.1} parent=11 // pred_fallthru
          _
        // Predicated region
        $region25: #{tpu_custom_call.1} parent=11 // pred_check
          %p377 = pneg %p159
        $region26: #{tpu_custom_call.1} parent=11 // pred_check_branch
          %379 = sbr.rel (%p377) target = $region28
        $region27: #{tpu_custom_call.1} parent=11 // pred_region
          _
        $region28: #{tpu_custom_call.1} parent=11 // pred_fallthru
          _
        // Predicated region
        $region29: #{tpu_custom_call.1} parent=11 // pred_check
          %p380 = pneg %p180
        $region30: #{tpu_custom_call.1} parent=11 // pred_check_branch
          %382 = sbr.rel (%p380) target = $region32
        $region31: #{tpu_custom_call.1} parent=11 // pred_region
          _
        $region32: #{tpu_custom_call.1} parent=11 // pred_fallthru
          _
        // Predicated region
        $region33: #{tpu_custom_call.1} parent=11 // pred_check
          %p383 = pneg %p201
        $region34: #{tpu_custom_call.1} parent=11 // pred_check_branch
          %385 = sbr.rel (%p383) target = $region36
        $region35: #{tpu_custom_call.1} parent=11 // pred_region
          _
        $region36: #{tpu_custom_call.1} parent=11 // pred_fallthru
          _
        // Predicated region
        $region37: #{tpu_custom_call.1} parent=11 // pred_check
          %p386 = pneg %p222
        $region38: #{tpu_custom_call.1} parent=11 // pred_check_branch
          %388 = sbr.rel (%p386) target = $region40
        $region39: #{tpu_custom_call.1} parent=11 // pred_region
          _
        $region40: #{tpu_custom_call.1} parent=11 // pred_fallthru
          _
        // Predicated region
        $region41: #{tpu_custom_call.1} parent=11 // pred_check
          %p389 = pneg %p243
        $region42: #{tpu_custom_call.1} parent=11 // pred_check_branch
          %391 = sbr.rel (%p389) target = $region44
        $region43: #{tpu_custom_call.1} parent=11 // pred_region
          _
        $region44: #{tpu_custom_call.1} parent=11 // pred_fallthru
          _
        // Predicated region
        $region45: #{tpu_custom_call.1} parent=11 // pred_check
          %p392 = pneg %p264
        $region46: #{tpu_custom_call.1} parent=11 // pred_check_branch
          %394 = sbr.rel (%p392) target = $region48
        $region47: #{tpu_custom_call.1} parent=11 // pred_region
          _
        $region48: #{tpu_custom_call.1} parent=11 // pred_fallthru
          _
        // Predicated region
        $region49: #{tpu_custom_call.1} parent=11 // pred_check
          %p395 = pneg %p285
        $region50: #{tpu_custom_call.1} parent=11 // pred_check_branch
          %397 = sbr.rel (%p395) target = $region52
        $region51: #{tpu_custom_call.1} parent=11 // pred_region
          _
        $region52: #{tpu_custom_call.1} parent=11 // pred_fallthru
          _
        // Predicated region
        $region53: #{tpu_custom_call.1} parent=11 // pred_check
          %p398 = pneg %p306
        $region54: #{tpu_custom_call.1} parent=11 // pred_check_branch
          %400 = sbr.rel (%p398) target = $region56
        $region55: #{tpu_custom_call.1} parent=11 // pred_region
          _
        $region56: #{tpu_custom_call.1} parent=11 // pred_fallthru
          _
        // Predicated region
        $region57: #{tpu_custom_call.1} parent=11 // pred_check
          %p401 = pneg %p327
        $region58: #{tpu_custom_call.1} parent=11 // pred_check_branch
          %403 = sbr.rel (%p401) target = $region60
        $region59: #{tpu_custom_call.1} parent=11 // pred_region
          _
        $region60: #{tpu_custom_call.1} parent=11 // pred_fallthru
          _
      $region12: #{tpu_custom_call.1} parent=5 // pred_fallthru
        _
      %p404 = scmp.lt.s32.totalorder %s23, 2
      // Predicated region
      $region61: #{tpu_custom_call.1} parent=5 // pred_check
        %p405 = pneg %p404
      $region62: #{tpu_custom_call.1} parent=5 // pred_check_branch
        %407 = sbr.rel (%p405) target = $region64
      $region63: #{tpu_custom_call.1} parent=5 // pred_region
        // Predicated region
        $region65: #{tpu_custom_call.1} parent=63 // pred_check
          %p408 = pneg %p43
        $region66: #{tpu_custom_call.1} parent=63 // pred_check_branch
          %410 = sbr.rel (%p408) target = $region68
        $region67: #{tpu_custom_call.1} parent=63 // pred_region
          %p411 = scmp.lt.s32.totalorder %s23, 1
          %s412 = scalar_select %p411, %s23, 1
          %s413 = smul.addr %s412, 8
          %s414 = scalar_lea.vmem %s0, %s413
        $region68: #{tpu_custom_call.1} parent=63 // pred_fallthru
          _
        // Predicated region
        $region69: #{tpu_custom_call.1} parent=63 // pred_check
          %p415 = pneg %p69
        $region70: #{tpu_custom_call.1} parent=63 // pred_check_branch
          %417 = sbr.rel (%p415) target = $region72
        $region71: #{tpu_custom_call.1} parent=63 // pred_region
          %p418 = scmp.lt.s32.totalorder %s23, 1
          %s419 = scalar_select %p418, %s23, 1
          %s420 = smul.addr %s419, 8
          %s421 = scalar_lea.vmem %s1, %s420
        $region72: #{tpu_custom_call.1} parent=63 // pred_fallthru
          _
      $region64: #{tpu_custom_call.1} parent=5 // pred_fallthru
        _
      %p422 = scmp.le.s32.totalorder 1, %s23
      %p423 = scmp.lt.s32.totalorder %s23, 3
      %p424 = pnand %p422, %p423
      %p425 = pneg %p424
      // Predicated region
      $region73: #{tpu_custom_call.1} parent=5 // pred_check
        _
      $region74: #{tpu_custom_call.1} parent=5 // pred_check_branch
        %427 = sbr.rel (%p424) target = $region76
      $region75: #{tpu_custom_call.1} parent=5 // pred_region
        %s428 = ssub.s32 %s23, 1
        %p429 = scmp.lt.s32.totalorder %s28, 1
        %s430 = scalar_select %p429, %s28, 1
        %s431 = smul.addr %s430, 8
        %s432 = scalar_lea.vmem %s0, %s431
        %p433 = pneg %p49
        %p434 = pneg %p46
        %p435 = scmp.lt.s32.totalorder %s28, 1
        %s436 = scalar_select %p435, %s28, 1
        %s437 = smul.addr %s436, 8
        %s438 = scalar_lea.vmem %s1, %s437
        %p439 = pneg %p75
        %p440 = pneg %p72
        %p441 = pneg %p96
        %p442 = pneg %p93
        %p443 = pneg %p117
        %p444 = pneg %p114
        %p445 = pneg %p138
        %p446 = pneg %p135
        %p447 = pneg %p159
        %p448 = pneg %p156
        %p449 = pneg %p180
        %p450 = pneg %p177
        %p451 = pneg %p201
        %p452 = pneg %p198
        %p453 = pneg %p222
        %p454 = pneg %p219
        %p455 = pneg %p243
        %p456 = pneg %p240
        %p457 = pneg %p264
        %p458 = pneg %p261
        %p459 = pneg %p285
        %p460 = pneg %p282
        %p461 = pneg %p306
        %p462 = pneg %p303
        %p463 = pneg %p327
        %p464 = pneg %p324
        %p465 = pneg %p353
        %p466 = pneg %p350
        %s467 = sand.u32 %s340, 1
        %s468 = scalar_lea.sflag [#allocation3], %s467
        %s469 = sand.u32 %s340, 1
        %s470 = smul.addr %s469, 8
        %s471 = scalar_lea.vmem [#allocation2], %s470
        %p472 = scmp.lt.s32.totalorder %s28, 1
        %s473 = scalar_select %p472, %s28, 1
        %s474 = smul.addr %s473, 8
        %s475 = scalar_lea.vmem %s0, %s474
        %p476 = scmp.lt.s32.totalorder %s28, 1
        %s477 = scalar_select %p476, %s28, 1
        %s478 = smul.addr %s477, 8
        %s479 = scalar_lea.vmem %s1, %s478
        %v481 = vld [vmem:[%s475] sm:$0xff]
        %v482 = vpack.c.bf16 %v481, %v481
        %v483 = vld [vmem:[%s2] sm:$0xf]
        %v484 = vld [vmem:[%s2 + $0x4] sm:$0xf]
        %v485 = vld [vmem:[%s2 + $0x8] sm:$0xf]
        %v486 = vld [vmem:[%s2 + $0xc] sm:$0xf]
        %v487 = vld [vmem:[%s3] sm:$0x1]
        %v489 = vlaneseq
        %v490 = vshrl.u32 %v489, 7
        %v491 = vsub.s32 0, %v490
        %v492 = vrot.slane %v487, %v491
        %v498 = vunpack.c.l.b16 %v483
        %v499 = vunpack.c.l.b16 %v484
        %v500 = vunpack.c.l.b16 %v485
        %v501 = vunpack.c.l.b16 %v486
        %v502 = vpack.c.b16 %v499, %v498
        %v503 = vpack.c.b16 %v501, %v500
        %vm506 = vcmask 261120
        %v508 = vsel %vm506, %v482, 0
        %510 = vmatprep.subr.bf16.mxu0 0
        %511 = vmatpush1.bf16.msra.mxu0 0
        %512 = vmatprep.subr.bf16.mxu0 0
        %513 = vmatpush1.bf16.msra.mxu0 0
        %514 = vmatprep.subr.bf16.mxu0 0
        %515 = vmatpush1.bf16.msra.mxu0 0
        %516 = vmatprep.subr.bf16.mxu0 0
        %517 = vmatpush1.bf16.msra.mxu0 0
        %518 = vmatprep.subr.bf16.mxu0 0
        %519 = vmatpush1.bf16.msra.mxu0 0
        %520 = vmatprep.subr.bf16.mxu0 0
        %521 = vmatpush1.bf16.msra.mxu0 0
        %522 = vmatprep.subr.bf16.mxu0 0
        %523 = vmatpush1.bf16.msra.mxu0 %v503
        %524 = vmatprep.subr.bf16.mxu0 0
        %525 = vmatpush1.bf16.msra.mxu0 %v502
        %526 = vmatprep.subr.bf16.mxu0 0
        %527 = vmatpush2.bf16.msra.mxu0 0
        %528 = vmatprep.subr.bf16.mxu0 0
        %529 = vmatpush2.bf16.msra.mxu0 0
        %530 = vmatprep.subr.bf16.mxu0 0
        %531 = vmatpush2.bf16.msra.mxu0 0
        %532 = vmatprep.subr.bf16.mxu0 0
        %533 = vmatpush2.bf16.msra.mxu0 0
        %534 = vmatprep.subr.bf16.mxu0 0
        %535 = vmatpush2.bf16.msra.mxu0 0
        %536 = vmatprep.subr.bf16.mxu0 0
        %537 = vmatpush2.bf16.msra.mxu0 0
        %538 = vmatprep.subr.bf16.mxu0 0
        %539 = vmatpush2.bf16.msra.mxu0 0
        %540 = vmatprep.subr.bf16.mxu0 0
        %541 = vmatpush2.bf16.msra.mxu0 0
        %542 = vmatprep.mubr.bf16.mxu0 0
        %543 = vmatmul.mubr.bf16.gmra.mxu0 %v508
        %v544 = vpop.f32.mrf.mxu0
        %v545 = vadd.f32 %v492, %v544
        %v546 = vpop.f32.mrf.mxu0
        %v547 = vpop.f32.mrf.mxu0
        %v548 = vpop.f32.mrf.mxu0
        %549 = vdwg.mxu0
        %v550 = vpack.c.bf16 %v545, %v545
        %v551 = vld [vmem:[%s479] sm:$0xff]
        %vm552 = vcmp.eq.f32.partialorder %v551, 0.0
        %554 = vrot.lane.b32.xlu0 %v550, 96
        %v555 = vpop.permute.xlu0 %554
        %vm556 = vcmask 64512
        %v558 = vsel %vm556, %v550, 0
        %v561 = vsel %vm556, %v555, 0
        %563 = vmatprep.subr.bf16.mxu0 0
        %564 = vmatpush1.bf16.xpose.msra.mxu0 0
        %565 = vmatprep.subr.bf16.mxu0 0
        %566 = vmatpush1.bf16.xpose.msra.mxu0 0
        %567 = vmatprep.subr.bf16.mxu0 0
        %568 = vmatpush1.bf16.xpose.msra.mxu0 0
        %569 = vmatprep.subr.bf16.mxu0 0
        %570 = vmatpush1.bf16.xpose.msra.mxu0 0
        %571 = vmatprep.subr.bf16.mxu0 0
        %572 = vmatpush1.bf16.xpose.msra.mxu0 0
        %573 = vmatprep.subr.bf16.mxu0 0
        %574 = vmatpush1.bf16.xpose.msra.mxu0 0
        %575 = vmatprep.subr.bf16.mxu0 0
        %576 = vmatpush1.bf16.xpose.msra.mxu0 0
        %577 = vmatprep.subr.bf16.mxu0 0
        %578 = vmatpush1.bf16.xpose.msra.mxu0 %v561
        %579 = vmatprep.subr.bf16.mxu0 0
        %580 = vmatpush2.bf16.xpose.msra.mxu0 0
        %581 = vmatprep.subr.bf16.mxu0 0
        %582 = vmatpush2.bf16.xpose.msra.mxu0 0
        %583 = vmatprep.subr.bf16.mxu0 0
        %584 = vmatpush2.bf16.xpose.msra.mxu0 0
        %585 = vmatprep.subr.bf16.mxu0 0
        %586 = vmatpush2.bf16.xpose.msra.mxu0 0
        %587 = vmatprep.subr.bf16.mxu0 0
        %588 = vmatpush2.bf16.xpose.msra.mxu0 0
        %589 = vmatprep.subr.bf16.mxu0 0
        %590 = vmatpush2.bf16.xpose.msra.mxu0 0
        %591 = vmatprep.subr.bf16.mxu0 0
        %592 = vmatpush2.bf16.xpose.msra.mxu0 0
        %593 = vmatprep.subr.bf16.mxu0 0
        %594 = vmatpush2.bf16.xpose.msra.mxu0 0
        %595 = vmatprep.mubr.bf16.mxu0 0
        %596 = vmatmul.mubr.bf16.gmra.mxu0 %v558
        %v597 = vpop.f32.mrf.mxu0
        %v598 = vadd.f32 0.0, %v597
        %v599 = vpop.f32.mrf.mxu0
        %v600 = vpop.f32.mrf.mxu0
        %v601 = vpop.f32.mrf.mxu0
        %602 = vdwg.mxu0
        %v603 = vsel %vm552, -1e+09, %v598
        %v604 = vsel %vm556, %v603, -inf
        %605 = vmax.xlane.f32.xlu0 %v604
        %v606 = vpop.xlane.xlu0 %605
        %v607 = vsub.f32 %v603, %v606
        %v608 = vmul.f32 %v607, 1.442695
        %v609 = vpow.pop %v608
        %v610 = vsel %vm556, %v609, 0.0
        %611 = vadd.xlane.f32.xlu0 %v610
        %v612 = vpop.xlane.xlu0 %611
        %v613 = vrcp.pop %v612
        %v614 = vmul.f32 %v609, %v613
        %v615 = vpack.c.bf16 %v614, %v614
        %616 = vrot.lane.b32.xlu0 %v550, 64
        %v617 = vpop.permute.xlu0 %616
        %v619 = vsel %vm556, %v615, 0
        %vm621 = vcmask 1043456
        %v623 = vsel %vm621, %v617, 0
        %625 = vmatprep.subr.bf16.mxu0 0
        %626 = vmatpush1.bf16.msra.mxu0 0
        %627 = vmatprep.subr.bf16.mxu0 0
        %628 = vmatpush1.bf16.msra.mxu0 0
        %629 = vmatprep.subr.bf16.mxu0 0
        %630 = vmatpush1.bf16.msra.mxu0 0
        %631 = vmatprep.subr.bf16.mxu0 0
        %632 = vmatpush1.bf16.msra.mxu0 0
        %633 = vmatprep.subr.bf16.mxu0 0
        %634 = vmatpush1.bf16.msra.mxu0 0
        %635 = vmatprep.subr.bf16.mxu0 0
        %636 = vmatpush1.bf16.msra.mxu0 0
        %637 = vmatprep.subr.bf16.mxu0 0
        %638 = vmatpush1.bf16.msra.mxu0 0
        %639 = vmatprep.subr.bf16.mxu0 0
        %640 = vmatpush1.bf16.msra.mxu0 %v623
        %641 = vmatprep.subr.bf16.mxu0 0
        %642 = vmatpush2.bf16.msra.mxu0 0
        %643 = vmatprep.subr.bf16.mxu0 0
        %644 = vmatpush2.bf16.msra.mxu0 0
        %645 = vmatprep.subr.bf16.mxu0 0
        %646 = vmatpush2.bf16.msra.mxu0 0
        %647 = vmatprep.subr.bf16.mxu0 0
        %648 = vmatpush2.bf16.msra.mxu0 0
        %649 = vmatprep.subr.bf16.mxu0 0
        %650 = vmatpush2.bf16.msra.mxu0 0
        %651 = vmatprep.subr.bf16.mxu0 0
        %652 = vmatpush2.bf16.msra.mxu0 0
        %653 = vmatprep.subr.bf16.mxu0 0
        %654 = vmatpush2.bf16.msra.mxu0 0
        %655 = vmatprep.subr.bf16.mxu0 0
        %656 = vmatpush2.bf16.msra.mxu0 0
        %657 = vmatprep.mubr.bf16.mxu0 0
        %658 = vmatmul.mubr.bf16.gmra.mxu0 %v619
        %v659 = vpop.f32.mrf.mxu0
        %v660 = vadd.f32 0.0, %v659
        %v661 = vpop.f32.mrf.mxu0
        %v662 = vpop.f32.mrf.mxu0
        %v663 = vpop.f32.mrf.mxu0
        %664 = vdwg.mxu0
        %v665 = vpack.c.bf16 %v660, %v660
        %v666 = vld [vmem:[%s4] sm:$0xf]
        %667 = vrot.lane.b32.xlu0 %v550, 120
        %v668 = vpop.permute.xlu0 %667
        %669 = vrot.lane.b32.xlu0 %v550, 88
        %v670 = vpop.permute.xlu0 %669
        %v672 = vsel %vm556, %v668, 0
        %v675 = vsel %vm556, %v670, 0
        %677 = vmatprep.subr.bf16.mxu0 0
        %678 = vmatpush1.bf16.xpose.msra.mxu0 0
        %679 = vmatprep.subr.bf16.mxu0 0
        %680 = vmatpush1.bf16.xpose.msra.mxu0 0
        %681 = vmatprep.subr.bf16.mxu0 0
        %682 = vmatpush1.bf16.xpose.msra.mxu0 0
        %683 = vmatprep.subr.bf16.mxu0 0
        %684 = vmatpush1.bf16.xpose.msra.mxu0 0
        %685 = vmatprep.subr.bf16.mxu0 0
        %686 = vmatpush1.bf16.xpose.msra.mxu0 0
        %687 = vmatprep.subr.bf16.mxu0 0
        %688 = vmatpush1.bf16.xpose.msra.mxu0 0
        %689 = vmatprep.subr.bf16.mxu0 0
        %690 = vmatpush1.bf16.xpose.msra.mxu0 0
        %691 = vmatprep.subr.bf16.mxu0 0
        %692 = vmatpush1.bf16.xpose.msra.mxu0 %v675
        %693 = vmatprep.subr.bf16.mxu0 0
        %694 = vmatpush2.bf16.xpose.msra.mxu0 0
        %695 = vmatprep.subr.bf16.mxu0 0
        %696 = vmatpush2.bf16.xpose.msra.mxu0 0
        %697 = vmatprep.subr.bf16.mxu0 0
        %698 = vmatpush2.bf16.xpose.msra.mxu0 0
        %699 = vmatprep.subr.bf16.mxu0 0
        %700 = vmatpush2.bf16.xpose.msra.mxu0 0
        %701 = vmatprep.subr.bf16.mxu0 0
        %702 = vmatpush2.bf16.xpose.msra.mxu0 0
        %703 = vmatprep.subr.bf16.mxu0 0
        %704 = vmatpush2.bf16.xpose.msra.mxu0 0
        %705 = vmatprep.subr.bf16.mxu0 0
        %706 = vmatpush2.bf16.xpose.msra.mxu0 0
        %707 = vmatprep.subr.bf16.mxu0 0
        %708 = vmatpush2.bf16.xpose.msra.mxu0 0
        %709 = vmatprep.mubr.bf16.mxu0 0
        %710 = vmatmul.mubr.bf16.gmra.mxu0 %v672
        %v711 = vpop.f32.mrf.mxu0
        %v712 = vadd.f32 0.0, %v711
        %v713 = vpop.f32.mrf.mxu0
        %v714 = vpop.f32.mrf.mxu0
        %v715 = vpop.f32.mrf.mxu0
        %716 = vdwg.mxu0
        %v717 = vsel %vm552, -1e+09, %v712
        %v718 = vsel %vm556, %v717, -inf
        %719 = vmax.xlane.f32.xlu0 %v718
        %v720 = vpop.xlane.xlu0 %719
        %v721 = vsub.f32 %v717, %v720
        %v722 = vmul.f32 %v721, 1.442695
        %v723 = vpow.pop %v722
        %v724 = vsel %vm556, %v723, 0.0
        %725 = vadd.xlane.f32.xlu0 %v724
        %v726 = vpop.xlane.xlu0 %725
        %v727 = vrcp.pop %v726
        %v728 = vmul.f32 %v723, %v727
        %v729 = vpack.c.bf16 %v728, %v728
        %730 = vrot.lane.b32.xlu0 %v550, 56
        %v731 = vpop.permute.xlu0 %730
        %v733 = vsel %vm556, %v729, 0
        %v736 = vsel %vm621, %v731, 0
        %738 = vmatprep.subr.bf16.mxu0 0
        %739 = vmatpush1.bf16.msra.mxu0 0
        %740 = vmatprep.subr.bf16.mxu0 0
        %741 = vmatpush1.bf16.msra.mxu0 0
        %742 = vmatprep.subr.bf16.mxu0 0
        %743 = vmatpush1.bf16.msra.mxu0 0
        %744 = vmatprep.subr.bf16.mxu0 0
        %745 = vmatpush1.bf16.msra.mxu0 0
        %746 = vmatprep.subr.bf16.mxu0 0
        %747 = vmatpush1.bf16.msra.mxu0 0
        %748 = vmatprep.subr.bf16.mxu0 0
        %749 = vmatpush1.bf16.msra.mxu0 0
        %750 = vmatprep.subr.bf16.mxu0 0
        %751 = vmatpush1.bf16.msra.mxu0 0
        %752 = vmatprep.subr.bf16.mxu0 0
        %753 = vmatpush1.bf16.msra.mxu0 %v736
        %754 = vmatprep.subr.bf16.mxu0 0
        %755 = vmatpush2.bf16.msra.mxu0 0
        %756 = vmatprep.subr.bf16.mxu0 0
        %757 = vmatpush2.bf16.msra.mxu0 0
        %758 = vmatprep.subr.bf16.mxu0 0
        %759 = vmatpush2.bf16.msra.mxu0 0
        %760 = vmatprep.subr.bf16.mxu0 0
        %761 = vmatpush2.bf16.msra.mxu0 0
        %762 = vmatprep.subr.bf16.mxu0 0
        %763 = vmatpush2.bf16.msra.mxu0 0
        %764 = vmatprep.subr.bf16.mxu0 0
        %765 = vmatpush2.bf16.msra.mxu0 0
        %766 = vmatprep.subr.bf16.mxu0 0
        %767 = vmatpush2.bf16.msra.mxu0 0
        %768 = vmatprep.subr.bf16.mxu0 0
        %769 = vmatpush2.bf16.msra.mxu0 0
        %770 = vmatprep.mubr.bf16.mxu0 0
        %771 = vmatmul.mubr.bf16.gmra.mxu0 %v733
        %v772 = vpop.f32.mrf.mxu0
        %v773 = vadd.f32 0.0, %v772
        %v774 = vpop.f32.mrf.mxu0
        %v775 = vpop.f32.mrf.mxu0
        %v776 = vpop.f32.mrf.mxu0
        %777 = vdwg.mxu0
        %v778 = vpack.c.bf16 %v773, %v773
        %v779 = vld [vmem:[%s4 + $0x4] sm:$0xf]
        %v781 = vsel %vm556, %v778, 0
        %v784 = vsel %vm621, %v779, 0
        %786 = vmatprep.subr.bf16.mxu0 0
        %787 = vmatpush1.bf16.msra.mxu0 0
        %788 = vmatprep.subr.bf16.mxu0 0
        %789 = vmatpush1.bf16.msra.mxu0 0
        %790 = vmatprep.subr.bf16.mxu0 0
        %791 = vmatpush1.bf16.msra.mxu0 0
        %792 = vmatprep.subr.bf16.mxu0 0
        %793 = vmatpush1.bf16.msra.mxu0 0
        %794 = vmatprep.subr.bf16.mxu0 0
        %795 = vmatpush1.bf16.msra.mxu0 0
        %796 = vmatprep.subr.bf16.mxu0 0
        %797 = vmatpush1.bf16.msra.mxu0 0
        %798 = vmatprep.subr.bf16.mxu0 0
        %799 = vmatpush1.bf16.msra.mxu0 0
        %800 = vmatprep.subr.bf16.mxu0 0
        %801 = vmatpush1.bf16.msra.mxu0 %v784
        %802 = vmatprep.subr.bf16.mxu0 0
        %803 = vmatpush2.bf16.msra.mxu0 0
        %804 = vmatprep.subr.bf16.mxu0 0
        %805 = vmatpush2.bf16.msra.mxu0 0
        %806 = vmatprep.subr.bf16.mxu0 0
        %807 = vmatpush2.bf16.msra.mxu0 0
        %808 = vmatprep.subr.bf16.mxu0 0
        %809 = vmatpush2.bf16.msra.mxu0 0
        %810 = vmatprep.subr.bf16.mxu0 0
        %811 = vmatpush2.bf16.msra.mxu0 0
        %812 = vmatprep.subr.bf16.mxu0 0
        %813 = vmatpush2.bf16.msra.mxu0 0
        %814 = vmatprep.subr.bf16.mxu0 0
        %815 = vmatpush2.bf16.msra.mxu0 0
        %816 = vmatprep.subr.bf16.mxu0 0
        %817 = vmatpush2.bf16.msra.mxu0 0
        %818 = vmatprep.mubr.bf16.mxu0 0
        %819 = vmatmul.mubr.bf16.gmra.mxu0 %v781
        %v820 = vpop.f32.mrf.mxu0
        %v821 = vadd.f32 0.0, %v820
        %v822 = vpop.f32.mrf.mxu0
        %v823 = vpop.f32.mrf.mxu0
        %v824 = vpop.f32.mrf.mxu0
        %825 = vdwg.mxu0
        %v827 = vsel %vm556, %v665, 0
        %v830 = vsel %vm621, %v666, 0
        %832 = vmatprep.subr.bf16.mxu0 0
        %833 = vmatpush1.bf16.msra.mxu0 0
        %834 = vmatprep.subr.bf16.mxu0 0
        %835 = vmatpush1.bf16.msra.mxu0 0
        %836 = vmatprep.subr.bf16.mxu0 0
        %837 = vmatpush1.bf16.msra.mxu0 0
        %838 = vmatprep.subr.bf16.mxu0 0
        %839 = vmatpush1.bf16.msra.mxu0 0
        %840 = vmatprep.subr.bf16.mxu0 0
        %841 = vmatpush1.bf16.msra.mxu0 0
        %842 = vmatprep.subr.bf16.mxu0 0
        %843 = vmatpush1.bf16.msra.mxu0 0
        %844 = vmatprep.subr.bf16.mxu0 0
        %845 = vmatpush1.bf16.msra.mxu0 0
        %846 = vmatprep.subr.bf16.mxu0 0
        %847 = vmatpush1.bf16.msra.mxu0 %v830
        %848 = vmatprep.subr.bf16.mxu0 0
        %849 = vmatpush2.bf16.msra.mxu0 0
        %850 = vmatprep.subr.bf16.mxu0 0
        %851 = vmatpush2.bf16.msra.mxu0 0
        %852 = vmatprep.subr.bf16.mxu0 0
        %853 = vmatpush2.bf16.msra.mxu0 0
        %854 = vmatprep.subr.bf16.mxu0 0
        %855 = vmatpush2.bf16.msra.mxu0 0
        %856 = vmatprep.subr.bf16.mxu0 0
        %857 = vmatpush2.bf16.msra.mxu0 0
        %858 = vmatprep.subr.bf16.mxu0 0
        %859 = vmatpush2.bf16.msra.mxu0 0
        %860 = vmatprep.subr.bf16.mxu0 0
        %861 = vmatpush2.bf16.msra.mxu0 0
        %862 = vmatprep.subr.bf16.mxu0 0
        %863 = vmatpush2.bf16.msra.mxu0 0
        %864 = vmatprep.mubr.bf16.mxu0 0
        %865 = vmatmul.mubr.bf16.gmra.mxu0 %v827
        %v866 = vpop.f32.mrf.mxu0
        %v867 = vadd.f32 %v821, %v866
        %v868 = vpop.f32.mrf.mxu0
        %v869 = vpop.f32.mrf.mxu0
        %v870 = vpop.f32.mrf.mxu0
        %871 = vdwg.mxu0
        %872 = vrot.lane.b32.xlu0 %v550, 112
        %v873 = vpop.permute.xlu0 %872
        %874 = vrot.lane.b32.xlu0 %v550, 80
        %v875 = vpop.permute.xlu0 %874
        %v877 = vsel %vm556, %v873, 0
        %v880 = vsel %vm556, %v875, 0
        %882 = vmatprep.subr.bf16.mxu0 0
        %883 = vmatpush1.bf16.xpose.msra.mxu0 0
        %884 = vmatprep.subr.bf16.mxu0 0
        %885 = vmatpush1.bf16.xpose.msra.mxu0 0
        %886 = vmatprep.subr.bf16.mxu0 0
        %887 = vmatpush1.bf16.xpose.msra.mxu0 0
        %888 = vmatprep.subr.bf16.mxu0 0
        %889 = vmatpush1.bf16.xpose.msra.mxu0 0
        %890 = vmatprep.subr.bf16.mxu0 0
        %891 = vmatpush1.bf16.xpose.msra.mxu0 0
        %892 = vmatprep.subr.bf16.mxu0 0
        %893 = vmatpush1.bf16.xpose.msra.mxu0 0
        %894 = vmatprep.subr.bf16.mxu0 0
        %895 = vmatpush1.bf16.xpose.msra.mxu0 0
        %896 = vmatprep.subr.bf16.mxu0 0
        %897 = vmatpush1.bf16.xpose.msra.mxu0 %v880
        %898 = vmatprep.subr.bf16.mxu0 0
        %899 = vmatpush2.bf16.xpose.msra.mxu0 0
        %900 = vmatprep.subr.bf16.mxu0 0
        %901 = vmatpush2.bf16.xpose.msra.mxu0 0
        %902 = vmatprep.subr.bf16.mxu0 0
        %903 = vmatpush2.bf16.xpose.msra.mxu0 0
        %904 = vmatprep.subr.bf16.mxu0 0
        %905 = vmatpush2.bf16.xpose.msra.mxu0 0
        %906 = vmatprep.subr.bf16.mxu0 0
        %907 = vmatpush2.bf16.xpose.msra.mxu0 0
        %908 = vmatprep.subr.bf16.mxu0 0
        %909 = vmatpush2.bf16.xpose.msra.mxu0 0
        %910 = vmatprep.subr.bf16.mxu0 0
        %911 = vmatpush2.bf16.xpose.msra.mxu0 0
        %912 = vmatprep.subr.bf16.mxu0 0
        %913 = vmatpush2.bf16.xpose.msra.mxu0 0
        %914 = vmatprep.mubr.bf16.mxu0 0
        %915 = vmatmul.mubr.bf16.gmra.mxu0 %v877
        %v916 = vpop.f32.mrf.mxu0
        %v917 = vadd.f32 0.0, %v916
        %v918 = vpop.f32.mrf.mxu0
        %v919 = vpop.f32.mrf.mxu0
        %v920 = vpop.f32.mrf.mxu0
        %921 = vdwg.mxu0
        %v922 = vsel %vm552, -1e+09, %v917
        %v923 = vsel %vm556, %v922, -inf
        %924 = vmax.xlane.f32.xlu0 %v923
        %v925 = vpop.xlane.xlu0 %924
        %v926 = vsub.f32 %v922, %v925
        %v927 = vmul.f32 %v926, 1.442695
        %v928 = vpow.pop %v927
        %v929 = vsel %vm556, %v928, 0.0
        %930 = vadd.xlane.f32.xlu0 %v929
        %v931 = vpop.xlane.xlu0 %930
        %v932 = vrcp.pop %v931
        %v933 = vmul.f32 %v928, %v932
        %v934 = vpack.c.bf16 %v933, %v933
        %935 = vrot.lane.b32.xlu0 %v550, 48
        %v936 = vpop.permute.xlu0 %935
        %v938 = vsel %vm556, %v934, 0
        %v941 = vsel %vm621, %v936, 0
        %943 = vmatprep.subr.bf16.mxu0 0
        %944 = vmatpush1.bf16.msra.mxu0 0
        %945 = vmatprep.subr.bf16.mxu0 0
        %946 = vmatpush1.bf16.msra.mxu0 0
        %947 = vmatprep.subr.bf16.mxu0 0
        %948 = vmatpush1.bf16.msra.mxu0 0
        %949 = vmatprep.subr.bf16.mxu0 0
        %950 = vmatpush1.bf16.msra.mxu0 0
        %951 = vmatprep.subr.bf16.mxu0 0
        %952 = vmatpush1.bf16.msra.mxu0 0
        %953 = vmatprep.subr.bf16.mxu0 0
        %954 = vmatpush1.bf16.msra.mxu0 0
        %955 = vmatprep.subr.bf16.mxu0 0
        %956 = vmatpush1.bf16.msra.mxu0 0
        %957 = vmatprep.subr.bf16.mxu0 0
        %958 = vmatpush1.bf16.msra.mxu0 %v941
        %959 = vmatprep.subr.bf16.mxu0 0
        %960 = vmatpush2.bf16.msra.mxu0 0
        %961 = vmatprep.subr.bf16.mxu0 0
        %962 = vmatpush2.bf16.msra.mxu0 0
        %963 = vmatprep.subr.bf16.mxu0 0
        %964 = vmatpush2.bf16.msra.mxu0 0
        %965 = vmatprep.subr.bf16.mxu0 0
        %966 = vmatpush2.bf16.msra.mxu0 0
        %967 = vmatprep.subr.bf16.mxu0 0
        %968 = vmatpush2.bf16.msra.mxu0 0
        %969 = vmatprep.subr.bf16.mxu0 0
        %970 = vmatpush2.bf16.msra.mxu0 0
        %971 = vmatprep.subr.bf16.mxu0 0
        %972 = vmatpush2.bf16.msra.mxu0 0
        %973 = vmatprep.subr.bf16.mxu0 0
        %974 = vmatpush2.bf16.msra.mxu0 0
        %975 = vmatprep.mubr.bf16.mxu0 0
        %976 = vmatmul.mubr.bf16.gmra.mxu0 %v938
        %v977 = vpop.f32.mrf.mxu0
        %v978 = vadd.f32 0.0, %v977
        %v979 = vpop.f32.mrf.mxu0
        %v980 = vpop.f32.mrf.mxu0
        %v981 = vpop.f32.mrf.mxu0
        %982 = vdwg.mxu0
        %v983 = vpack.c.bf16 %v978, %v978
        %v984 = vld [vmem:[%s4 + $0x8] sm:$0xf]
        %v986 = vsel %vm556, %v983, 0
        %v989 = vsel %vm621, %v984, 0
        %991 = vmatprep.subr.bf16.mxu0 0
        %992 = vmatpush1.bf16.msra.mxu0 0
        %993 = vmatprep.subr.bf16.mxu0 0
        %994 = vmatpush1.bf16.msra.mxu0 0
        %995 = vmatprep.subr.bf16.mxu0 0
        %996 = vmatpush1.bf16.msra.mxu0 0
        %997 = vmatprep.subr.bf16.mxu0 0
        %998 = vmatpush1.bf16.msra.mxu0 0
        %999 = vmatprep.subr.bf16.mxu0 0
        %1000 = vmatpush1.bf16.msra.mxu0 0
        %1001 = vmatprep.subr.bf16.mxu0 0
        %1002 = vmatpush1.bf16.msra.mxu0 0
        %1003 = vmatprep.subr.bf16.mxu0 0
        %1004 = vmatpush1.bf16.msra.mxu0 0
        %1005 = vmatprep.subr.bf16.mxu0 0
        %1006 = vmatpush1.bf16.msra.mxu0 %v989
        %1007 = vmatprep.subr.bf16.mxu0 0
        %1008 = vmatpush2.bf16.msra.mxu0 0
        %1009 = vmatprep.subr.bf16.mxu0 0
        %1010 = vmatpush2.bf16.msra.mxu0 0
        %1011 = vmatprep.subr.bf16.mxu0 0
        %1012 = vmatpush2.bf16.msra.mxu0 0
        %1013 = vmatprep.subr.bf16.mxu0 0
        %1014 = vmatpush2.bf16.msra.mxu0 0
        %1015 = vmatprep.subr.bf16.mxu0 0
        %1016 = vmatpush2.bf16.msra.mxu0 0
        %1017 = vmatprep.subr.bf16.mxu0 0
        %1018 = vmatpush2.bf16.msra.mxu0 0
        %1019 = vmatprep.subr.bf16.mxu0 0
        %1020 = vmatpush2.bf16.msra.mxu0 0
        %1021 = vmatprep.subr.bf16.mxu0 0
        %1022 = vmatpush2.bf16.msra.mxu0 0
        %1023 = vmatprep.mubr.bf16.mxu0 0
        %1024 = vmatmul.mubr.bf16.gmra.mxu0 %v986
        %v1025 = vpop.f32.mrf.mxu0
        %v1026 = vadd.f32 0.0, %v1025
        %v1027 = vpop.f32.mrf.mxu0
        %v1028 = vpop.f32.mrf.mxu0
        %v1029 = vpop.f32.mrf.mxu0
        %1030 = vdwg.mxu0
        %v1031 = vadd.f32 %v867, %v1026
        %1032 = vrot.lane.b32.xlu0 %v550, 104
        %v1033 = vpop.permute.xlu0 %1032
        %1034 = vrot.lane.b32.xlu0 %v550, 72
        %v1035 = vpop.permute.xlu0 %1034
        %v1037 = vsel %vm556, %v1033, 0
        %v1040 = vsel %vm556, %v1035, 0
        %1042 = vmatprep.subr.bf16.mxu0 0
        %1043 = vmatpush1.bf16.xpose.msra.mxu0 0
        %1044 = vmatprep.subr.bf16.mxu0 0
        %1045 = vmatpush1.bf16.xpose.msra.mxu0 0
        %1046 = vmatprep.subr.bf16.mxu0 0
        %1047 = vmatpush1.bf16.xpose.msra.mxu0 0
        %1048 = vmatprep.subr.bf16.mxu0 0
        %1049 = vmatpush1.bf16.xpose.msra.mxu0 0
        %1050 = vmatprep.subr.bf16.mxu0 0
        %1051 = vmatpush1.bf16.xpose.msra.mxu0 0
        %1052 = vmatprep.subr.bf16.mxu0 0
        %1053 = vmatpush1.bf16.xpose.msra.mxu0 0
        %1054 = vmatprep.subr.bf16.mxu0 0
        %1055 = vmatpush1.bf16.xpose.msra.mxu0 0
        %1056 = vmatprep.subr.bf16.mxu0 0
        %1057 = vmatpush1.bf16.xpose.msra.mxu0 %v1040
        %1058 = vmatprep.subr.bf16.mxu0 0
        %1059 = vmatpush2.bf16.xpose.msra.mxu0 0
        %1060 = vmatprep.subr.bf16.mxu0 0
        %1061 = vmatpush2.bf16.xpose.msra.mxu0 0
        %1062 = vmatprep.subr.bf16.mxu0 0
        %1063 = vmatpush2.bf16.xpose.msra.mxu0 0
        %1064 = vmatprep.subr.bf16.mxu0 0
        %1065 = vmatpush2.bf16.xpose.msra.mxu0 0
        %1066 = vmatprep.subr.bf16.mxu0 0
        %1067 = vmatpush2.bf16.xpose.msra.mxu0 0
        %1068 = vmatprep.subr.bf16.mxu0 0
        %1069 = vmatpush2.bf16.xpose.msra.mxu0 0
        %1070 = vmatprep.subr.bf16.mxu0 0
        %1071 = vmatpush2.bf16.xpose.msra.mxu0 0
        %1072 = vmatprep.subr.bf16.mxu0 0
        %1073 = vmatpush2.bf16.xpose.msra.mxu0 0
        %1074 = vmatprep.mubr.bf16.mxu0 0
        %1075 = vmatmul.mubr.bf16.gmra.mxu0 %v1037
        %v1076 = vpop.f32.mrf.mxu0
        %v1077 = vadd.f32 0.0, %v1076
        %v1078 = vpop.f32.mrf.mxu0
        %v1079 = vpop.f32.mrf.mxu0
        %v1080 = vpop.f32.mrf.mxu0
        %1081 = vdwg.mxu0
        %v1082 = vsel %vm552, -1e+09, %v1077
        %v1083 = vsel %vm556, %v1082, -inf
        %1084 = vmax.xlane.f32.xlu0 %v1083
        %v1085 = vpop.xlane.xlu0 %1084
        %v1086 = vsub.f32 %v1082, %v1085
        %v1087 = vmul.f32 %v1086, 1.442695
        %v1088 = vpow.pop %v1087
        %v1089 = vsel %vm556, %v1088, 0.0
        %1090 = vadd.xlane.f32.xlu0 %v1089
        %v1091 = vpop.xlane.xlu0 %1090
        %v1092 = vrcp.pop %v1091
        %v1093 = vmul.f32 %v1088, %v1092
        %v1094 = vpack.c.bf16 %v1093, %v1093
        %1095 = vrot.lane.b32.xlu0 %v550, 40
        %v1096 = vpop.permute.xlu0 %1095
        %v1098 = vsel %vm556, %v1094, 0
        %v1101 = vsel %vm621, %v1096, 0
        %1103 = vmatprep.subr.bf16.mxu0 0
        %1104 = vmatpush1.bf16.msra.mxu0 0
        %1105 = vmatprep.subr.bf16.mxu0 0
        %1106 = vmatpush1.bf16.msra.mxu0 0
        %1107 = vmatprep.subr.bf16.mxu0 0
        %1108 = vmatpush1.bf16.msra.mxu0 0
        %1109 = vmatprep.subr.bf16.mxu0 0
        %1110 = vmatpush1.bf16.msra.mxu0 0
        %1111 = vmatprep.subr.bf16.mxu0 0
        %1112 = vmatpush1.bf16.msra.mxu0 0
        %1113 = vmatprep.subr.bf16.mxu0 0
        %1114 = vmatpush1.bf16.msra.mxu0 0
        %1115 = vmatprep.subr.bf16.mxu0 0
        %1116 = vmatpush1.bf16.msra.mxu0 0
        %1117 = vmatprep.subr.bf16.mxu0 0
        %1118 = vmatpush1.bf16.msra.mxu0 %v1101
        %1119 = vmatprep.subr.bf16.mxu0 0
        %1120 = vmatpush2.bf16.msra.mxu0 0
        %1121 = vmatprep.subr.bf16.mxu0 0
        %1122 = vmatpush2.bf16.msra.mxu0 0
        %1123 = vmatprep.subr.bf16.mxu0 0
        %1124 = vmatpush2.bf16.msra.mxu0 0
        %1125 = vmatprep.subr.bf16.mxu0 0
        %1126 = vmatpush2.bf16.msra.mxu0 0
        %1127 = vmatprep.subr.bf16.mxu0 0
        %1128 = vmatpush2.bf16.msra.mxu0 0
        %1129 = vmatprep.subr.bf16.mxu0 0
        %1130 = vmatpush2.bf16.msra.mxu0 0
        %1131 = vmatprep.subr.bf16.mxu0 0
        %1132 = vmatpush2.bf16.msra.mxu0 0
        %1133 = vmatprep.subr.bf16.mxu0 0
        %1134 = vmatpush2.bf16.msra.mxu0 0
        %1135 = vmatprep.mubr.bf16.mxu0 0
        %1136 = vmatmul.mubr.bf16.gmra.mxu0 %v1098
        %v1137 = vpop.f32.mrf.mxu0
        %v1138 = vadd.f32 0.0, %v1137
        %v1139 = vpop.f32.mrf.mxu0
        %v1140 = vpop.f32.mrf.mxu0
        %v1141 = vpop.f32.mrf.mxu0
        %1142 = vdwg.mxu0
        %v1143 = vpack.c.bf16 %v1138, %v1138
        %v1144 = vld [vmem:[%s4 + $0xc] sm:$0xf]
        %v1146 = vsel %vm556, %v1143, 0
        %v1149 = vsel %vm621, %v1144, 0
        %1151 = vmatprep.subr.bf16.mxu0 0
        %1152 = vmatpush1.bf16.msra.mxu0 0
        %1153 = vmatprep.subr.bf16.mxu0 0
        %1154 = vmatpush1.bf16.msra.mxu0 0
        %1155 = vmatprep.subr.bf16.mxu0 0
        %1156 = vmatpush1.bf16.msra.mxu0 0
        %1157 = vmatprep.subr.bf16.mxu0 0
        %1158 = vmatpush1.bf16.msra.mxu0 0
        %1159 = vmatprep.subr.bf16.mxu0 0
        %1160 = vmatpush1.bf16.msra.mxu0 0
        %1161 = vmatprep.subr.bf16.mxu0 0
        %1162 = vmatpush1.bf16.msra.mxu0 0
        %1163 = vmatprep.subr.bf16.mxu0 0
        %1164 = vmatpush1.bf16.msra.mxu0 0
        %1165 = vmatprep.subr.bf16.mxu0 0
        %1166 = vmatpush1.bf16.msra.mxu0 %v1149
        %1167 = vmatprep.subr.bf16.mxu0 0
        %1168 = vmatpush2.bf16.msra.mxu0 0
        %1169 = vmatprep.subr.bf16.mxu0 0
        %1170 = vmatpush2.bf16.msra.mxu0 0
        %1171 = vmatprep.subr.bf16.mxu0 0
        %1172 = vmatpush2.bf16.msra.mxu0 0
        %1173 = vmatprep.subr.bf16.mxu0 0
        %1174 = vmatpush2.bf16.msra.mxu0 0
        %1175 = vmatprep.subr.bf16.mxu0 0
        %1176 = vmatpush2.bf16.msra.mxu0 0
        %1177 = vmatprep.subr.bf16.mxu0 0
        %1178 = vmatpush2.bf16.msra.mxu0 0
        %1179 = vmatprep.subr.bf16.mxu0 0
        %1180 = vmatpush2.bf16.msra.mxu0 0
        %1181 = vmatprep.subr.bf16.mxu0 0
        %1182 = vmatpush2.bf16.msra.mxu0 0
        %1183 = vmatprep.mubr.bf16.mxu0 0
        %1184 = vmatmul.mubr.bf16.gmra.mxu0 %v1146
        %v1185 = vpop.f32.mrf.mxu0
        %v1186 = vadd.f32 0.0, %v1185
        %v1187 = vpop.f32.mrf.mxu0
        %v1188 = vpop.f32.mrf.mxu0
        %v1189 = vpop.f32.mrf.mxu0
        %1190 = vdwg.mxu0
        %v1191 = vadd.f32 %v1031, %v1186
        %v1192 = vld [vmem:[%s5] sm:$0x1]
        %v1194 = vlaneseq
        %v1195 = vshrl.u32 %v1194, 7
        %v1196 = vsub.s32 0, %v1195
        %v1197 = vrot.slane %v1192, %v1196
        %v1199 = vadd.f32 %v1191, %v1197
        %v1200 = vadd.f32 %v481, %v1199
        %v1201 = vld [vmem:[%s10] sm:$0x1]
        %v1202 = vld [vmem:[%s11] sm:$0x1]
        %v1203 = vsel %vm506, %v1200, 0.0
        %1204 = vadd.xlane.f32.xlu0 %v1203
        %v1205 = vpop.xlane.xlu0 %1204
        %v1206 = vrcp.pop 32.0
        %v1207 = vmul.f32 %v1205, %v1206
        %v1208 = vsub.f32 %v1200, %v1207
        %v1209 = vmul.f32 %v1208, %v1208
        %v1210 = vsel %vm506, %v1209, 0.0
        %1211 = vadd.xlane.f32.xlu0 %v1210
        %v1212 = vpop.xlane.xlu0 %1211
        %v1213 = vmul.f32 %v1212, 0.032258064
        %v1215 = vlaneseq
        %v1216 = vshrl.u32 %v1215, 7
        %v1217 = vsub.s32 0, %v1216
        %v1218 = vrot.slane %v1201, %v1217
        %v1220 = vmul.f32 %v1218, %v1208
        %v1221 = vrsqrt.pop %v1213
        %v1222 = vmul.f32 %v1213, %v1221
        %vm1223 = vcmp.eq.f32.partialorder %v1213, inf
        %v1224 = vsel %vm1223, %v1213, %v1222
        %vm1225 = vcmp.eq.f32.partialorder %v1213, 0.0
        %v1226 = vand.u32 %v1213, 2147483648
        %v1227 = vsel %vm1225, %v1226, %v1224
        %v1228 = vadd.f32 %v1227, 1e-06
        %v1229 = vrcp.pop %v1228
        %v1230 = vmul.f32 %v1220, %v1229
        %v1232 = vlaneseq
        %v1233 = vshrl.u32 %v1232, 7
        %v1234 = vsub.s32 0, %v1233
        %v1235 = vrot.slane %v1202, %v1234
        %v1237 = vadd.f32 %v1230, %v1235
        %v1238 = vpack.c.bf16 %v1237, %v1237
        %v1239 = vld [vmem:[%s6] sm:$0xff]
        %v1240 = vld [vmem:[%s6 + $0x8] sm:$0xff]
        %v1241 = vld [vmem:[%s6 + $0x40] sm:$0xff]
        %v1242 = vld [vmem:[%s6 + $0x48] sm:$0xff]
        %v1243 = vld [vmem:[%s6 + $0x80] sm:$0xff]
        %v1244 = vld [vmem:[%s6 + $0x88] sm:$0xff]
        %v1245 = vld [vmem:[%s6 + $0xc0] sm:$0xff]
        %v1246 = vld [vmem:[%s6 + $0xc8] sm:$0xff]
        %v1247 = vld [vmem:[%s7] sm:$0xf]
        %v1249 = vlaneseq
        %v1250 = vshrl.u32 %v1249, 7
        %v1251 = vsub.s32 0, %v1250
        %v1252 = vrot.slane %v1247, %v1251
        %v1253 = vlaneseq
        %v1254 = vshrl.u32 %v1253, 7
        %v1255 = vsub.s32 1, %v1254
        %v1256 = vrot.slane %v1247, %v1255
        %v1257 = vlaneseq
        %v1258 = vshrl.u32 %v1257, 7
        %v1259 = vsub.s32 2, %v1258
        %v1260 = vrot.slane %v1247, %v1259
        %v1261 = vlaneseq
        %v1262 = vshrl.u32 %v1261, 7
        %v1263 = vsub.s32 3, %v1262
        %v1264 = vrot.slane %v1247, %v1263
        %v1277 = vunpack.c.l.b16 %v1239
        %v1278 = vunpack.c.h.b16 %v1239
        %v1279 = vunpack.c.l.b16 %v1240
        %v1280 = vunpack.c.h.b16 %v1240
        %v1281 = vunpack.c.l.b16 %v1241
        %v1282 = vunpack.c.h.b16 %v1241
        %v1283 = vunpack.c.l.b16 %v1242
        %v1284 = vunpack.c.h.b16 %v1242
        %v1285 = vunpack.c.l.b16 %v1243
        %v1286 = vunpack.c.h.b16 %v1243
        %v1287 = vunpack.c.l.b16 %v1244
        %v1288 = vunpack.c.h.b16 %v1244
        %v1289 = vunpack.c.l.b16 %v1245
        %v1290 = vunpack.c.h.b16 %v1245
        %v1291 = vunpack.c.l.b16 %v1246
        %v1292 = vunpack.c.h.b16 %v1246
        %v1293 = vpack.c.b16 %v1281, %v1277
        %v1294 = vpack.c.b16 %v1282, %v1278
        %v1295 = vpack.c.b16 %v1283, %v1279
        %v1296 = vpack.c.b16 %v1284, %v1280
        %v1297 = vpack.c.b16 %v1289, %v1285
        %v1298 = vpack.c.b16 %v1290, %v1286
        %v1299 = vpack.c.b16 %v1291, %v1287
        %v1300 = vpack.c.b16 %v1292, %v1288
        %v1310 = vsel %vm506, %v1238, 0
        %1312 = vmatprep.subr.bf16.mxu0 0
        %1313 = vmatpush1.bf16.msra.mxu0 0
        %1314 = vmatprep.subr.bf16.mxu0 0
        %1315 = vmatpush1.bf16.msra.mxu0 0
        %1316 = vmatprep.subr.bf16.mxu0 0
        %1317 = vmatpush1.bf16.msra.mxu0 0
        %1318 = vmatprep.subr.bf16.mxu0 0
        %1319 = vmatpush1.bf16.msra.mxu0 0
        %1320 = vmatprep.subr.bf16.mxu0 0
        %1321 = vmatpush1.bf16.msra.mxu0 0
        %1322 = vmatprep.subr.bf16.mxu0 0
        %1323 = vmatpush1.bf16.msra.mxu0 0
        %1324 = vmatprep.subr.bf16.mxu0 %v1298
        %1325 = vmatpush1.bf16.msra.mxu0 %v1297
        %1326 = vmatprep.subr.bf16.mxu0 %v1294
        %1327 = vmatpush1.bf16.msra.mxu0 %v1293
        %1328 = vmatprep.subr.bf16.mxu0 0
        %1329 = vmatpush2.bf16.msra.mxu0 0
        %1330 = vmatprep.subr.bf16.mxu0 0
        %1331 = vmatpush2.bf16.msra.mxu0 0
        %1332 = vmatprep.subr.bf16.mxu0 0
        %1333 = vmatpush2.bf16.msra.mxu0 0
        %1334 = vmatprep.subr.bf16.mxu0 0
        %1335 = vmatpush2.bf16.msra.mxu0 0
        %1336 = vmatprep.subr.bf16.mxu0 0
        %1337 = vmatpush2.bf16.msra.mxu0 0
        %1338 = vmatprep.subr.bf16.mxu0 0
        %1339 = vmatpush2.bf16.msra.mxu0 0
        %1340 = vmatprep.subr.bf16.mxu0 0
        %1341 = vmatpush2.bf16.msra.mxu0 0
        %1342 = vmatprep.subr.bf16.mxu0 0
        %1343 = vmatpush2.bf16.msra.mxu0 0
        %1344 = vmatprep.mubr.bf16.mxu0 0
        %1345 = vmatmul.mubr.bf16.gmra.mxu0 %v1310
        %v1346 = vpop.f32.mrf.mxu0
        %v1347 = vadd.f32 %v1252, %v1346
        %v1348 = vpop.f32.mrf.mxu0
        %v1349 = vadd.f32 %v1256, %v1348
        %v1350 = vpop.f32.mrf.mxu0
        %v1351 = vpop.f32.mrf.mxu0
        %1352 = vdwg.mxu0
        %1353 = vmatprep.subr.bf16.mxu0 0
        %1354 = vmatpush1.bf16.msra.mxu0 0
        %1355 = vmatprep.subr.bf16.mxu0 0
        %1356 = vmatpush1.bf16.msra.mxu0 0
        %1357 = vmatprep.subr.bf16.mxu0 0
        %1358 = vmatpush1.bf16.msra.mxu0 0
        %1359 = vmatprep.subr.bf16.mxu0 0
        %1360 = vmatpush1.bf16.msra.mxu0 0
        %1361 = vmatprep.subr.bf16.mxu0 0
        %1362 = vmatpush1.bf16.msra.mxu0 0
        %1363 = vmatprep.subr.bf16.mxu0 0
        %1364 = vmatpush1.bf16.msra.mxu0 0
        %1365 = vmatprep.subr.bf16.mxu0 %v1300
        %1366 = vmatpush1.bf16.msra.mxu0 %v1299
        %1367 = vmatprep.subr.bf16.mxu0 %v1296
        %1368 = vmatpush1.bf16.msra.mxu0 %v1295
        %1369 = vmatprep.subr.bf16.mxu0 0
        %1370 = vmatpush2.bf16.msra.mxu0 0
        %1371 = vmatprep.subr.bf16.mxu0 0
        %1372 = vmatpush2.bf16.msra.mxu0 0
        %1373 = vmatprep.subr.bf16.mxu0 0
        %1374 = vmatpush2.bf16.msra.mxu0 0
        %1375 = vmatprep.subr.bf16.mxu0 0
        %1376 = vmatpush2.bf16.msra.mxu0 0
        %1377 = vmatprep.subr.bf16.mxu0 0
        %1378 = vmatpush2.bf16.msra.mxu0 0
        %1379 = vmatprep.subr.bf16.mxu0 0
        %1380 = vmatpush2.bf16.msra.mxu0 0
        %1381 = vmatprep.subr.bf16.mxu0 0
        %1382 = vmatpush2.bf16.msra.mxu0 0
        %1383 = vmatprep.subr.bf16.mxu0 0
        %1384 = vmatpush2.bf16.msra.mxu0 0
        %1385 = vmatprep.mubr.bf16.mxu0 0
        %1386 = vmatmul.mubr.bf16.gmra.mxu0 %v1310
        %v1387 = vpop.f32.mrf.mxu0
        %v1388 = vadd.f32 %v1260, %v1387
        %v1389 = vpop.f32.mrf.mxu0
        %v1390 = vadd.f32 %v1264, %v1389
        %v1391 = vpop.f32.mrf.mxu0
        %v1392 = vpop.f32.mrf.mxu0
        %1393 = vdwg.mxu0
        %v1394 = vmax.f32 %v1347, 0.0
        %v1395 = vmax.f32 %v1349, 0.0
        %v1396 = vmax.f32 %v1388, 0.0
        %v1397 = vmax.f32 %v1390, 0.0
        %v1398 = vpack.c.bf16 %v1394, %v1394
        %v1399 = vpack.c.bf16 %v1395, %v1395
        %v1400 = vpack.c.bf16 %v1396, %v1396
        %v1401 = vpack.c.bf16 %v1397, %v1397
        %v1402 = vld [vmem:[%s8] sm:$0xf]
        %v1403 = vld [vmem:[%s8 + $0x4] sm:$0xf]
        %v1404 = vld [vmem:[%s8 + $0x8] sm:$0xf]
        %v1405 = vld [vmem:[%s8 + $0xc] sm:$0xf]
        %v1406 = vld [vmem:[%s8 + $0x10] sm:$0xf]
        %v1407 = vld [vmem:[%s8 + $0x14] sm:$0xf]
        %v1408 = vld [vmem:[%s8 + $0x18] sm:$0xf]
        %v1409 = vld [vmem:[%s8 + $0x1c] sm:$0xf]
        %v1410 = vld [vmem:[%s8 + $0x20] sm:$0xf]
        %v1411 = vld [vmem:[%s8 + $0x24] sm:$0xf]
        %v1412 = vld [vmem:[%s8 + $0x28] sm:$0xf]
        %v1413 = vld [vmem:[%s8 + $0x2c] sm:$0xf]
        %v1414 = vld [vmem:[%s8 + $0x30] sm:$0xf]
        %v1415 = vld [vmem:[%s8 + $0x34] sm:$0xf]
        %v1416 = vld [vmem:[%s8 + $0x38] sm:$0xf]
        %v1417 = vld [vmem:[%s8 + $0x3c] sm:$0xf]
        %v1418 = vld [vmem:[%s8 + $0x40] sm:$0xf]
        %v1419 = vld [vmem:[%s8 + $0x44] sm:$0xf]
        %v1420 = vld [vmem:[%s8 + $0x48] sm:$0xf]
        %v1421 = vld [vmem:[%s8 + $0x4c] sm:$0xf]
        %v1422 = vld [vmem:[%s8 + $0x50] sm:$0xf]
        %v1423 = vld [vmem:[%s8 + $0x54] sm:$0xf]
        %v1424 = vld [vmem:[%s8 + $0x58] sm:$0xf]
        %v1425 = vld [vmem:[%s8 + $0x5c] sm:$0xf]
        %v1426 = vld [vmem:[%s8 + $0x60] sm:$0xf]
        %v1427 = vld [vmem:[%s8 + $0x64] sm:$0xf]
        %v1428 = vld [vmem:[%s8 + $0x68] sm:$0xf]
        %v1429 = vld [vmem:[%s8 + $0x6c] sm:$0xf]
        %v1430 = vld [vmem:[%s8 + $0x70] sm:$0xf]
        %v1431 = vld [vmem:[%s8 + $0x74] sm:$0xf]
        %v1432 = vld [vmem:[%s8 + $0x78] sm:$0xf]
        %v1433 = vld [vmem:[%s8 + $0x7c] sm:$0xf]
        %v1434 = vld [vmem:[%s8 + $0x80] sm:$0xf]
        %v1435 = vld [vmem:[%s8 + $0x84] sm:$0xf]
        %v1436 = vld [vmem:[%s8 + $0x88] sm:$0xf]
        %v1437 = vld [vmem:[%s8 + $0x8c] sm:$0xf]
        %v1438 = vld [vmem:[%s8 + $0x90] sm:$0xf]
        %v1439 = vld [vmem:[%s8 + $0x94] sm:$0xf]
        %v1440 = vld [vmem:[%s8 + $0x98] sm:$0xf]
        %v1441 = vld [vmem:[%s8 + $0x9c] sm:$0xf]
        %v1442 = vld [vmem:[%s8 + $0xa0] sm:$0xf]
        %v1443 = vld [vmem:[%s8 + $0xa4] sm:$0xf]
        %v1444 = vld [vmem:[%s8 + $0xa8] sm:$0xf]
        %v1445 = vld [vmem:[%s8 + $0xac] sm:$0xf]
        %v1446 = vld [vmem:[%s8 + $0xb0] sm:$0xf]
        %v1447 = vld [vmem:[%s8 + $0xb4] sm:$0xf]
        %v1448 = vld [vmem:[%s8 + $0xb8] sm:$0xf]
        %v1449 = vld [vmem:[%s8 + $0xbc] sm:$0xf]
        %v1450 = vld [vmem:[%s8 + $0xc0] sm:$0xf]
        %v1451 = vld [vmem:[%s8 + $0xc4] sm:$0xf]
        %v1452 = vld [vmem:[%s8 + $0xc8] sm:$0xf]
        %v1453 = vld [vmem:[%s8 + $0xcc] sm:$0xf]
        %v1454 = vld [vmem:[%s8 + $0xd0] sm:$0xf]
        %v1455 = vld [vmem:[%s8 + $0xd4] sm:$0xf]
        %v1456 = vld [vmem:[%s8 + $0xd8] sm:$0xf]
        %v1457 = vld [vmem:[%s8 + $0xdc] sm:$0xf]
        %v1458 = vld [vmem:[%s8 + $0xe0] sm:$0xf]
        %v1459 = vld [vmem:[%s8 + $0xe4] sm:$0xf]
        %v1460 = vld [vmem:[%s8 + $0xe8] sm:$0xf]
        %v1461 = vld [vmem:[%s8 + $0xec] sm:$0xf]
        %v1462 = vld [vmem:[%s8 + $0xf0] sm:$0xf]
        %v1463 = vld [vmem:[%s8 + $0xf4] sm:$0xf]
        %v1464 = vld [vmem:[%s8 + $0xf8] sm:$0xf]
        %v1465 = vld [vmem:[%s8 + $0xfc] sm:$0xf]
        %v1466 = vld [vmem:[%s6 + $0x10] sm:$0xff]
        %v1467 = vld [vmem:[%s6 + $0x18] sm:$0xff]
        %v1468 = vld [vmem:[%s6 + $0x50] sm:$0xff]
        %v1469 = vld [vmem:[%s6 + $0x58] sm:$0xff]
        %v1470 = vld [vmem:[%s6 + $0x90] sm:$0xff]
        %v1471 = vld [vmem:[%s6 + $0x98] sm:$0xff]
        %v1472 = vld [vmem:[%s6 + $0xd0] sm:$0xff]
        %v1473 = vld [vmem:[%s6 + $0xd8] sm:$0xff]
        %v1474 = vld [vmem:[%s7 + $0x4] sm:$0xf]
        %v1476 = vlaneseq
        %v1477 = vshrl.u32 %v1476, 7
        %v1478 = vsub.s32 0, %v1477
        %v1479 = vrot.slane %v1474, %v1478
        %v1480 = vlaneseq
        %v1481 = vshrl.u32 %v1480, 7
        %v1482 = vsub.s32 1, %v1481
        %v1483 = vrot.slane %v1474, %v1482
        %v1484 = vlaneseq
        %v1485 = vshrl.u32 %v1484, 7
        %v1486 = vsub.s32 2, %v1485
        %v1487 = vrot.slane %v1474, %v1486
        %v1488 = vlaneseq
        %v1489 = vshrl.u32 %v1488, 7
        %v1490 = vsub.s32 3, %v1489
        %v1491 = vrot.slane %v1474, %v1490
        %v1504 = vunpack.c.l.b16 %v1466
        %v1505 = vunpack.c.h.b16 %v1466
        %v1506 = vunpack.c.l.b16 %v1467
        %v1507 = vunpack.c.h.b16 %v1467
        %v1508 = vunpack.c.l.b16 %v1468
        %v1509 = vunpack.c.h.b16 %v1468
        %v1510 = vunpack.c.l.b16 %v1469
        %v1511 = vunpack.c.h.b16 %v1469
        %v1512 = vunpack.c.l.b16 %v1470
        %v1513 = vunpack.c.h.b16 %v1470
        %v1514 = vunpack.c.l.b16 %v1471
        %v1515 = vunpack.c.h.b16 %v1471
        %v1516 = vunpack.c.l.b16 %v1472
        %v1517 = vunpack.c.h.b16 %v1472
        %v1518 = vunpack.c.l.b16 %v1473
        %v1519 = vunpack.c.h.b16 %v1473
        %v1520 = vpack.c.b16 %v1508, %v1504
        %v1521 = vpack.c.b16 %v1509, %v1505
        %v1522 = vpack.c.b16 %v1510, %v1506
        %v1523 = vpack.c.b16 %v1511, %v1507
        %v1524 = vpack.c.b16 %v1516, %v1512
        %v1525 = vpack.c.b16 %v1517, %v1513
        %v1526 = vpack.c.b16 %v1518, %v1514
        %v1527 = vpack.c.b16 %v1519, %v1515
        %1536 = vmatprep.subr.bf16.mxu0 0
        %1537 = vmatpush1.bf16.msra.mxu0 0
        %1538 = vmatprep.subr.bf16.mxu0 0
        %1539 = vmatpush1.bf16.msra.mxu0 0
        %1540 = vmatprep.subr.bf16.mxu0 0
        %1541 = vmatpush1.bf16.msra.mxu0 0
        %1542 = vmatprep.subr.bf16.mxu0 0
        %1543 = vmatpush1.bf16.msra.mxu0 0
        %1544 = vmatprep.subr.bf16.mxu0 0
        %1545 = vmatpush1.bf16.msra.mxu0 0
        %1546 = vmatprep.subr.bf16.mxu0 0
        %1547 = vmatpush1.bf16.msra.mxu0 0
        %1548 = vmatprep.subr.bf16.mxu0 %v1525
        %1549 = vmatpush1.bf16.msra.mxu0 %v1524
        %1550 = vmatprep.subr.bf16.mxu0 %v1521
        %1551 = vmatpush1.bf16.msra.mxu0 %v1520
        %1552 = vmatprep.subr.bf16.mxu0 0
        %1553 = vmatpush2.bf16.msra.mxu0 0
        %1554 = vmatprep.subr.bf16.mxu0 0
        %1555 = vmatpush2.bf16.msra.mxu0 0
        %1556 = vmatprep.subr.bf16.mxu0 0
        %1557 = vmatpush2.bf16.msra.mxu0 0
        %1558 = vmatprep.subr.bf16.mxu0 0
        %1559 = vmatpush2.bf16.msra.mxu0 0
        %1560 = vmatprep.subr.bf16.mxu0 0
        %1561 = vmatpush2.bf16.msra.mxu0 0
        %1562 = vmatprep.subr.bf16.mxu0 0
        %1563 = vmatpush2.bf16.msra.mxu0 0
        %1564 = vmatprep.subr.bf16.mxu0 0
        %1565 = vmatpush2.bf16.msra.mxu0 0
        %1566 = vmatprep.subr.bf16.mxu0 0
        %1567 = vmatpush2.bf16.msra.mxu0 0
        %1568 = vmatprep.mubr.bf16.mxu0 0
        %1569 = vmatmul.mubr.bf16.gmra.mxu0 %v1310
        %v1570 = vpop.f32.mrf.mxu0
        %v1571 = vadd.f32 %v1479, %v1570
        %v1572 = vpop.f32.mrf.mxu0
        %v1573 = vadd.f32 %v1483, %v1572
        %v1574 = vpop.f32.mrf.mxu0
        %v1575 = vpop.f32.mrf.mxu0
        %1576 = vdwg.mxu0
        %1577 = vmatprep.subr.bf16.mxu0 0
        %1578 = vmatpush1.bf16.msra.mxu0 0
        %1579 = vmatprep.subr.bf16.mxu0 0
        %1580 = vmatpush1.bf16.msra.mxu0 0
        %1581 = vmatprep.subr.bf16.mxu0 0
        %1582 = vmatpush1.bf16.msra.mxu0 0
        %1583 = vmatprep.subr.bf16.mxu0 0
        %1584 = vmatpush1.bf16.msra.mxu0 0
        %1585 = vmatprep.subr.bf16.mxu0 0
        %1586 = vmatpush1.bf16.msra.mxu0 0
        %1587 = vmatprep.subr.bf16.mxu0 0
        %1588 = vmatpush1.bf16.msra.mxu0 0
        %1589 = vmatprep.subr.bf16.mxu0 %v1527
        %1590 = vmatpush1.bf16.msra.mxu0 %v1526
        %1591 = vmatprep.subr.bf16.mxu0 %v1523
        %1592 = vmatpush1.bf16.msra.mxu0 %v1522
        %1593 = vmatprep.subr.bf16.mxu0 0
        %1594 = vmatpush2.bf16.msra.mxu0 0
        %1595 = vmatprep.subr.bf16.mxu0 0
        %1596 = vmatpush2.bf16.msra.mxu0 0
        %1597 = vmatprep.subr.bf16.mxu0 0
        %1598 = vmatpush2.bf16.msra.mxu0 0
        %1599 = vmatprep.subr.bf16.mxu0 0
        %1600 = vmatpush2.bf16.msra.mxu0 0
        %1601 = vmatprep.subr.bf16.mxu0 0
        %1602 = vmatpush2.bf16.msra.mxu0 0
        %1603 = vmatprep.subr.bf16.mxu0 0
        %1604 = vmatpush2.bf16.msra.mxu0 0
        %1605 = vmatprep.subr.bf16.mxu0 0
        %1606 = vmatpush2.bf16.msra.mxu0 0
        %1607 = vmatprep.subr.bf16.mxu0 0
        %1608 = vmatpush2.bf16.msra.mxu0 0
        %1609 = vmatprep.mubr.bf16.mxu0 0
        %1610 = vmatmul.mubr.bf16.gmra.mxu0 %v1310
        %v1611 = vpop.f32.mrf.mxu0
        %v1612 = vadd.f32 %v1487, %v1611
        %v1613 = vpop.f32.mrf.mxu0
        %v1614 = vadd.f32 %v1491, %v1613
        %v1615 = vpop.f32.mrf.mxu0
        %v1616 = vpop.f32.mrf.mxu0
        %1617 = vdwg.mxu0
        %v1618 = vmax.f32 %v1571, 0.0
        %v1619 = vmax.f32 %v1573, 0.0
        %v1620 = vmax.f32 %v1612, 0.0
        %v1621 = vmax.f32 %v1614, 0.0
        %v1622 = vpack.c.bf16 %v1618, %v1618
        %v1623 = vpack.c.bf16 %v1619, %v1619
        %v1624 = vpack.c.bf16 %v1620, %v1620
        %v1625 = vpack.c.bf16 %v1621, %v1621
        %v1626 = vld [vmem:[%s8 + $0x100] sm:$0xf]
        %v1627 = vld [vmem:[%s8 + $0x104] sm:$0xf]
        %v1628 = vld [vmem:[%s8 + $0x108] sm:$0xf]
        %v1629 = vld [vmem:[%s8 + $0x10c] sm:$0xf]
        %v1630 = vld [vmem:[%s8 + $0x110] sm:$0xf]
        %v1631 = vld [vmem:[%s8 + $0x114] sm:$0xf]
        %v1632 = vld [vmem:[%s8 + $0x118] sm:$0xf]
        %v1633 = vld [vmem:[%s8 + $0x11c] sm:$0xf]
        %v1634 = vld [vmem:[%s8 + $0x120] sm:$0xf]
        %v1635 = vld [vmem:[%s8 + $0x124] sm:$0xf]
        %v1636 = vld [vmem:[%s8 + $0x128] sm:$0xf]
        %v1637 = vld [vmem:[%s8 + $0x12c] sm:$0xf]
        %v1638 = vld [vmem:[%s8 + $0x130] sm:$0xf]
        %v1639 = vld [vmem:[%s8 + $0x134] sm:$0xf]
        %v1640 = vld [vmem:[%s8 + $0x138] sm:$0xf]
        %v1641 = vld [vmem:[%s8 + $0x13c] sm:$0xf]
        %v1642 = vld [vmem:[%s8 + $0x140] sm:$0xf]
        %v1643 = vld [vmem:[%s8 + $0x144] sm:$0xf]
        %v1644 = vld [vmem:[%s8 + $0x148] sm:$0xf]
        %v1645 = vld [vmem:[%s8 + $0x14c] sm:$0xf]
        %v1646 = vld [vmem:[%s8 + $0x150] sm:$0xf]
        %v1647 = vld [vmem:[%s8 + $0x154] sm:$0xf]
        %v1648 = vld [vmem:[%s8 + $0x158] sm:$0xf]
        %v1649 = vld [vmem:[%s8 + $0x15c] sm:$0xf]
        %v1650 = vld [vmem:[%s8 + $0x160] sm:$0xf]
        %v1651 = vld [vmem:[%s8 + $0x164] sm:$0xf]
        %v1652 = vld [vmem:[%s8 + $0x168] sm:$0xf]
        %v1653 = vld [vmem:[%s8 + $0x16c] sm:$0xf]
        %v1654 = vld [vmem:[%s8 + $0x170] sm:$0xf]
        %v1655 = vld [vmem:[%s8 + $0x174] sm:$0xf]
        %v1656 = vld [vmem:[%s8 + $0x178] sm:$0xf]
        %v1657 = vld [vmem:[%s8 + $0x17c] sm:$0xf]
        %v1658 = vld [vmem:[%s8 + $0x180] sm:$0xf]
        %v1659 = vld [vmem:[%s8 + $0x184] sm:$0xf]
        %v1660 = vld [vmem:[%s8 + $0x188] sm:$0xf]
        %v1661 = vld [vmem:[%s8 + $0x18c] sm:$0xf]
        %v1662 = vld [vmem:[%s8 + $0x190] sm:$0xf]
        %v1663 = vld [vmem:[%s8 + $0x194] sm:$0xf]
        %v1664 = vld [vmem:[%s8 + $0x198] sm:$0xf]
        %v1665 = vld [vmem:[%s8 + $0x19c] sm:$0xf]
        %v1666 = vld [vmem:[%s8 + $0x1a0] sm:$0xf]
        %v1667 = vld [vmem:[%s8 + $0x1a4] sm:$0xf]
        %v1668 = vld [vmem:[%s8 + $0x1a8] sm:$0xf]
        %v1669 = vld [vmem:[%s8 + $0x1ac] sm:$0xf]
        %v1670 = vld [vmem:[%s8 + $0x1b0] sm:$0xf]
        %v1671 = vld [vmem:[%s8 + $0x1b4] sm:$0xf]
        %v1672 = vld [vmem:[%s8 + $0x1b8] sm:$0xf]
        %v1673 = vld [vmem:[%s8 + $0x1bc] sm:$0xf]
        %v1674 = vld [vmem:[%s8 + $0x1c0] sm:$0xf]
        %v1675 = vld [vmem:[%s8 + $0x1c4] sm:$0xf]
        %v1676 = vld [vmem:[%s8 + $0x1c8] sm:$0xf]
        %v1677 = vld [vmem:[%s8 + $0x1cc] sm:$0xf]
        %v1678 = vld [vmem:[%s8 + $0x1d0] sm:$0xf]
        %v1679 = vld [vmem:[%s8 + $0x1d4] sm:$0xf]
        %v1680 = vld [vmem:[%s8 + $0x1d8] sm:$0xf]
        %v1681 = vld [vmem:[%s8 + $0x1dc] sm:$0xf]
        %v1682 = vld [vmem:[%s8 + $0x1e0] sm:$0xf]
        %v1683 = vld [vmem:[%s8 + $0x1e4] sm:$0xf]
        %v1684 = vld [vmem:[%s8 + $0x1e8] sm:$0xf]
        %v1685 = vld [vmem:[%s8 + $0x1ec] sm:$0xf]
        %v1686 = vld [vmem:[%s8 + $0x1f0] sm:$0xf]
        %v1687 = vld [vmem:[%s8 + $0x1f4] sm:$0xf]
        %v1688 = vld [vmem:[%s8 + $0x1f8] sm:$0xf]
        %v1689 = vld [vmem:[%s8 + $0x1fc] sm:$0xf]
        %v1754 = vunpack.c.l.b16 %v1626
        %v1755 = vunpack.c.l.b16 %v1627
        %v1756 = vunpack.c.l.b16 %v1628
        %v1757 = vunpack.c.l.b16 %v1629
        %v1758 = vunpack.c.l.b16 %v1630
        %v1759 = vunpack.c.l.b16 %v1631
        %v1760 = vunpack.c.l.b16 %v1632
        %v1761 = vunpack.c.l.b16 %v1633
        %v1762 = vunpack.c.l.b16 %v1634
        %v1763 = vunpack.c.l.b16 %v1635
        %v1764 = vunpack.c.l.b16 %v1636
        %v1765 = vunpack.c.l.b16 %v1637
        %v1766 = vunpack.c.l.b16 %v1638
        %v1767 = vunpack.c.l.b16 %v1639
        %v1768 = vunpack.c.l.b16 %v1640
        %v1769 = vunpack.c.l.b16 %v1641
        %v1770 = vunpack.c.l.b16 %v1642
        %v1771 = vunpack.c.l.b16 %v1643
        %v1772 = vunpack.c.l.b16 %v1644
        %v1773 = vunpack.c.l.b16 %v1645
        %v1774 = vunpack.c.l.b16 %v1646
        %v1775 = vunpack.c.l.b16 %v1647
        %v1776 = vunpack.c.l.b16 %v1648
        %v1777 = vunpack.c.l.b16 %v1649
        %v1778 = vunpack.c.l.b16 %v1650
        %v1779 = vunpack.c.l.b16 %v1651
        %v1780 = vunpack.c.l.b16 %v1652
        %v1781 = vunpack.c.l.b16 %v1653
        %v1782 = vunpack.c.l.b16 %v1654
        %v1783 = vunpack.c.l.b16 %v1655
        %v1784 = vunpack.c.l.b16 %v1656
        %v1785 = vunpack.c.l.b16 %v1657
        %v1786 = vunpack.c.l.b16 %v1658
        %v1787 = vunpack.c.l.b16 %v1659
        %v1788 = vunpack.c.l.b16 %v1660
        %v1789 = vunpack.c.l.b16 %v1661
        %v1790 = vunpack.c.l.b16 %v1662
        %v1791 = vunpack.c.l.b16 %v1663
        %v1792 = vunpack.c.l.b16 %v1664
        %v1793 = vunpack.c.l.b16 %v1665
        %v1794 = vunpack.c.l.b16 %v1666
        %v1795 = vunpack.c.l.b16 %v1667
        %v1796 = vunpack.c.l.b16 %v1668
        %v1797 = vunpack.c.l.b16 %v1669
        %v1798 = vunpack.c.l.b16 %v1670
        %v1799 = vunpack.c.l.b16 %v1671
        %v1800 = vunpack.c.l.b16 %v1672
        %v1801 = vunpack.c.l.b16 %v1673
        %v1802 = vunpack.c.l.b16 %v1674
        %v1803 = vunpack.c.l.b16 %v1675
        %v1804 = vunpack.c.l.b16 %v1676
        %v1805 = vunpack.c.l.b16 %v1677
        %v1806 = vunpack.c.l.b16 %v1678
        %v1807 = vunpack.c.l.b16 %v1679
        %v1808 = vunpack.c.l.b16 %v1680
        %v1809 = vunpack.c.l.b16 %v1681
        %v1810 = vunpack.c.l.b16 %v1682
        %v1811 = vunpack.c.l.b16 %v1683
        %v1812 = vunpack.c.l.b16 %v1684
        %v1813 = vunpack.c.l.b16 %v1685
        %v1814 = vunpack.c.l.b16 %v1686
        %v1815 = vunpack.c.l.b16 %v1687
        %v1816 = vunpack.c.l.b16 %v1688
        %v1817 = vunpack.c.l.b16 %v1689
        %v1818 = vpack.c.b16 %v1755, %v1754
        %v1819 = vpack.c.b16 %v1757, %v1756
        %v1820 = vpack.c.b16 %v1759, %v1758
        %v1821 = vpack.c.b16 %v1761, %v1760
        %v1822 = vpack.c.b16 %v1763, %v1762
        %v1823 = vpack.c.b16 %v1765, %v1764
        %v1824 = vpack.c.b16 %v1767, %v1766
        %v1825 = vpack.c.b16 %v1769, %v1768
        %v1826 = vpack.c.b16 %v1771, %v1770
        %v1827 = vpack.c.b16 %v1773, %v1772
        %v1828 = vpack.c.b16 %v1775, %v1774
        %v1829 = vpack.c.b16 %v1777, %v1776
        %v1830 = vpack.c.b16 %v1779, %v1778
        %v1831 = vpack.c.b16 %v1781, %v1780
        %v1832 = vpack.c.b16 %v1783, %v1782
        %v1833 = vpack.c.b16 %v1785, %v1784
        %v1834 = vpack.c.b16 %v1787, %v1786
        %v1835 = vpack.c.b16 %v1789, %v1788
        %v1836 = vpack.c.b16 %v1791, %v1790
        %v1837 = vpack.c.b16 %v1793, %v1792
        %v1838 = vpack.c.b16 %v1795, %v1794
        %v1839 = vpack.c.b16 %v1797, %v1796
        %v1840 = vpack.c.b16 %v1799, %v1798
        %v1841 = vpack.c.b16 %v1801, %v1800
        %v1842 = vpack.c.b16 %v1803, %v1802
        %v1843 = vpack.c.b16 %v1805, %v1804
        %v1844 = vpack.c.b16 %v1807, %v1806
        %v1845 = vpack.c.b16 %v1809, %v1808
        %v1846 = vpack.c.b16 %v1811, %v1810
        %v1847 = vpack.c.b16 %v1813, %v1812
        %v1848 = vpack.c.b16 %v1815, %v1814
        %v1849 = vpack.c.b16 %v1817, %v1816
        %1882 = vmatprep.subr.bf16.mxu0 0
        %1883 = vmatpush1.bf16.msra.mxu0 %v1825
        %1884 = vmatprep.subr.bf16.mxu0 0
        %1885 = vmatpush1.bf16.msra.mxu0 %v1824
        %1886 = vmatprep.subr.bf16.mxu0 0
        %1887 = vmatpush1.bf16.msra.mxu0 %v1823
        %1888 = vmatprep.subr.bf16.mxu0 0
        %1889 = vmatpush1.bf16.msra.mxu0 %v1822
        %1890 = vmatprep.subr.bf16.mxu0 0
        %1891 = vmatpush1.bf16.msra.mxu0 %v1821
        %1892 = vmatprep.subr.bf16.mxu0 0
        %1893 = vmatpush1.bf16.msra.mxu0 %v1820
        %1894 = vmatprep.subr.bf16.mxu0 0
        %1895 = vmatpush1.bf16.msra.mxu0 %v1819
        %1896 = vmatprep.subr.bf16.mxu0 0
        %1897 = vmatpush1.bf16.msra.mxu0 %v1818
        %1898 = vmatprep.subr.bf16.mxu0 0
        %1899 = vmatpush2.bf16.msra.mxu0 %v1833
        %1900 = vmatprep.subr.bf16.mxu0 0
        %1901 = vmatpush2.bf16.msra.mxu0 %v1832
        %1902 = vmatprep.subr.bf16.mxu0 0
        %1903 = vmatpush2.bf16.msra.mxu0 %v1831
        %1904 = vmatprep.subr.bf16.mxu0 0
        %1905 = vmatpush2.bf16.msra.mxu0 %v1830
        %1906 = vmatprep.subr.bf16.mxu0 0
        %1907 = vmatpush2.bf16.msra.mxu0 %v1829
        %1908 = vmatprep.subr.bf16.mxu0 0
        %1909 = vmatpush2.bf16.msra.mxu0 %v1828
        %1910 = vmatprep.subr.bf16.mxu0 0
        %1911 = vmatpush2.bf16.msra.mxu0 %v1827
        %1912 = vmatprep.subr.bf16.mxu0 0
        %1913 = vmatpush2.bf16.msra.mxu0 %v1826
        %1914 = vmatprep.mubr.bf16.mxu0 %v1623
        %1915 = vmatmul.mubr.bf16.gmra.mxu0 %v1622
        %v1916 = vpop.f32.mrf.mxu0
        %v1917 = vadd.f32 0.0, %v1916
        %v1918 = vpop.f32.mrf.mxu0
        %v1919 = vpop.f32.mrf.mxu0
        %v1920 = vpop.f32.mrf.mxu0
        %1921 = vdwg.mxu0
        %1922 = vmatprep.subr.bf16.mxu0 0
        %1923 = vmatpush1.bf16.msra.mxu0 %v1841
        %1924 = vmatprep.subr.bf16.mxu0 0
        %1925 = vmatpush1.bf16.msra.mxu0 %v1840
        %1926 = vmatprep.subr.bf16.mxu0 0
        %1927 = vmatpush1.bf16.msra.mxu0 %v1839
        %1928 = vmatprep.subr.bf16.mxu0 0
        %1929 = vmatpush1.bf16.msra.mxu0 %v1838
        %1930 = vmatprep.subr.bf16.mxu0 0
        %1931 = vmatpush1.bf16.msra.mxu0 %v1837
        %1932 = vmatprep.subr.bf16.mxu0 0
        %1933 = vmatpush1.bf16.msra.mxu0 %v1836
        %1934 = vmatprep.subr.bf16.mxu0 0
        %1935 = vmatpush1.bf16.msra.mxu0 %v1835
        %1936 = vmatprep.subr.bf16.mxu0 0
        %1937 = vmatpush1.bf16.msra.mxu0 %v1834
        %1938 = vmatprep.subr.bf16.mxu0 0
        %1939 = vmatpush2.bf16.msra.mxu0 %v1849
        %1940 = vmatprep.subr.bf16.mxu0 0
        %1941 = vmatpush2.bf16.msra.mxu0 %v1848
        %1942 = vmatprep.subr.bf16.mxu0 0
        %1943 = vmatpush2.bf16.msra.mxu0 %v1847
        %1944 = vmatprep.subr.bf16.mxu0 0
        %1945 = vmatpush2.bf16.msra.mxu0 %v1846
        %1946 = vmatprep.subr.bf16.mxu0 0
        %1947 = vmatpush2.bf16.msra.mxu0 %v1845
        %1948 = vmatprep.subr.bf16.mxu0 0
        %1949 = vmatpush2.bf16.msra.mxu0 %v1844
        %1950 = vmatprep.subr.bf16.mxu0 0
        %1951 = vmatpush2.bf16.msra.mxu0 %v1843
        %1952 = vmatprep.subr.bf16.mxu0 0
        %1953 = vmatpush2.bf16.msra.mxu0 %v1842
        %1954 = vmatprep.mubr.bf16.mxu0 %v1625
        %1955 = vmatmul.mubr.bf16.gmra.mxu0 %v1624
        %v1956 = vpop.f32.mrf.mxu0
        %v1957 = vadd.f32 %v1917, %v1956
        %v1958 = vpop.f32.mrf.mxu0
        %v1959 = vpop.f32.mrf.mxu0
        %v1960 = vpop.f32.mrf.mxu0
        %1961 = vdwg.mxu0
        %v2026 = vunpack.c.l.b16 %v1402
        %v2027 = vunpack.c.l.b16 %v1403
        %v2028 = vunpack.c.l.b16 %v1404
        %v2029 = vunpack.c.l.b16 %v1405
        %v2030 = vunpack.c.l.b16 %v1406
        %v2031 = vunpack.c.l.b16 %v1407
        %v2032 = vunpack.c.l.b16 %v1408
        %v2033 = vunpack.c.l.b16 %v1409
        %v2034 = vunpack.c.l.b16 %v1410
        %v2035 = vunpack.c.l.b16 %v1411
        %v2036 = vunpack.c.l.b16 %v1412
        %v2037 = vunpack.c.l.b16 %v1413
        %v2038 = vunpack.c.l.b16 %v1414
        %v2039 = vunpack.c.l.b16 %v1415
        %v2040 = vunpack.c.l.b16 %v1416
        %v2041 = vunpack.c.l.b16 %v1417
        %v2042 = vunpack.c.l.b16 %v1418
        %v2043 = vunpack.c.l.b16 %v1419
        %v2044 = vunpack.c.l.b16 %v1420
        %v2045 = vunpack.c.l.b16 %v1421
        %v2046 = vunpack.c.l.b16 %v1422
        %v2047 = vunpack.c.l.b16 %v1423
        %v2048 = vunpack.c.l.b16 %v1424
        %v2049 = vunpack.c.l.b16 %v1425
        %v2050 = vunpack.c.l.b16 %v1426
        %v2051 = vunpack.c.l.b16 %v1427
        %v2052 = vunpack.c.l.b16 %v1428
        %v2053 = vunpack.c.l.b16 %v1429
        %v2054 = vunpack.c.l.b16 %v1430
        %v2055 = vunpack.c.l.b16 %v1431
        %v2056 = vunpack.c.l.b16 %v1432
        %v2057 = vunpack.c.l.b16 %v1433
        %v2058 = vunpack.c.l.b16 %v1434
        %v2059 = vunpack.c.l.b16 %v1435
        %v2060 = vunpack.c.l.b16 %v1436
        %v2061 = vunpack.c.l.b16 %v1437
        %v2062 = vunpack.c.l.b16 %v1438
        %v2063 = vunpack.c.l.b16 %v1439
        %v2064 = vunpack.c.l.b16 %v1440
        %v2065 = vunpack.c.l.b16 %v1441
        %v2066 = vunpack.c.l.b16 %v1442
        %v2067 = vunpack.c.l.b16 %v1443
        %v2068 = vunpack.c.l.b16 %v1444
        %v2069 = vunpack.c.l.b16 %v1445
        %v2070 = vunpack.c.l.b16 %v1446
        %v2071 = vunpack.c.l.b16 %v1447
        %v2072 = vunpack.c.l.b16 %v1448
        %v2073 = vunpack.c.l.b16 %v1449
        %v2074 = vunpack.c.l.b16 %v1450
        %v2075 = vunpack.c.l.b16 %v1451
        %v2076 = vunpack.c.l.b16 %v1452
        %v2077 = vunpack.c.l.b16 %v1453
        %v2078 = vunpack.c.l.b16 %v1454
        %v2079 = vunpack.c.l.b16 %v1455
        %v2080 = vunpack.c.l.b16 %v1456
        %v2081 = vunpack.c.l.b16 %v1457
        %v2082 = vunpack.c.l.b16 %v1458
        %v2083 = vunpack.c.l.b16 %v1459
        %v2084 = vunpack.c.l.b16 %v1460
        %v2085 = vunpack.c.l.b16 %v1461
        %v2086 = vunpack.c.l.b16 %v1462
        %v2087 = vunpack.c.l.b16 %v1463
        %v2088 = vunpack.c.l.b16 %v1464
        %v2089 = vunpack.c.l.b16 %v1465
        %v2090 = vpack.c.b16 %v2027, %v2026
        %v2091 = vpack.c.b16 %v2029, %v2028
        %v2092 = vpack.c.b16 %v2031, %v2030
        %v2093 = vpack.c.b16 %v2033, %v2032
        %v2094 = vpack.c.b16 %v2035, %v2034
        %v2095 = vpack.c.b16 %v2037, %v2036
        %v2096 = vpack.c.b16 %v2039, %v2038
        %v2097 = vpack.c.b16 %v2041, %v2040
        %v2098 = vpack.c.b16 %v2043, %v2042
        %v2099 = vpack.c.b16 %v2045, %v2044
        %v2100 = vpack.c.b16 %v2047, %v2046
        %v2101 = vpack.c.b16 %v2049, %v2048
        %v2102 = vpack.c.b16 %v2051, %v2050
        %v2103 = vpack.c.b16 %v2053, %v2052
        %v2104 = vpack.c.b16 %v2055, %v2054
        %v2105 = vpack.c.b16 %v2057, %v2056
        %v2106 = vpack.c.b16 %v2059, %v2058
        %v2107 = vpack.c.b16 %v2061, %v2060
        %v2108 = vpack.c.b16 %v2063, %v2062
        %v2109 = vpack.c.b16 %v2065, %v2064
        %v2110 = vpack.c.b16 %v2067, %v2066
        %v2111 = vpack.c.b16 %v2069, %v2068
        %v2112 = vpack.c.b16 %v2071, %v2070
        %v2113 = vpack.c.b16 %v2073, %v2072
        %v2114 = vpack.c.b16 %v2075, %v2074
        %v2115 = vpack.c.b16 %v2077, %v2076
        %v2116 = vpack.c.b16 %v2079, %v2078
        %v2117 = vpack.c.b16 %v2081, %v2080
        %v2118 = vpack.c.b16 %v2083, %v2082
        %v2119 = vpack.c.b16 %v2085, %v2084
        %v2120 = vpack.c.b16 %v2087, %v2086
        %v2121 = vpack.c.b16 %v2089, %v2088
        %2154 = vmatprep.subr.bf16.mxu0 0
        %2155 = vmatpush1.bf16.msra.mxu0 %v2097
        %2156 = vmatprep.subr.bf16.mxu0 0
        %2157 = vmatpush1.bf16.msra.mxu0 %v2096
        %2158 = vmatprep.subr.bf16.mxu0 0
        %2159 = vmatpush1.bf16.msra.mxu0 %v2095
        %2160 = vmatprep.subr.bf16.mxu0 0
        %2161 = vmatpush1.bf16.msra.mxu0 %v2094
        %2162 = vmatprep.subr.bf16.mxu0 0
        %2163 = vmatpush1.bf16.msra.mxu0 %v2093
        %2164 = vmatprep.subr.bf16.mxu0 0
        %2165 = vmatpush1.bf16.msra.mxu0 %v2092
        %2166 = vmatprep.subr.bf16.mxu0 0
        %2167 = vmatpush1.bf16.msra.mxu0 %v2091
        %2168 = vmatprep.subr.bf16.mxu0 0
        %2169 = vmatpush1.bf16.msra.mxu0 %v2090
        %2170 = vmatprep.subr.bf16.mxu0 0
        %2171 = vmatpush2.bf16.msra.mxu0 %v2105
        %2172 = vmatprep.subr.bf16.mxu0 0
        %2173 = vmatpush2.bf16.msra.mxu0 %v2104
        %2174 = vmatprep.subr.bf16.mxu0 0
        %2175 = vmatpush2.bf16.msra.mxu0 %v2103
        %2176 = vmatprep.subr.bf16.mxu0 0
        %2177 = vmatpush2.bf16.msra.mxu0 %v2102
        %2178 = vmatprep.subr.bf16.mxu0 0
        %2179 = vmatpush2.bf16.msra.mxu0 %v2101
        %2180 = vmatprep.subr.bf16.mxu0 0
        %2181 = vmatpush2.bf16.msra.mxu0 %v2100
        %2182 = vmatprep.subr.bf16.mxu0 0
        %2183 = vmatpush2.bf16.msra.mxu0 %v2099
        %2184 = vmatprep.subr.bf16.mxu0 0
        %2185 = vmatpush2.bf16.msra.mxu0 %v2098
        %2186 = vmatprep.mubr.bf16.mxu0 %v1399
        %2187 = vmatmul.mubr.bf16.gmra.mxu0 %v1398
        %v2188 = vpop.f32.mrf.mxu0
        %v2189 = vadd.f32 %v1957, %v2188
        %v2190 = vpop.f32.mrf.mxu0
        %v2191 = vpop.f32.mrf.mxu0
        %v2192 = vpop.f32.mrf.mxu0
        %2193 = vdwg.mxu0
        %2194 = vmatprep.subr.bf16.mxu0 0
        %2195 = vmatpush1.bf16.msra.mxu0 %v2113
        %2196 = vmatprep.subr.bf16.mxu0 0
        %2197 = vmatpush1.bf16.msra.mxu0 %v2112
        %2198 = vmatprep.subr.bf16.mxu0 0
        %2199 = vmatpush1.bf16.msra.mxu0 %v2111
        %2200 = vmatprep.subr.bf16.mxu0 0
        %2201 = vmatpush1.bf16.msra.mxu0 %v2110
        %2202 = vmatprep.subr.bf16.mxu0 0
        %2203 = vmatpush1.bf16.msra.mxu0 %v2109
        %2204 = vmatprep.subr.bf16.mxu0 0
        %2205 = vmatpush1.bf16.msra.mxu0 %v2108
        %2206 = vmatprep.subr.bf16.mxu0 0
        %2207 = vmatpush1.bf16.msra.mxu0 %v2107
        %2208 = vmatprep.subr.bf16.mxu0 0
        %2209 = vmatpush1.bf16.msra.mxu0 %v2106
        %2210 = vmatprep.subr.bf16.mxu0 0
        %2211 = vmatpush2.bf16.msra.mxu0 %v2121
        %2212 = vmatprep.subr.bf16.mxu0 0
        %2213 = vmatpush2.bf16.msra.mxu0 %v2120
        %2214 = vmatprep.subr.bf16.mxu0 0
        %2215 = vmatpush2.bf16.msra.mxu0 %v2119
        %2216 = vmatprep.subr.bf16.mxu0 0
        %2217 = vmatpush2.bf16.msra.mxu0 %v2118
        %2218 = vmatprep.subr.bf16.mxu0 0
        %2219 = vmatpush2.bf16.msra.mxu0 %v2117
        %2220 = vmatprep.subr.bf16.mxu0 0
        %2221 = vmatpush2.bf16.msra.mxu0 %v2116
        %2222 = vmatprep.subr.bf16.mxu0 0
        %2223 = vmatpush2.bf16.msra.mxu0 %v2115
        %2224 = vmatprep.subr.bf16.mxu0 0
        %2225 = vmatpush2.bf16.msra.mxu0 %v2114
        %2226 = vmatprep.mubr.bf16.mxu0 %v1401
        %2227 = vmatmul.mubr.bf16.gmra.mxu0 %v1400
        %v2228 = vpop.f32.mrf.mxu0
        %v2229 = vadd.f32 %v2189, %v2228
        %v2230 = vpop.f32.mrf.mxu0
        %v2231 = vpop.f32.mrf.mxu0
        %v2232 = vpop.f32.mrf.mxu0
        %2233 = vdwg.mxu0
        %v2234 = vld [vmem:[%s6 + $0x20] sm:$0xff]
        %v2235 = vld [vmem:[%s6 + $0x28] sm:$0xff]
        %v2236 = vld [vmem:[%s6 + $0x60] sm:$0xff]
        %v2237 = vld [vmem:[%s6 + $0x68] sm:$0xff]
        %v2238 = vld [vmem:[%s6 + $0xa0] sm:$0xff]
        %v2239 = vld [vmem:[%s6 + $0xa8] sm:$0xff]
        %v2240 = vld [vmem:[%s6 + $0xe0] sm:$0xff]
        %v2241 = vld [vmem:[%s6 + $0xe8] sm:$0xff]
        %v2242 = vld [vmem:[%s7 + $0x8] sm:$0xf]
        %v2244 = vlaneseq
        %v2245 = vshrl.u32 %v2244, 7
        %v2246 = vsub.s32 0, %v2245
        %v2247 = vrot.slane %v2242, %v2246
        %v2248 = vlaneseq
        %v2249 = vshrl.u32 %v2248, 7
        %v2250 = vsub.s32 1, %v2249
        %v2251 = vrot.slane %v2242, %v2250
        %v2252 = vlaneseq
        %v2253 = vshrl.u32 %v2252, 7
        %v2254 = vsub.s32 2, %v2253
        %v2255 = vrot.slane %v2242, %v2254
        %v2256 = vlaneseq
        %v2257 = vshrl.u32 %v2256, 7
        %v2258 = vsub.s32 3, %v2257
        %v2259 = vrot.slane %v2242, %v2258
        %v2272 = vunpack.c.l.b16 %v2234
        %v2273 = vunpack.c.h.b16 %v2234
        %v2274 = vunpack.c.l.b16 %v2235
        %v2275 = vunpack.c.h.b16 %v2235
        %v2276 = vunpack.c.l.b16 %v2236
        %v2277 = vunpack.c.h.b16 %v2236
        %v2278 = vunpack.c.l.b16 %v2237
        %v2279 = vunpack.c.h.b16 %v2237
        %v2280 = vunpack.c.l.b16 %v2238
        %v2281 = vunpack.c.h.b16 %v2238
        %v2282 = vunpack.c.l.b16 %v2239
        %v2283 = vunpack.c.h.b16 %v2239
        %v2284 = vunpack.c.l.b16 %v2240
        %v2285 = vunpack.c.h.b16 %v2240
        %v2286 = vunpack.c.l.b16 %v2241
        %v2287 = vunpack.c.h.b16 %v2241
        %v2288 = vpack.c.b16 %v2276, %v2272
        %v2289 = vpack.c.b16 %v2277, %v2273
        %v2290 = vpack.c.b16 %v2278, %v2274
        %v2291 = vpack.c.b16 %v2279, %v2275
        %v2292 = vpack.c.b16 %v2284, %v2280
        %v2293 = vpack.c.b16 %v2285, %v2281
        %v2294 = vpack.c.b16 %v2286, %v2282
        %v2295 = vpack.c.b16 %v2287, %v2283
        %2304 = vmatprep.subr.bf16.mxu0 0
        %2305 = vmatpush1.bf16.msra.mxu0 0
        %2306 = vmatprep.subr.bf16.mxu0 0
        %2307 = vmatpush1.bf16.msra.mxu0 0
        %2308 = vmatprep.subr.bf16.mxu0 0
        %2309 = vmatpush1.bf16.msra.mxu0 0
        %2310 = vmatprep.subr.bf16.mxu0 0
        %2311 = vmatpush1.bf16.msra.mxu0 0
        %2312 = vmatprep.subr.bf16.mxu0 0
        %2313 = vmatpush1.bf16.msra.mxu0 0
        %2314 = vmatprep.subr.bf16.mxu0 0
        %2315 = vmatpush1.bf16.msra.mxu0 0
        %2316 = vmatprep.subr.bf16.mxu0 %v2293
        %2317 = vmatpush1.bf16.msra.mxu0 %v2292
        %2318 = vmatprep.subr.bf16.mxu0 %v2289
        %2319 = vmatpush1.bf16.msra.mxu0 %v2288
        %2320 = vmatprep.subr.bf16.mxu0 0
        %2321 = vmatpush2.bf16.msra.mxu0 0
        %2322 = vmatprep.subr.bf16.mxu0 0
        %2323 = vmatpush2.bf16.msra.mxu0 0
        %2324 = vmatprep.subr.bf16.mxu0 0
        %2325 = vmatpush2.bf16.msra.mxu0 0
        %2326 = vmatprep.subr.bf16.mxu0 0
        %2327 = vmatpush2.bf16.msra.mxu0 0
        %2328 = vmatprep.subr.bf16.mxu0 0
        %2329 = vmatpush2.bf16.msra.mxu0 0
        %2330 = vmatprep.subr.bf16.mxu0 0
        %2331 = vmatpush2.bf16.msra.mxu0 0
        %2332 = vmatprep.subr.bf16.mxu0 0
        %2333 = vmatpush2.bf16.msra.mxu0 0
        %2334 = vmatprep.subr.bf16.mxu0 0
        %2335 = vmatpush2.bf16.msra.mxu0 0
        %2336 = vmatprep.mubr.bf16.mxu0 0
        %2337 = vmatmul.mubr.bf16.gmra.mxu0 %v1310
        %v2338 = vpop.f32.mrf.mxu0
        %v2339 = vadd.f32 %v2247, %v2338
        %v2340 = vpop.f32.mrf.mxu0
        %v2341 = vadd.f32 %v2251, %v2340
        %v2342 = vpop.f32.mrf.mxu0
        %v2343 = vpop.f32.mrf.mxu0
        %2344 = vdwg.mxu0
        %2345 = vmatprep.subr.bf16.mxu0 0
        %2346 = vmatpush1.bf16.msra.mxu0 0
        %2347 = vmatprep.subr.bf16.mxu0 0
        %2348 = vmatpush1.bf16.msra.mxu0 0
        %2349 = vmatprep.subr.bf16.mxu0 0
        %2350 = vmatpush1.bf16.msra.mxu0 0
        %2351 = vmatprep.subr.bf16.mxu0 0
        %2352 = vmatpush1.bf16.msra.mxu0 0
        %2353 = vmatprep.subr.bf16.mxu0 0
        %2354 = vmatpush1.bf16.msra.mxu0 0
        %2355 = vmatprep.subr.bf16.mxu0 0
        %2356 = vmatpush1.bf16.msra.mxu0 0
        %2357 = vmatprep.subr.bf16.mxu0 %v2295
        %2358 = vmatpush1.bf16.msra.mxu0 %v2294
        %2359 = vmatprep.subr.bf16.mxu0 %v2291
        %2360 = vmatpush1.bf16.msra.mxu0 %v2290
        %2361 = vmatprep.subr.bf16.mxu0 0
        %2362 = vmatpush2.bf16.msra.mxu0 0
        %2363 = vmatprep.subr.bf16.mxu0 0
        %2364 = vmatpush2.bf16.msra.mxu0 0
        %2365 = vmatprep.subr.bf16.mxu0 0
        %2366 = vmatpush2.bf16.msra.mxu0 0
        %2367 = vmatprep.subr.bf16.mxu0 0
        %2368 = vmatpush2.bf16.msra.mxu0 0
        %2369 = vmatprep.subr.bf16.mxu0 0
        %2370 = vmatpush2.bf16.msra.mxu0 0
        %2371 = vmatprep.subr.bf16.mxu0 0
        %2372 = vmatpush2.bf16.msra.mxu0 0
        %2373 = vmatprep.subr.bf16.mxu0 0
        %2374 = vmatpush2.bf16.msra.mxu0 0
        %2375 = vmatprep.subr.bf16.mxu0 0
        %2376 = vmatpush2.bf16.msra.mxu0 0
        %2377 = vmatprep.mubr.bf16.mxu0 0
        %2378 = vmatmul.mubr.bf16.gmra.mxu0 %v1310
        %v2379 = vpop.f32.mrf.mxu0
        %v2380 = vadd.f32 %v2255, %v2379
        %v2381 = vpop.f32.mrf.mxu0
        %v2382 = vadd.f32 %v2259, %v2381
        %v2383 = vpop.f32.mrf.mxu0
        %v2384 = vpop.f32.mrf.mxu0
        %2385 = vdwg.mxu0
        %v2386 = vmax.f32 %v2339, 0.0
        %v2387 = vmax.f32 %v2341, 0.0
        %v2388 = vmax.f32 %v2380, 0.0
        %v2389 = vmax.f32 %v2382, 0.0
        %v2390 = vpack.c.bf16 %v2386, %v2386
        %v2391 = vpack.c.bf16 %v2387, %v2387
        %v2392 = vpack.c.bf16 %v2388, %v2388
        %v2393 = vpack.c.bf16 %v2389, %v2389
        %v2394 = vld [vmem:[%s8 + $0x200] sm:$0xf]
        %v2395 = vld [vmem:[%s8 + $0x204] sm:$0xf]
        %v2396 = vld [vmem:[%s8 + $0x208] sm:$0xf]
        %v2397 = vld [vmem:[%s8 + $0x20c] sm:$0xf]
        %v2398 = vld [vmem:[%s8 + $0x210] sm:$0xf]
        %v2399 = vld [vmem:[%s8 + $0x214] sm:$0xf]
        %v2400 = vld [vmem:[%s8 + $0x218] sm:$0xf]
        %v2401 = vld [vmem:[%s8 + $0x21c] sm:$0xf]
        %v2402 = vld [vmem:[%s8 + $0x220] sm:$0xf]
        %v2403 = vld [vmem:[%s8 + $0x224] sm:$0xf]
        %v2404 = vld [vmem:[%s8 + $0x228] sm:$0xf]
        %v2405 = vld [vmem:[%s8 + $0x22c] sm:$0xf]
        %v2406 = vld [vmem:[%s8 + $0x230] sm:$0xf]
        %v2407 = vld [vmem:[%s8 + $0x234] sm:$0xf]
        %v2408 = vld [vmem:[%s8 + $0x238] sm:$0xf]
        %v2409 = vld [vmem:[%s8 + $0x23c] sm:$0xf]
        %v2410 = vld [vmem:[%s8 + $0x240] sm:$0xf]
        %v2411 = vld [vmem:[%s8 + $0x244] sm:$0xf]
        %v2412 = vld [vmem:[%s8 + $0x248] sm:$0xf]
        %v2413 = vld [vmem:[%s8 + $0x24c] sm:$0xf]
        %v2414 = vld [vmem:[%s8 + $0x250] sm:$0xf]
        %v2415 = vld [vmem:[%s8 + $0x254] sm:$0xf]
        %v2416 = vld [vmem:[%s8 + $0x258] sm:$0xf]
        %v2417 = vld [vmem:[%s8 + $0x25c] sm:$0xf]
        %v2418 = vld [vmem:[%s8 + $0x260] sm:$0xf]
        %v2419 = vld [vmem:[%s8 + $0x264] sm:$0xf]
        %v2420 = vld [vmem:[%s8 + $0x268] sm:$0xf]
        %v2421 = vld [vmem:[%s8 + $0x26c] sm:$0xf]
        %v2422 = vld [vmem:[%s8 + $0x270] sm:$0xf]
        %v2423 = vld [vmem:[%s8 + $0x274] sm:$0xf]
        %v2424 = vld [vmem:[%s8 + $0x278] sm:$0xf]
        %v2425 = vld [vmem:[%s8 + $0x27c] sm:$0xf]
        %v2426 = vld [vmem:[%s8 + $0x280] sm:$0xf]
        %v2427 = vld [vmem:[%s8 + $0x284] sm:$0xf]
        %v2428 = vld [vmem:[%s8 + $0x288] sm:$0xf]
        %v2429 = vld [vmem:[%s8 + $0x28c] sm:$0xf]
        %v2430 = vld [vmem:[%s8 + $0x290] sm:$0xf]
        %v2431 = vld [vmem:[%s8 + $0x294] sm:$0xf]
        %v2432 = vld [vmem:[%s8 + $0x298] sm:$0xf]
        %v2433 = vld [vmem:[%s8 + $0x29c] sm:$0xf]
        %v2434 = vld [vmem:[%s8 + $0x2a0] sm:$0xf]
        %v2435 = vld [vmem:[%s8 + $0x2a4] sm:$0xf]
        %v2436 = vld [vmem:[%s8 + $0x2a8] sm:$0xf]
        %v2437 = vld [vmem:[%s8 + $0x2ac] sm:$0xf]
        %v2438 = vld [vmem:[%s8 + $0x2b0] sm:$0xf]
        %v2439 = vld [vmem:[%s8 + $0x2b4] sm:$0xf]
        %v2440 = vld [vmem:[%s8 + $0x2b8] sm:$0xf]
        %v2441 = vld [vmem:[%s8 + $0x2bc] sm:$0xf]
        %v2442 = vld [vmem:[%s8 + $0x2c0] sm:$0xf]
        %v2443 = vld [vmem:[%s8 + $0x2c4] sm:$0xf]
        %v2444 = vld [vmem:[%s8 + $0x2c8] sm:$0xf]
        %v2445 = vld [vmem:[%s8 + $0x2cc] sm:$0xf]
        %v2446 = vld [vmem:[%s8 + $0x2d0] sm:$0xf]
        %v2447 = vld [vmem:[%s8 + $0x2d4] sm:$0xf]
        %v2448 = vld [vmem:[%s8 + $0x2d8] sm:$0xf]
        %v2449 = vld [vmem:[%s8 + $0x2dc] sm:$0xf]
        %v2450 = vld [vmem:[%s8 + $0x2e0] sm:$0xf]
        %v2451 = vld [vmem:[%s8 + $0x2e4] sm:$0xf]
        %v2452 = vld [vmem:[%s8 + $0x2e8] sm:$0xf]
        %v2453 = vld [vmem:[%s8 + $0x2ec] sm:$0xf]
        %v2454 = vld [vmem:[%s8 + $0x2f0] sm:$0xf]
        %v2455 = vld [vmem:[%s8 + $0x2f4] sm:$0xf]
        %v2456 = vld [vmem:[%s8 + $0x2f8] sm:$0xf]
        %v2457 = vld [vmem:[%s8 + $0x2fc] sm:$0xf]
        %v2522 = vunpack.c.l.b16 %v2394
        %v2523 = vunpack.c.l.b16 %v2395
        %v2524 = vunpack.c.l.b16 %v2396
        %v2525 = vunpack.c.l.b16 %v2397
        %v2526 = vunpack.c.l.b16 %v2398
        %v2527 = vunpack.c.l.b16 %v2399
        %v2528 = vunpack.c.l.b16 %v2400
        %v2529 = vunpack.c.l.b16 %v2401
        %v2530 = vunpack.c.l.b16 %v2402
        %v2531 = vunpack.c.l.b16 %v2403
        %v2532 = vunpack.c.l.b16 %v2404
        %v2533 = vunpack.c.l.b16 %v2405
        %v2534 = vunpack.c.l.b16 %v2406
        %v2535 = vunpack.c.l.b16 %v2407
        %v2536 = vunpack.c.l.b16 %v2408
        %v2537 = vunpack.c.l.b16 %v2409
        %v2538 = vunpack.c.l.b16 %v2410
        %v2539 = vunpack.c.l.b16 %v2411
        %v2540 = vunpack.c.l.b16 %v2412
        %v2541 = vunpack.c.l.b16 %v2413
        %v2542 = vunpack.c.l.b16 %v2414
        %v2543 = vunpack.c.l.b16 %v2415
        %v2544 = vunpack.c.l.b16 %v2416
        %v2545 = vunpack.c.l.b16 %v2417
        %v2546 = vunpack.c.l.b16 %v2418
        %v2547 = vunpack.c.l.b16 %v2419
        %v2548 = vunpack.c.l.b16 %v2420
        %v2549 = vunpack.c.l.b16 %v2421
        %v2550 = vunpack.c.l.b16 %v2422
        %v2551 = vunpack.c.l.b16 %v2423
        %v2552 = vunpack.c.l.b16 %v2424
        %v2553 = vunpack.c.l.b16 %v2425
        %v2554 = vunpack.c.l.b16 %v2426
        %v2555 = vunpack.c.l.b16 %v2427
        %v2556 = vunpack.c.l.b16 %v2428
        %v2557 = vunpack.c.l.b16 %v2429
        %v2558 = vunpack.c.l.b16 %v2430
        %v2559 = vunpack.c.l.b16 %v2431
        %v2560 = vunpack.c.l.b16 %v2432
        %v2561 = vunpack.c.l.b16 %v2433
        %v2562 = vunpack.c.l.b16 %v2434
        %v2563 = vunpack.c.l.b16 %v2435
        %v2564 = vunpack.c.l.b16 %v2436
        %v2565 = vunpack.c.l.b16 %v2437
        %v2566 = vunpack.c.l.b16 %v2438
        %v2567 = vunpack.c.l.b16 %v2439
        %v2568 = vunpack.c.l.b16 %v2440
        %v2569 = vunpack.c.l.b16 %v2441
        %v2570 = vunpack.c.l.b16 %v2442
        %v2571 = vunpack.c.l.b16 %v2443
        %v2572 = vunpack.c.l.b16 %v2444
        %v2573 = vunpack.c.l.b16 %v2445
        %v2574 = vunpack.c.l.b16 %v2446
        %v2575 = vunpack.c.l.b16 %v2447
        %v2576 = vunpack.c.l.b16 %v2448
        %v2577 = vunpack.c.l.b16 %v2449
        %v2578 = vunpack.c.l.b16 %v2450
        %v2579 = vunpack.c.l.b16 %v2451
        %v2580 = vunpack.c.l.b16 %v2452
        %v2581 = vunpack.c.l.b16 %v2453
        %v2582 = vunpack.c.l.b16 %v2454
        %v2583 = vunpack.c.l.b16 %v2455
        %v2584 = vunpack.c.l.b16 %v2456
        %v2585 = vunpack.c.l.b16 %v2457
        %v2586 = vpack.c.b16 %v2523, %v2522
        %v2587 = vpack.c.b16 %v2525, %v2524
        %v2588 = vpack.c.b16 %v2527, %v2526
        %v2589 = vpack.c.b16 %v2529, %v2528
        %v2590 = vpack.c.b16 %v2531, %v2530
        %v2591 = vpack.c.b16 %v2533, %v2532
        %v2592 = vpack.c.b16 %v2535, %v2534
        %v2593 = vpack.c.b16 %v2537, %v2536
        %v2594 = vpack.c.b16 %v2539, %v2538
        %v2595 = vpack.c.b16 %v2541, %v2540
        %v2596 = vpack.c.b16 %v2543, %v2542
        %v2597 = vpack.c.b16 %v2545, %v2544
        %v2598 = vpack.c.b16 %v2547, %v2546
        %v2599 = vpack.c.b16 %v2549, %v2548
        %v2600 = vpack.c.b16 %v2551, %v2550
        %v2601 = vpack.c.b16 %v2553, %v2552
        %v2602 = vpack.c.b16 %v2555, %v2554
        %v2603 = vpack.c.b16 %v2557, %v2556
        %v2604 = vpack.c.b16 %v2559, %v2558
        %v2605 = vpack.c.b16 %v2561, %v2560
        %v2606 = vpack.c.b16 %v2563, %v2562
        %v2607 = vpack.c.b16 %v2565, %v2564
        %v2608 = vpack.c.b16 %v2567, %v2566
        %v2609 = vpack.c.b16 %v2569, %v2568
        %v2610 = vpack.c.b16 %v2571, %v2570
        %v2611 = vpack.c.b16 %v2573, %v2572
        %v2612 = vpack.c.b16 %v2575, %v2574
        %v2613 = vpack.c.b16 %v2577, %v2576
        %v2614 = vpack.c.b16 %v2579, %v2578
        %v2615 = vpack.c.b16 %v2581, %v2580
        %v2616 = vpack.c.b16 %v2583, %v2582
        %v2617 = vpack.c.b16 %v2585, %v2584
        %2650 = vmatprep.subr.bf16.mxu0 0
        %2651 = vmatpush1.bf16.msra.mxu0 %v2593
        %2652 = vmatprep.subr.bf16.mxu0 0
        %2653 = vmatpush1.bf16.msra.mxu0 %v2592
        %2654 = vmatprep.subr.bf16.mxu0 0
        %2655 = vmatpush1.bf16.msra.mxu0 %v2591
        %2656 = vmatprep.subr.bf16.mxu0 0
        %2657 = vmatpush1.bf16.msra.mxu0 %v2590
        %2658 = vmatprep.subr.bf16.mxu0 0
        %2659 = vmatpush1.bf16.msra.mxu0 %v2589
        %2660 = vmatprep.subr.bf16.mxu0 0
        %2661 = vmatpush1.bf16.msra.mxu0 %v2588
        %2662 = vmatprep.subr.bf16.mxu0 0
        %2663 = vmatpush1.bf16.msra.mxu0 %v2587
        %2664 = vmatprep.subr.bf16.mxu0 0
        %2665 = vmatpush1.bf16.msra.mxu0 %v2586
        %2666 = vmatprep.subr.bf16.mxu0 0
        %2667 = vmatpush2.bf16.msra.mxu0 %v2601
        %2668 = vmatprep.subr.bf16.mxu0 0
        %2669 = vmatpush2.bf16.msra.mxu0 %v2600
        %2670 = vmatprep.subr.bf16.mxu0 0
        %2671 = vmatpush2.bf16.msra.mxu0 %v2599
        %2672 = vmatprep.subr.bf16.mxu0 0
        %2673 = vmatpush2.bf16.msra.mxu0 %v2598
        %2674 = vmatprep.subr.bf16.mxu0 0
        %2675 = vmatpush2.bf16.msra.mxu0 %v2597
        %2676 = vmatprep.subr.bf16.mxu0 0
        %2677 = vmatpush2.bf16.msra.mxu0 %v2596
        %2678 = vmatprep.subr.bf16.mxu0 0
        %2679 = vmatpush2.bf16.msra.mxu0 %v2595
        %2680 = vmatprep.subr.bf16.mxu0 0
        %2681 = vmatpush2.bf16.msra.mxu0 %v2594
        %2682 = vmatprep.mubr.bf16.mxu0 %v2391
        %2683 = vmatmul.mubr.bf16.gmra.mxu0 %v2390
        %v2684 = vpop.f32.mrf.mxu0
        %v2685 = vadd.f32 0.0, %v2684
        %v2686 = vpop.f32.mrf.mxu0
        %v2687 = vpop.f32.mrf.mxu0
        %v2688 = vpop.f32.mrf.mxu0
        %2689 = vdwg.mxu0
        %2690 = vmatprep.subr.bf16.mxu0 0
        %2691 = vmatpush1.bf16.msra.mxu0 %v2609
        %2692 = vmatprep.subr.bf16.mxu0 0
        %2693 = vmatpush1.bf16.msra.mxu0 %v2608
        %2694 = vmatprep.subr.bf16.mxu0 0
        %2695 = vmatpush1.bf16.msra.mxu0 %v2607
        %2696 = vmatprep.subr.bf16.mxu0 0
        %2697 = vmatpush1.bf16.msra.mxu0 %v2606
        %2698 = vmatprep.subr.bf16.mxu0 0
        %2699 = vmatpush1.bf16.msra.mxu0 %v2605
        %2700 = vmatprep.subr.bf16.mxu0 0
        %2701 = vmatpush1.bf16.msra.mxu0 %v2604
        %2702 = vmatprep.subr.bf16.mxu0 0
        %2703 = vmatpush1.bf16.msra.mxu0 %v2603
        %2704 = vmatprep.subr.bf16.mxu0 0
        %2705 = vmatpush1.bf16.msra.mxu0 %v2602
        %2706 = vmatprep.subr.bf16.mxu0 0
        %2707 = vmatpush2.bf16.msra.mxu0 %v2617
        %2708 = vmatprep.subr.bf16.mxu0 0
        %2709 = vmatpush2.bf16.msra.mxu0 %v2616
        %2710 = vmatprep.subr.bf16.mxu0 0
        %2711 = vmatpush2.bf16.msra.mxu0 %v2615
        %2712 = vmatprep.subr.bf16.mxu0 0
        %2713 = vmatpush2.bf16.msra.mxu0 %v2614
        %2714 = vmatprep.subr.bf16.mxu0 0
        %2715 = vmatpush2.bf16.msra.mxu0 %v2613
        %2716 = vmatprep.subr.bf16.mxu0 0
        %2717 = vmatpush2.bf16.msra.mxu0 %v2612
        %2718 = vmatprep.subr.bf16.mxu0 0
        %2719 = vmatpush2.bf16.msra.mxu0 %v2611
        %2720 = vmatprep.subr.bf16.mxu0 0
        %2721 = vmatpush2.bf16.msra.mxu0 %v2610
        %2722 = vmatprep.mubr.bf16.mxu0 %v2393
        %2723 = vmatmul.mubr.bf16.gmra.mxu0 %v2392
        %v2724 = vpop.f32.mrf.mxu0
        %v2725 = vadd.f32 %v2685, %v2724
        %v2726 = vpop.f32.mrf.mxu0
        %v2727 = vpop.f32.mrf.mxu0
        %v2728 = vpop.f32.mrf.mxu0
        %2729 = vdwg.mxu0
        %v2730 = vadd.f32 %v2229, %v2725
        %v2731 = vld [vmem:[%s6 + $0x30] sm:$0xff]
        %v2732 = vld [vmem:[%s6 + $0x38] sm:$0xff]
        %v2733 = vld [vmem:[%s6 + $0x70] sm:$0xff]
        %v2734 = vld [vmem:[%s6 + $0x78] sm:$0xff]
        %v2735 = vld [vmem:[%s6 + $0xb0] sm:$0xff]
        %v2736 = vld [vmem:[%s6 + $0xb8] sm:$0xff]
        %v2737 = vld [vmem:[%s6 + $0xf0] sm:$0xff]
        %v2738 = vld [vmem:[%s6 + $0xf8] sm:$0xff]
        %v2739 = vld [vmem:[%s7 + $0xc] sm:$0xf]
        %v2741 = vlaneseq
        %v2742 = vshrl.u32 %v2741, 7
        %v2743 = vsub.s32 0, %v2742
        %v2744 = vrot.slane %v2739, %v2743
        %v2745 = vlaneseq
        %v2746 = vshrl.u32 %v2745, 7
        %v2747 = vsub.s32 1, %v2746
        %v2748 = vrot.slane %v2739, %v2747
        %v2749 = vlaneseq
        %v2750 = vshrl.u32 %v2749, 7
        %v2751 = vsub.s32 2, %v2750
        %v2752 = vrot.slane %v2739, %v2751
        %v2753 = vlaneseq
        %v2754 = vshrl.u32 %v2753, 7
        %v2755 = vsub.s32 3, %v2754
        %v2756 = vrot.slane %v2739, %v2755
        %v2769 = vunpack.c.l.b16 %v2731
        %v2770 = vunpack.c.h.b16 %v2731
        %v2771 = vunpack.c.l.b16 %v2732
        %v2772 = vunpack.c.h.b16 %v2732
        %v2773 = vunpack.c.l.b16 %v2733
        %v2774 = vunpack.c.h.b16 %v2733
        %v2775 = vunpack.c.l.b16 %v2734
        %v2776 = vunpack.c.h.b16 %v2734
        %v2777 = vunpack.c.l.b16 %v2735
        %v2778 = vunpack.c.h.b16 %v2735
        %v2779 = vunpack.c.l.b16 %v2736
        %v2780 = vunpack.c.h.b16 %v2736
        %v2781 = vunpack.c.l.b16 %v2737
        %v2782 = vunpack.c.h.b16 %v2737
        %v2783 = vunpack.c.l.b16 %v2738
        %v2784 = vunpack.c.h.b16 %v2738
        %v2785 = vpack.c.b16 %v2773, %v2769
        %v2786 = vpack.c.b16 %v2774, %v2770
        %v2787 = vpack.c.b16 %v2775, %v2771
        %v2788 = vpack.c.b16 %v2776, %v2772
        %v2789 = vpack.c.b16 %v2781, %v2777
        %v2790 = vpack.c.b16 %v2782, %v2778
        %v2791 = vpack.c.b16 %v2783, %v2779
        %v2792 = vpack.c.b16 %v2784, %v2780
        %2801 = vmatprep.subr.bf16.mxu0 0
        %2802 = vmatpush1.bf16.msra.mxu0 0
        %2803 = vmatprep.subr.bf16.mxu0 0
        %2804 = vmatpush1.bf16.msra.mxu0 0
        %2805 = vmatprep.subr.bf16.mxu0 0
        %2806 = vmatpush1.bf16.msra.mxu0 0
        %2807 = vmatprep.subr.bf16.mxu0 0
        %2808 = vmatpush1.bf16.msra.mxu0 0
        %2809 = vmatprep.subr.bf16.mxu0 0
        %2810 = vmatpush1.bf16.msra.mxu0 0
        %2811 = vmatprep.subr.bf16.mxu0 0
        %2812 = vmatpush1.bf16.msra.mxu0 0
        %2813 = vmatprep.subr.bf16.mxu0 %v2790
        %2814 = vmatpush1.bf16.msra.mxu0 %v2789
        %2815 = vmatprep.subr.bf16.mxu0 %v2786
        %2816 = vmatpush1.bf16.msra.mxu0 %v2785
        %2817 = vmatprep.subr.bf16.mxu0 0
        %2818 = vmatpush2.bf16.msra.mxu0 0
        %2819 = vmatprep.subr.bf16.mxu0 0
        %2820 = vmatpush2.bf16.msra.mxu0 0
        %2821 = vmatprep.subr.bf16.mxu0 0
        %2822 = vmatpush2.bf16.msra.mxu0 0
        %2823 = vmatprep.subr.bf16.mxu0 0
        %2824 = vmatpush2.bf16.msra.mxu0 0
        %2825 = vmatprep.subr.bf16.mxu0 0
        %2826 = vmatpush2.bf16.msra.mxu0 0
        %2827 = vmatprep.subr.bf16.mxu0 0
        %2828 = vmatpush2.bf16.msra.mxu0 0
        %2829 = vmatprep.subr.bf16.mxu0 0
        %2830 = vmatpush2.bf16.msra.mxu0 0
        %2831 = vmatprep.subr.bf16.mxu0 0
        %2832 = vmatpush2.bf16.msra.mxu0 0
        %2833 = vmatprep.mubr.bf16.mxu0 0
        %2834 = vmatmul.mubr.bf16.gmra.mxu0 %v1310
        %v2835 = vpop.f32.mrf.mxu0
        %v2836 = vadd.f32 %v2744, %v2835
        %v2837 = vpop.f32.mrf.mxu0
        %v2838 = vadd.f32 %v2748, %v2837
        %v2839 = vpop.f32.mrf.mxu0
        %v2840 = vpop.f32.mrf.mxu0
        %2841 = vdwg.mxu0
        %2842 = vmatprep.subr.bf16.mxu0 0
        %2843 = vmatpush1.bf16.msra.mxu0 0
        %2844 = vmatprep.subr.bf16.mxu0 0
        %2845 = vmatpush1.bf16.msra.mxu0 0
        %2846 = vmatprep.subr.bf16.mxu0 0
        %2847 = vmatpush1.bf16.msra.mxu0 0
        %2848 = vmatprep.subr.bf16.mxu0 0
        %2849 = vmatpush1.bf16.msra.mxu0 0
        %2850 = vmatprep.subr.bf16.mxu0 0
        %2851 = vmatpush1.bf16.msra.mxu0 0
        %2852 = vmatprep.subr.bf16.mxu0 0
        %2853 = vmatpush1.bf16.msra.mxu0 0
        %2854 = vmatprep.subr.bf16.mxu0 %v2792
        %2855 = vmatpush1.bf16.msra.mxu0 %v2791
        %2856 = vmatprep.subr.bf16.mxu0 %v2788
        %2857 = vmatpush1.bf16.msra.mxu0 %v2787
        %2858 = vmatprep.subr.bf16.mxu0 0
        %2859 = vmatpush2.bf16.msra.mxu0 0
        %2860 = vmatprep.subr.bf16.mxu0 0
        %2861 = vmatpush2.bf16.msra.mxu0 0
        %2862 = vmatprep.subr.bf16.mxu0 0
        %2863 = vmatpush2.bf16.msra.mxu0 0
        %2864 = vmatprep.subr.bf16.mxu0 0
        %2865 = vmatpush2.bf16.msra.mxu0 0
        %2866 = vmatprep.subr.bf16.mxu0 0
        %2867 = vmatpush2.bf16.msra.mxu0 0
        %2868 = vmatprep.subr.bf16.mxu0 0
        %2869 = vmatpush2.bf16.msra.mxu0 0
        %2870 = vmatprep.subr.bf16.mxu0 0
        %2871 = vmatpush2.bf16.msra.mxu0 0
        %2872 = vmatprep.subr.bf16.mxu0 0
        %2873 = vmatpush2.bf16.msra.mxu0 0
        %2874 = vmatprep.mubr.bf16.mxu0 0
        %2875 = vmatmul.mubr.bf16.gmra.mxu0 %v1310
        %v2876 = vpop.f32.mrf.mxu0
        %v2877 = vadd.f32 %v2752, %v2876
        %v2878 = vpop.f32.mrf.mxu0
        %v2879 = vadd.f32 %v2756, %v2878
        %v2880 = vpop.f32.mrf.mxu0
        %v2881 = vpop.f32.mrf.mxu0
        %2882 = vdwg.mxu0
        %v2883 = vmax.f32 %v2836, 0.0
        %v2884 = vmax.f32 %v2838, 0.0
        %v2885 = vmax.f32 %v2877, 0.0
        %v2886 = vmax.f32 %v2879, 0.0
        %v2887 = vpack.c.bf16 %v2883, %v2883
        %v2888 = vpack.c.bf16 %v2884, %v2884
        %v2889 = vpack.c.bf16 %v2885, %v2885
        %v2890 = vpack.c.bf16 %v2886, %v2886
        %v2891 = vld [vmem:[%s8 + $0x300] sm:$0xf]
        %v2892 = vld [vmem:[%s8 + $0x304] sm:$0xf]
        %v2893 = vld [vmem:[%s8 + $0x308] sm:$0xf]
        %v2894 = vld [vmem:[%s8 + $0x30c] sm:$0xf]
        %v2895 = vld [vmem:[%s8 + $0x310] sm:$0xf]
        %v2896 = vld [vmem:[%s8 + $0x314] sm:$0xf]
        %v2897 = vld [vmem:[%s8 + $0x318] sm:$0xf]
        %v2898 = vld [vmem:[%s8 + $0x31c] sm:$0xf]
        %v2899 = vld [vmem:[%s8 + $0x320] sm:$0xf]
        %v2900 = vld [vmem:[%s8 + $0x324] sm:$0xf]
        %v2901 = vld [vmem:[%s8 + $0x328] sm:$0xf]
        %v2902 = vld [vmem:[%s8 + $0x32c] sm:$0xf]
        %v2903 = vld [vmem:[%s8 + $0x330] sm:$0xf]
        %v2904 = vld [vmem:[%s8 + $0x334] sm:$0xf]
        %v2905 = vld [vmem:[%s8 + $0x338] sm:$0xf]
        %v2906 = vld [vmem:[%s8 + $0x33c] sm:$0xf]
        %v2907 = vld [vmem:[%s8 + $0x340] sm:$0xf]
        %v2908 = vld [vmem:[%s8 + $0x344] sm:$0xf]
        %v2909 = vld [vmem:[%s8 + $0x348] sm:$0xf]
        %v2910 = vld [vmem:[%s8 + $0x34c] sm:$0xf]
        %v2911 = vld [vmem:[%s8 + $0x350] sm:$0xf]
        %v2912 = vld [vmem:[%s8 + $0x354] sm:$0xf]
        %v2913 = vld [vmem:[%s8 + $0x358] sm:$0xf]
        %v2914 = vld [vmem:[%s8 + $0x35c] sm:$0xf]
        %v2915 = vld [vmem:[%s8 + $0x360] sm:$0xf]
        %v2916 = vld [vmem:[%s8 + $0x364] sm:$0xf]
        %v2917 = vld [vmem:[%s8 + $0x368] sm:$0xf]
        %v2918 = vld [vmem:[%s8 + $0x36c] sm:$0xf]
        %v2919 = vld [vmem:[%s8 + $0x370] sm:$0xf]
        %v2920 = vld [vmem:[%s8 + $0x374] sm:$0xf]
        %v2921 = vld [vmem:[%s8 + $0x378] sm:$0xf]
        %v2922 = vld [vmem:[%s8 + $0x37c] sm:$0xf]
        %v2923 = vld [vmem:[%s8 + $0x380] sm:$0xf]
        %v2924 = vld [vmem:[%s8 + $0x384] sm:$0xf]
        %v2925 = vld [vmem:[%s8 + $0x388] sm:$0xf]
        %v2926 = vld [vmem:[%s8 + $0x38c] sm:$0xf]
        %v2927 = vld [vmem:[%s8 + $0x390] sm:$0xf]
        %v2928 = vld [vmem:[%s8 + $0x394] sm:$0xf]
        %v2929 = vld [vmem:[%s8 + $0x398] sm:$0xf]
        %v2930 = vld [vmem:[%s8 + $0x39c] sm:$0xf]
        %v2931 = vld [vmem:[%s8 + $0x3a0] sm:$0xf]
        %v2932 = vld [vmem:[%s8 + $0x3a4] sm:$0xf]
        %v2933 = vld [vmem:[%s8 + $0x3a8] sm:$0xf]
        %v2934 = vld [vmem:[%s8 + $0x3ac] sm:$0xf]
        %v2935 = vld [vmem:[%s8 + $0x3b0] sm:$0xf]
        %v2936 = vld [vmem:[%s8 + $0x3b4] sm:$0xf]
        %v2937 = vld [vmem:[%s8 + $0x3b8] sm:$0xf]
        %v2938 = vld [vmem:[%s8 + $0x3bc] sm:$0xf]
        %v2939 = vld [vmem:[%s8 + $0x3c0] sm:$0xf]
        %v2940 = vld [vmem:[%s8 + $0x3c4] sm:$0xf]
        %v2941 = vld [vmem:[%s8 + $0x3c8] sm:$0xf]
        %v2942 = vld [vmem:[%s8 + $0x3cc] sm:$0xf]
        %v2943 = vld [vmem:[%s8 + $0x3d0] sm:$0xf]
        %v2944 = vld [vmem:[%s8 + $0x3d4] sm:$0xf]
        %v2945 = vld [vmem:[%s8 + $0x3d8] sm:$0xf]
        %v2946 = vld [vmem:[%s8 + $0x3dc] sm:$0xf]
        %v2947 = vld [vmem:[%s8 + $0x3e0] sm:$0xf]
        %v2948 = vld [vmem:[%s8 + $0x3e4] sm:$0xf]
        %v2949 = vld [vmem:[%s8 + $0x3e8] sm:$0xf]
        %v2950 = vld [vmem:[%s8 + $0x3ec] sm:$0xf]
        %v2951 = vld [vmem:[%s8 + $0x3f0] sm:$0xf]
        %v2952 = vld [vmem:[%s8 + $0x3f4] sm:$0xf]
        %v2953 = vld [vmem:[%s8 + $0x3f8] sm:$0xf]
        %v2954 = vld [vmem:[%s8 + $0x3fc] sm:$0xf]
        %v3019 = vunpack.c.l.b16 %v2891
        %v3020 = vunpack.c.l.b16 %v2892
        %v3021 = vunpack.c.l.b16 %v2893
        %v3022 = vunpack.c.l.b16 %v2894
        %v3023 = vunpack.c.l.b16 %v2895
        %v3024 = vunpack.c.l.b16 %v2896
        %v3025 = vunpack.c.l.b16 %v2897
        %v3026 = vunpack.c.l.b16 %v2898
        %v3027 = vunpack.c.l.b16 %v2899
        %v3028 = vunpack.c.l.b16 %v2900
        %v3029 = vunpack.c.l.b16 %v2901
        %v3030 = vunpack.c.l.b16 %v2902
        %v3031 = vunpack.c.l.b16 %v2903
        %v3032 = vunpack.c.l.b16 %v2904
        %v3033 = vunpack.c.l.b16 %v2905
        %v3034 = vunpack.c.l.b16 %v2906
        %v3035 = vunpack.c.l.b16 %v2907
        %v3036 = vunpack.c.l.b16 %v2908
        %v3037 = vunpack.c.l.b16 %v2909
        %v3038 = vunpack.c.l.b16 %v2910
        %v3039 = vunpack.c.l.b16 %v2911
        %v3040 = vunpack.c.l.b16 %v2912
        %v3041 = vunpack.c.l.b16 %v2913
        %v3042 = vunpack.c.l.b16 %v2914
        %v3043 = vunpack.c.l.b16 %v2915
        %v3044 = vunpack.c.l.b16 %v2916
        %v3045 = vunpack.c.l.b16 %v2917
        %v3046 = vunpack.c.l.b16 %v2918
        %v3047 = vunpack.c.l.b16 %v2919
        %v3048 = vunpack.c.l.b16 %v2920
        %v3049 = vunpack.c.l.b16 %v2921
        %v3050 = vunpack.c.l.b16 %v2922
        %v3051 = vunpack.c.l.b16 %v2923
        %v3052 = vunpack.c.l.b16 %v2924
        %v3053 = vunpack.c.l.b16 %v2925
        %v3054 = vunpack.c.l.b16 %v2926
        %v3055 = vunpack.c.l.b16 %v2927
        %v3056 = vunpack.c.l.b16 %v2928
        %v3057 = vunpack.c.l.b16 %v2929
        %v3058 = vunpack.c.l.b16 %v2930
        %v3059 = vunpack.c.l.b16 %v2931
        %v3060 = vunpack.c.l.b16 %v2932
        %v3061 = vunpack.c.l.b16 %v2933
        %v3062 = vunpack.c.l.b16 %v2934
        %v3063 = vunpack.c.l.b16 %v2935
        %v3064 = vunpack.c.l.b16 %v2936
        %v3065 = vunpack.c.l.b16 %v2937
        %v3066 = vunpack.c.l.b16 %v2938
        %v3067 = vunpack.c.l.b16 %v2939
        %v3068 = vunpack.c.l.b16 %v2940
        %v3069 = vunpack.c.l.b16 %v2941
        %v3070 = vunpack.c.l.b16 %v2942
        %v3071 = vunpack.c.l.b16 %v2943
        %v3072 = vunpack.c.l.b16 %v2944
        %v3073 = vunpack.c.l.b16 %v2945
        %v3074 = vunpack.c.l.b16 %v2946
        %v3075 = vunpack.c.l.b16 %v2947
        %v3076 = vunpack.c.l.b16 %v2948
        %v3077 = vunpack.c.l.b16 %v2949
        %v3078 = vunpack.c.l.b16 %v2950
        %v3079 = vunpack.c.l.b16 %v2951
        %v3080 = vunpack.c.l.b16 %v2952
        %v3081 = vunpack.c.l.b16 %v2953
        %v3082 = vunpack.c.l.b16 %v2954
        %v3083 = vpack.c.b16 %v3020, %v3019
        %v3084 = vpack.c.b16 %v3022, %v3021
        %v3085 = vpack.c.b16 %v3024, %v3023
        %v3086 = vpack.c.b16 %v3026, %v3025
        %v3087 = vpack.c.b16 %v3028, %v3027
        %v3088 = vpack.c.b16 %v3030, %v3029
        %v3089 = vpack.c.b16 %v3032, %v3031
        %v3090 = vpack.c.b16 %v3034, %v3033
        %v3091 = vpack.c.b16 %v3036, %v3035
        %v3092 = vpack.c.b16 %v3038, %v3037
        %v3093 = vpack.c.b16 %v3040, %v3039
        %v3094 = vpack.c.b16 %v3042, %v3041
        %v3095 = vpack.c.b16 %v3044, %v3043
        %v3096 = vpack.c.b16 %v3046, %v3045
        %v3097 = vpack.c.b16 %v3048, %v3047
        %v3098 = vpack.c.b16 %v3050, %v3049
        %v3099 = vpack.c.b16 %v3052, %v3051
        %v3100 = vpack.c.b16 %v3054, %v3053
        %v3101 = vpack.c.b16 %v3056, %v3055
        %v3102 = vpack.c.b16 %v3058, %v3057
        %v3103 = vpack.c.b16 %v3060, %v3059
        %v3104 = vpack.c.b16 %v3062, %v3061
        %v3105 = vpack.c.b16 %v3064, %v3063
        %v3106 = vpack.c.b16 %v3066, %v3065
        %v3107 = vpack.c.b16 %v3068, %v3067
        %v3108 = vpack.c.b16 %v3070, %v3069
        %v3109 = vpack.c.b16 %v3072, %v3071
        %v3110 = vpack.c.b16 %v3074, %v3073
        %v3111 = vpack.c.b16 %v3076, %v3075
        %v3112 = vpack.c.b16 %v3078, %v3077
        %v3113 = vpack.c.b16 %v3080, %v3079
        %v3114 = vpack.c.b16 %v3082, %v3081
        %3147 = vmatprep.subr.bf16.mxu0 0
        %3148 = vmatpush1.bf16.msra.mxu0 %v3090
        %3149 = vmatprep.subr.bf16.mxu0 0
        %3150 = vmatpush1.bf16.msra.mxu0 %v3089
        %3151 = vmatprep.subr.bf16.mxu0 0
        %3152 = vmatpush1.bf16.msra.mxu0 %v3088
        %3153 = vmatprep.subr.bf16.mxu0 0
        %3154 = vmatpush1.bf16.msra.mxu0 %v3087
        %3155 = vmatprep.subr.bf16.mxu0 0
        %3156 = vmatpush1.bf16.msra.mxu0 %v3086
        %3157 = vmatprep.subr.bf16.mxu0 0
        %3158 = vmatpush1.bf16.msra.mxu0 %v3085
        %3159 = vmatprep.subr.bf16.mxu0 0
        %3160 = vmatpush1.bf16.msra.mxu0 %v3084
        %3161 = vmatprep.subr.bf16.mxu0 0
        %3162 = vmatpush1.bf16.msra.mxu0 %v3083
        %3163 = vmatprep.subr.bf16.mxu0 0
        %3164 = vmatpush2.bf16.msra.mxu0 %v3098
        %3165 = vmatprep.subr.bf16.mxu0 0
        %3166 = vmatpush2.bf16.msra.mxu0 %v3097
        %3167 = vmatprep.subr.bf16.mxu0 0
        %3168 = vmatpush2.bf16.msra.mxu0 %v3096
        %3169 = vmatprep.subr.bf16.mxu0 0
        %3170 = vmatpush2.bf16.msra.mxu0 %v3095
        %3171 = vmatprep.subr.bf16.mxu0 0
        %3172 = vmatpush2.bf16.msra.mxu0 %v3094
        %3173 = vmatprep.subr.bf16.mxu0 0
        %3174 = vmatpush2.bf16.msra.mxu0 %v3093
        %3175 = vmatprep.subr.bf16.mxu0 0
        %3176 = vmatpush2.bf16.msra.mxu0 %v3092
        %3177 = vmatprep.subr.bf16.mxu0 0
        %3178 = vmatpush2.bf16.msra.mxu0 %v3091
        %3179 = vmatprep.mubr.bf16.mxu0 %v2888
        %3180 = vmatmul.mubr.bf16.gmra.mxu0 %v2887
        %v3181 = vpop.f32.mrf.mxu0
        %v3182 = vadd.f32 0.0, %v3181
        %v3183 = vpop.f32.mrf.mxu0
        %v3184 = vpop.f32.mrf.mxu0
        %v3185 = vpop.f32.mrf.mxu0
        %3186 = vdwg.mxu0
        %3187 = vmatprep.subr.bf16.mxu0 0
        %3188 = vmatpush1.bf16.msra.mxu0 %v3106
        %3189 = vmatprep.subr.bf16.mxu0 0
        %3190 = vmatpush1.bf16.msra.mxu0 %v3105
        %3191 = vmatprep.subr.bf16.mxu0 0
        %3192 = vmatpush1.bf16.msra.mxu0 %v3104
        %3193 = vmatprep.subr.bf16.mxu0 0
        %3194 = vmatpush1.bf16.msra.mxu0 %v3103
        %3195 = vmatprep.subr.bf16.mxu0 0
        %3196 = vmatpush1.bf16.msra.mxu0 %v3102
        %3197 = vmatprep.subr.bf16.mxu0 0
        %3198 = vmatpush1.bf16.msra.mxu0 %v3101
        %3199 = vmatprep.subr.bf16.mxu0 0
        %3200 = vmatpush1.bf16.msra.mxu0 %v3100
        %3201 = vmatprep.subr.bf16.mxu0 0
        %3202 = vmatpush1.bf16.msra.mxu0 %v3099
        %3203 = vmatprep.subr.bf16.mxu0 0
        %3204 = vmatpush2.bf16.msra.mxu0 %v3114
        %3205 = vmatprep.subr.bf16.mxu0 0
        %3206 = vmatpush2.bf16.msra.mxu0 %v3113
        %3207 = vmatprep.subr.bf16.mxu0 0
        %3208 = vmatpush2.bf16.msra.mxu0 %v3112
        %3209 = vmatprep.subr.bf16.mxu0 0
        %3210 = vmatpush2.bf16.msra.mxu0 %v3111
        %3211 = vmatprep.subr.bf16.mxu0 0
        %3212 = vmatpush2.bf16.msra.mxu0 %v3110
        %3213 = vmatprep.subr.bf16.mxu0 0
        %3214 = vmatpush2.bf16.msra.mxu0 %v3109
        %3215 = vmatprep.subr.bf16.mxu0 0
        %3216 = vmatpush2.bf16.msra.mxu0 %v3108
        %3217 = vmatprep.subr.bf16.mxu0 0
        %3218 = vmatpush2.bf16.msra.mxu0 %v3107
        %3219 = vmatprep.mubr.bf16.mxu0 %v2890
        %3220 = vmatmul.mubr.bf16.gmra.mxu0 %v2889
        %v3221 = vpop.f32.mrf.mxu0
        %v3222 = vadd.f32 %v3182, %v3221
        %v3223 = vpop.f32.mrf.mxu0
        %v3224 = vpop.f32.mrf.mxu0
        %v3225 = vpop.f32.mrf.mxu0
        %3226 = vdwg.mxu0
        %v3227 = vadd.f32 %v2730, %v3222
        %v3228 = vld [vmem:[%s9] sm:$0x1]
        %v3230 = vlaneseq
        %v3231 = vshrl.u32 %v3230, 7
        %v3232 = vsub.s32 0, %v3231
        %v3233 = vrot.slane %v3228, %v3232
        %v3235 = vadd.f32 %v3227, %v3233
        %v3236 = vadd.f32 %v1237, %v3235
        %v3237 = vld [vmem:[%s12] sm:$0x1]
        %v3238 = vld [vmem:[%s13] sm:$0x1]
        %v3239 = vsel %vm506, %v3236, 0.0
        %3240 = vadd.xlane.f32.xlu0 %v3239
        %v3241 = vpop.xlane.xlu0 %3240
        %v3242 = vmul.f32 %v3241, %v1206
        %v3243 = vsub.f32 %v3236, %v3242
        %v3244 = vmul.f32 %v3243, %v3243
        %v3245 = vsel %vm506, %v3244, 0.0
        %3246 = vadd.xlane.f32.xlu0 %v3245
        %v3247 = vpop.xlane.xlu0 %3246
        %v3248 = vmul.f32 %v3247, 0.032258064
        %v3250 = vlaneseq
        %v3251 = vshrl.u32 %v3250, 7
        %v3252 = vsub.s32 0, %v3251
        %v3253 = vrot.slane %v3237, %v3252
        %v3255 = vmul.f32 %v3253, %v3243
        %v3256 = vrsqrt.pop %v3248
        %v3257 = vmul.f32 %v3248, %v3256
        %vm3258 = vcmp.eq.f32.partialorder %v3248, inf
        %v3259 = vsel %vm3258, %v3248, %v3257
        %vm3260 = vcmp.eq.f32.partialorder %v3248, 0.0
        %v3261 = vand.u32 %v3248, 2147483648
        %v3262 = vsel %vm3260, %v3261, %v3259
        %v3263 = vadd.f32 %v3262, 1e-06
        %v3264 = vrcp.pop %v3263
        %v3265 = vmul.f32 %v3255, %v3264
        %v3267 = vlaneseq
        %v3268 = vshrl.u32 %v3267, 7
        %v3269 = vsub.s32 0, %v3268
        %v3270 = vrot.slane %v3238, %v3269
        %v3272 = vadd.f32 %v3265, %v3270
        %3273 = vst.msk [vmem:[%s471] sm:$0xff] %vm506, %v3272
        %s3274 = sand.u32 %s340, 1
        %s3275 = scalar_lea.sflag [#allocation3], %s3274
        %s3276 = sand.u32 %s340, 1
        %s3277 = smul.addr %s3276, 8
        %s3278 = scalar_lea.vmem [#allocation2], %s3277
        // Predicated region
        $region77: #{tpu_custom_call.1} parent=75 // pred_check
          %p3279 = pneg %p350
        $region78: #{tpu_custom_call.1} parent=75 // pred_check_branch
          %3281 = sbr.rel (%p3279) target = $region80
        $region79: #{tpu_custom_call.1} parent=75 // pred_region
          %s3283 = ssub.s32 128, 128
          %3284 = vsyncadd %s3275, %s3283
          %s3285 = smul.addr %s28, 128
          %s3286 = scalar_lea.hbm %s14, %s3285
          %s3288 = sshll.u32 %s3278, 4
          %s3289 = int_to_ptr.vmem [resolvable:$true] %s3288
          %3291 = dma.vmem_to_hbm [thread:$0]  %s3289, 128, %s3286, %s3275
        $region80: #{tpu_custom_call.1} parent=75 // pred_fallthru
          _
      $region76: #{tpu_custom_call.1} parent=5 // pred_fallthru
        _
      %p3292 = scmp.le.s32.totalorder 2, %s23
      // Predicated region
      $region81: #{tpu_custom_call.1} parent=5 // pred_check
        %p3293 = pneg %p3292
      $region82: #{tpu_custom_call.1} parent=5 // pred_check_branch
        %3295 = sbr.rel (%p3293) target = $region84
      $region83: #{tpu_custom_call.1} parent=5 // pred_region
        %s3296 = ssub.s32 %s23, 2
        // Predicated region
        $region85: #{tpu_custom_call.1} parent=83 // pred_check
          %p3297 = pneg %p356
        $region86: #{tpu_custom_call.1} parent=83 // pred_check_branch
          %3299 = sbr.rel (%p3297) target = $region88
        $region87: #{tpu_custom_call.1} parent=83 // pred_region
          %s3300 = sand.u32 %s341, 1
          %s3301 = scalar_lea.sflag [#allocation3], %s3300
          %s3302 = sand.u32 %s341, 1
          %s3303 = smul.addr %s3302, 8
          %s3304 = scalar_lea.vmem [#allocation2], %s3303
          %3305 = dma.done %s3301, 128
        $region88: #{tpu_custom_call.1} parent=83 // pred_fallthru
          _
      $region84: #{tpu_custom_call.1} parent=5 // pred_fallthru
        _
    $region6: #{tpu_custom_call.1} parent=1 // loop_footer
      %s27 = sadd.s32 1, %s23
    $region7: #{tpu_custom_call.1} parent=1 // loop_footer_branch
      %22 = sbr.rel target = $region3
    $region8: #{tpu_custom_call.1} parent=1 // loop_exit
      _
    %3306 = vsyncpa [#allocation3], 1
    %s3307 = scalar_lea.sflag [#allocation3], 1
    %3308 = vsyncpa %s3307, 1

</llo_original>
